<compile_context>
chip_gen: v6e
topology: v6e:2x2x1
jax: 0.10.0
libtpu: 0.0.40
codegen_flags: <defaults>
</compile_context>

<pallas_src>
import functools

import numpy as np
import jax
import jax.numpy as jnp
from jax import lax
from jax.experimental import pallas as pl
from jax.experimental.pallas import tpu as pltpu

KS = 3           # global `KS` used by src_word_emb in model.py (odd, "same" padding)
KS_PAD = 8       # KS taps + 1 bias column, zero-padded to a sublane multiple
LN_EPS = 1e-5    # nn.LayerNorm default eps
NEG_BIG = -1e30  # finite "minus infinity" for key-pad masking


# ------------------------------ fused kernel --------------------------------

def _fused_transformer_kernel(n_layers, n_head, d_k, d_v, seq_len, tb, mxu_dtype,
                              # per-block inputs
                              x_ref, nonpad_ref, kbias_ref,
                              # weights (whole arrays, constant index maps -> fetched once)
                              emb_w_ref, w_qkv_ref, b_qkv_ref, fc_w_ref, vecs_ref,
                              ffn_w1_ref, ffn_b1_ref, ffn_w2_ref,
                              cov_w_ref, cov_b_ref,
                              # output
                              o_ref):
    """TB sequences per grid step; everything stays VMEM/vreg resident."""
    H, L, TB = n_head, seq_len, tb
    inv_temp = 1.0 / float(np.sqrt(d_k))

    def mx(x):                      # matmul operands at MXU precision (f32 or bf16)
        return x.astype(mxu_dtype)

    def layer_norm(x, g, b):        # f32 elementwise math on all chips
        mean = jnp.mean(x, axis=-1, keepdims=True)
        cent = x - mean
        var = jnp.mean(cent * cent, axis=-1, keepdims=True)
        return cent * lax.rsqrt(var + LN_EPS) * g + b

    nonpad = nonpad_ref[...]                                            # (TB*L, 1)
    # key-pad additive bias, broadcast ONCE (hoisted out of the layer/head loops)
    kb = jnp.broadcast_to(kbias_ref[...][:, None, :], (TB, L, L))       # (TB, L, L)

    # src_word_emb: Conv1d(1, d_model, KS, padding='same') as one unfolded matmul
    # (conv bias folded in via the constant-1 input column).
    enc = jnp.dot(x_ref[...], emb_w_ref[...],
                  preferred_element_type=jnp.float32)                   # (TB*L, D)
    D = enc.shape[-1]

    for l in range(n_layers):
        vec = vecs_ref[l]                                               # (6, D)
        fc_b, ln1_g, ln1_b = vec[0:1], vec[1:2], vec[2:3]
        ffn_b2, ln2_g, ln2_b = vec[3:4], vec[4:5], vec[5:6]

        # ---- multi-head self-attention (post-LN; dropout == identity) ----
        residual = enc
        # packed QKV projection: ONE (TB*L, D) @ (D, 3*H*d_k) matmul
        qkv = jnp.dot(mx(enc), w_qkv_ref[l],
                      preferred_element_type=jnp.float32) + b_qkv_ref[l]
        qkv = qkv.reshape(TB, L, 3 * H * d_k)
        ctx_heads = []
        for h in range(H):
            q = mx(qkv[:, :, h * d_k:(h + 1) * d_k])                    # (TB, L, d_k)
            k = mx(qkv[:, :, (H + h) * d_k:(H + h + 1) * d_k])
            v = mx(qkv[:, :, (2 * H + h) * d_k:(2 * H + h) * d_k + d_v])
            s = jnp.einsum('bqd,bkd->bqk', q, k,
                           preferred_element_type=jnp.float32) * inv_temp + kb
            s_max = jnp.max(s, axis=-1, keepdims=True)
            p = jnp.exp(s - s_max)
            attn = p / jnp.sum(p, axis=-1, keepdims=True)               # exact divide
            ctx_heads.append(jnp.einsum('bqk,bkd->bqd', mx(attn), v,
                                        preferred_element_type=jnp.float32))
        # concat heads -> ONE (TB*L, H*d_v) @ (H*d_v, D) output projection
        ctx = jnp.concatenate(ctx_heads, axis=-1).reshape(TB * L, H * d_v)
        attn_out = jnp.dot(mx(ctx), fc_w_ref[l],
                           preferred_element_type=jnp.float32) + fc_b
        enc = layer_norm(attn_out + residual, ln1_g, ln1_b) * nonpad

        # ---- position-wise FFN (two 1x1 convs + ReLU) ----
        hidden = jnp.maximum(
            jnp.dot(mx(enc), ffn_w1_ref[l],
                    preferred_element_type=jnp.float32) + ffn_b1_ref[l], 0.0)
        ffn = jnp.dot(mx(hidden), ffn_w2_ref[l],
                      preferred_element_type=jnp.float32) + ffn_b2
        enc = layer_norm(ffn + enc, ln2_g, ln2_b) * nonpad

    # Transformer.forward epilogue: linear1_cov = Conv1d(d_feature, 1, 1) over the
    # sequence axis, expressed as a batched (TB, 1, L) @ (TB, L, D) MXU matmul.
    enc3 = enc.reshape(TB, L, D)
    covq = jnp.broadcast_to(mx(cov_w_ref[...])[None], (TB, 1, L))
    out = jnp.einsum('bqf,bfd->bqd', covq, mx(enc3),
                     preferred_element_type=jnp.float32)                # (TB, 1, D)
    o_ref[...] = (out.reshape(TB, D) + cov_b_ref[...]).astype(o_ref.dtype)


# ------------------------- parameters & forward pass ------------------------

def init_params(key, cfg):
    d_feature, d_model = cfg["d_feature"], cfg["d_model"]
    d_inner, n_layers = cfg["d_inner"], cfg["n_layers"]
    n_head, d_k, d_v = cfg["n_head"], cfg["d_k"], cfg["d_v"]
    assert d_k == d_v, "packed qkv layout assumes d_k == d_v"
    keys = iter(jax.random.split(key, 16))

    def rnd(shape, scale=0.1):
        return scale * jax.random.normal(next(keys), shape, dtype=jnp.float32)

    # Conv1d(1, d_model, KS): rows 0..KS-1 = taps, row KS = bias, rest zero pad.
    emb_w = rnd((KS, d_model))
    emb_b = rnd((1, d_model))
    emb_w_pad = jnp.concatenate(
        [emb_w, emb_b, jnp.zeros((KS_PAD - KS - 1, d_model), jnp.float32)], axis=0)

    # per-layer (6, D) vector slab: [fc_b, ln1_g, ln1_b, ffn_b2, ln2_g, ln2_b]
    fc_b = rnd((n_layers, d_model))
    ffn_b2 = rnd((n_layers, d_model))
    ones = jnp.ones((n_layers, d_model), jnp.float32)
    zeros = jnp.zeros((n_layers, d_model), jnp.float32)
    vecs = jnp.stack([fc_b, ones, zeros, ffn_b2, ones, zeros], axis=1)

    params = {
        "emb_w_pad": emb_w_pad,
        # packed QKV: lanes = [q_h0 .. q_h{H-1} | k_h0 .. | v_h0 ..], each d_k wide
        "w_qkv": rnd((n_layers, d_model, 3 * n_head * d_k)),
        "b_qkv": rnd((n_layers, 1, 3 * n_head * d_k)),
        # output projection with heads concatenated along rows
        "fc_w": rnd((n_layers, n_head * d_v, d_model)),
        "vecs": vecs,
        "ffn_w1": rnd((n_layers, d_model, d_inner)),
        "ffn_b1": rnd((n_layers, 1, d_inner)),
        "ffn_w2": rnd((n_layers, d_inner, d_model)),
        "cov_w": rnd((1, d_feature)),                  # Conv1d(d_feature, 1, 1)
        "cov_b": rnd((1, 1)),
    }
    return params


def transformer_forward(params, src_seq, cfg, RR=None, *, mxu_dtype=jnp.bfloat16):
    """RR is unused (as in the PyTorch forward). mxu_dtype: f32 or bf16 matmul inputs."""
    del RR
    B, L = src_seq.shape
    D, d_inner = cfg["d_model"], cfg["d_inner"]
    n_layers, H = cfg["n_layers"], cfg["n_head"]
    d_k, d_v = cfg["d_k"], cfg["d_v"]

    # Batch tiling: aim for TB*L ~= 128 rows per grid step; pad B so the grid
    # divides evenly (padded rows are all-PAD and sliced off the output).
    # On v7x, prefer raising TB over adding grid steps (VMEM is not a constraint).
    TB = max(1, min(max(1, 128 // L), B))
    B_pad = -(-B // TB) * TB
    src = jnp.pad(src_seq, ((0, B_pad - B), (0, 0)))

    # masks (Constants.PAD == 0).  Key-pad mask kept as a tiny (B, L) additive
    # bias (broadcast in-kernel) instead of a dense (B, L, L) tensor.
    non_pad = (src != 0.0).astype(jnp.float32).reshape(B_pad * L, 1)
    key_bias = jnp.where(src == 0.0, NEG_BIG, 0.0).astype(jnp.float32)      # (B_pad, L)

    # src_word_emb as unfolded-matmul input; the extra constant-1 column folds
    # the conv bias into the embedding matmul (one fewer kernel argument).
    pad = (KS - 1) // 2
    xp = jnp.pad(src, ((0, 0), (pad, pad)))
    idx = jnp.arange(L)[:, None] + jnp.arange(KS)[None, :]
    x_unf = jnp.concatenate(
        [xp[:, idx],
         jnp.ones((B_pad, L, 1), jnp.float32),
         jnp.zeros((B_pad, L, KS_PAD - KS - 1), jnp.float32)], axis=-1)
    x_unf = x_unf.reshape(B_pad * L, KS_PAD).astype(mxu_dtype)

    wt = lambda w: w.astype(mxu_dtype)   # matmul weights at MXU precision (halves DMA in bf16)

    kern = functools.partial(_fused_transformer_kernel,
                             n_layers, H, d_k, d_v, L, TB, mxu_dtype)

    def whole(shape):
        # whole-array weight block, constant index map -> fetched once across grid
        return pl.BlockSpec(shape, lambda b, _n=len(shape): (0,) * _n)

    out = pl.pallas_call(
        kern,
        out_shape=jax.ShapeDtypeStruct((B_pad, D), jnp.float32),
        grid=(B_pad // TB,),
        in_specs=[
            pl.BlockSpec((TB * L, KS_PAD), lambda b: (b, 0)),   # x_unf
            pl.BlockSpec((TB * L, 1), lambda b: (b, 0)),        # non_pad mask
            pl.BlockSpec((TB, L), lambda b: (b, 0)),            # key-pad bias
            whole((KS_PAD, D)),                                 # embedding (bias folded)
            whole((n_layers, D, 3 * H * d_k)),                  # packed QKV weights
            whole((n_layers, 1, 3 * H * d_k)),                  # packed QKV bias
            whole((n_layers, H * d_v, D)),                      # fc_w (heads concat)
            whole((n_layers, 6, D)),                            # fc_b/ln1/ffn_b2/ln2 slab
            whole((n_layers, D, d_inner)),                      # ffn_w1
            whole((n_layers, 1, d_inner)),                      # ffn_b1
            whole((n_layers, d_inner, D)),                      # ffn_w2
            whole((1, L)), whole((1, 1)),                       # linear1_cov
        ],
        out_specs=pl.BlockSpec((TB, D), lambda b: (b, 0)),
        compiler_params=pltpu.CompilerParams(dimension_semantics=("parallel",)),
    )(x_unf, non_pad, key_bias,
      wt(params["emb_w_pad"]),
      wt(params["w_qkv"]), params["b_qkv"],
      wt(params["fc_w"]), params["vecs"],
      wt(params["ffn_w1"]), params["ffn_b1"], wt(params["ffn_w2"]),
      wt(params["cov_w"]), params["cov_b"])

    return out[:B]                                            # res.view(B, -1)


# ------------------------------ pure-JAX reference ---------------------------

def reference_forward(params, src_seq, cfg):
    B, L = src_seq.shape
    H, d_k, d_v = cfg["n_head"], cfg["d_k"], cfg["d_v"]
    n_layers, D = cfg["n_layers"], cfg["d_model"]
    non_pad = (src_seq != 0.0).astype(jnp.float32)[..., None]
    key_mask = (src_seq == 0.0)[:, None, None, :]             # (B, 1, 1, L)

    pad = (KS - 1) // 2
    xp = jnp.pad(src_seq, ((0, 0), (pad, pad)))
    idx = jnp.arange(L)[:, None] + jnp.arange(KS)[None, :]
    x_unf = jnp.concatenate(
        [xp[:, idx], jnp.ones((B, L, 1), jnp.float32),
         jnp.zeros((B, L, KS_PAD - KS - 1), jnp.float32)], axis=-1)
    enc = x_unf @ params["emb_w_pad"]                         # bias folded

    def ln(x, g, b):
        m = x.mean(-1, keepdims=True)
        v = ((x - m) ** 2).mean(-1, keepdims=True)
        return (x - m) / jnp.sqrt(v + LN_EPS) * g + b

    for l in range(n_layers):
        res = enc
        vec = params["vecs"][l]
        qkv = enc @ params["w_qkv"][l] + params["b_qkv"][l]   # (B, L, 3*H*d_k)
        q = qkv[..., :H * d_k].reshape(B, L, H, d_k)
        k = qkv[..., H * d_k:2 * H * d_k].reshape(B, L, H, d_k)
        v_ = qkv[..., 2 * H * d_k:].reshape(B, L, H, d_v)
        s = jnp.einsum("bqhd,bkhd->bhqk", q, k) / np.sqrt(d_k)
        s = jnp.where(key_mask, -jnp.inf, s)
        a = jax.nn.softmax(s, axis=-1)
        ctx = jnp.einsum("bhqk,bkhd->bqhd", a, v_).reshape(B, L, H * d_v)
        attn_out = ctx @ params["fc_w"][l] + vec[0]
        enc = ln(attn_out + res, vec[1], vec[2]) * non_pad
        ffn = (jnp.maximum(enc @ params["ffn_w1"][l] + params["ffn_b1"][l], 0.0)
               @ params["ffn_w2"][l] + vec[3])
        enc = ln(ffn + enc, vec[4], vec[5]) * non_pad
    return jnp.einsum("f,bfd->bd", params["cov_w"][0], enc) + params["cov_b"][0, 0]


# ----------------------------------- main ------------------------------------

if __name__ == "__main__":
    cfg = dict(d_feature=16, d_model=32, d_inner=64,
               n_layers=2, n_head=4, d_k=8, d_v=8, class_num=5)
    B = 2

    key = jax.random.PRNGKey(0)
    k_in, k_rr, k_par = jax.random.split(key, 3)
    src_seq = jax.random.normal(k_in, (B, cfg["d_feature"]), dtype=jnp.float32)
    RR = jax.random.normal(k_rr, (B, 4), dtype=jnp.float32)   # unused by forward
    params = init_params(k_par, cfg)

    ref = reference_forward(params, src_seq, cfg)

    # Exact path (f32 MXU inputs): tight agreement now that softmax uses an
    # exact divide instead of the approximate EUP reciprocal.
    out_f32 = jax.block_until_ready(
        transformer_forward(params, src_seq, cfg, RR, mxu_dtype=jnp.float32))
    assert out_f32.shape == (B, cfg["d_model"])
    np.testing.assert_allclose(np.asarray(out_f32), np.asarray(ref),
                               rtol=1e-3, atol=1e-3)

    # bf16-MXU path (native on v6e/v7x): matmul inputs in bf16, LN/softmax/
    # accumulation in f32.  Tolerance reflects bf16 rounding compounded across
    # 2 layers; the f32 path above is the tight accuracy check.
    out_bf16 = jax.block_until_ready(
        transformer_forward(params, src_seq, cfg, RR, mxu_dtype=jnp.bfloat16))
    assert out_bf16.shape == (B, cfg["d_model"])
    np.testing.assert_allclose(np.asarray(out_bf16), np.asarray(ref),
                               rtol=5e-2, atol=5e-2)

    print("KERNEL_OK")
</pallas_src>

<mosaic_0001>
module attributes {stable_mosaic.version = 11 : i64} {
  func.func @_fused_transformer_kernel(%arg0: i32, %arg1: memref<32x8xf32, #tpu.memory_space<vmem>>, %arg2: memref<32x1xf32, #tpu.memory_space<vmem>>, %arg3: memref<2x16xf32, #tpu.memory_space<vmem>>, %arg4: memref<8x32xf32, #tpu.memory_space<vmem>>, %arg5: memref<2x32x96xf32, #tpu.memory_space<vmem>>, %arg6: memref<2x1x96xf32, #tpu.memory_space<vmem>>, %arg7: memref<2x32x32xf32, #tpu.memory_space<vmem>>, %arg8: memref<2x6x32xf32, #tpu.memory_space<vmem>>, %arg9: memref<2x32x64xf32, #tpu.memory_space<vmem>>, %arg10: memref<2x1x64xf32, #tpu.memory_space<vmem>>, %arg11: memref<2x64x32xf32, #tpu.memory_space<vmem>>, %arg12: memref<1x16xf32, #tpu.memory_space<vmem>>, %arg13: memref<1x1xf32, #tpu.memory_space<vmem>>, %arg14: memref<2x32xf32, #tpu.memory_space<vmem>>) attributes {dimension_semantics = [#tpu.dimension_semantics<parallel>], iteration_bounds = array<i64: 1>, scalar_prefetch = 0 : i64, scratch_operands = 0 : i64, tpu.core_type = #tpu.core_type<tc>, window_params = [{transform_indices = @transform_0, window_bounds = array<i64: 32, 8>}, {transform_indices = @transform_1, window_bounds = array<i64: 32, 1>}, {transform_indices = @transform_2, window_bounds = array<i64: 2, 16>}, {pipeline_mode = #tpu.pipeline_mode<synchronous>, transform_indices = @transform_3, window_bounds = array<i64: 8, 32>}, {pipeline_mode = #tpu.pipeline_mode<synchronous>, transform_indices = @transform_4, window_bounds = array<i64: 2, 32, 96>}, {pipeline_mode = #tpu.pipeline_mode<synchronous>, transform_indices = @transform_5, window_bounds = array<i64: 2, 1, 96>}, {pipeline_mode = #tpu.pipeline_mode<synchronous>, transform_indices = @transform_6, window_bounds = array<i64: 2, 32, 32>}, {pipeline_mode = #tpu.pipeline_mode<synchronous>, transform_indices = @transform_7, window_bounds = array<i64: 2, 6, 32>}, {pipeline_mode = #tpu.pipeline_mode<synchronous>, transform_indices = @transform_8, window_bounds = array<i64: 2, 32, 64>}, {pipeline_mode = #tpu.pipeline_mode<synchronous>, transform_indices = @transform_9, window_bounds = array<i64: 2, 1, 64>}, {pipeline_mode = #tpu.pipeline_mode<synchronous>, transform_indices = @transform_10, window_bounds = array<i64: 2, 64, 32>}, {pipeline_mode = #tpu.pipeline_mode<synchronous>, transform_indices = @transform_11, window_bounds = array<i64: 1, 16>}, {pipeline_mode = #tpu.pipeline_mode<synchronous>, transform_indices = @transform_12, window_bounds = array<i64: 1, 1>}, {transform_indices = @transform_13, window_bounds = array<i64: 2, 32>}]} {
    %c0 = arith.constant 0 : index
    %c0_0 = arith.constant 0 : index
    %0 = vector.load %arg2[%c0, %c0_0] : memref<32x1xf32, #tpu.memory_space<vmem>>, vector<32x1xf32>
    %c0_1 = arith.constant 0 : index
    %c0_2 = arith.constant 0 : index
    %1 = vector.load %arg3[%c0_1, %c0_2] : memref<2x16xf32, #tpu.memory_space<vmem>>, vector<2x16xf32>
    %2 = vector.shape_cast %1 : vector<2x16xf32> to vector<2x1x16xf32>
    %3 = vector.shape_cast %2 : vector<2x1x16xf32> to vector<2x1x16xf32>
    %4 = vector.broadcast %3 : vector<2x1x16xf32> to vector<2x16x16xf32>
    %c0_3 = arith.constant 0 : index
    %c0_4 = arith.constant 0 : index
    %5 = vector.load %arg1[%c0_3, %c0_4] : memref<32x8xf32, #tpu.memory_space<vmem>>, vector<32x8xf32>
    %c0_5 = arith.constant 0 : index
    %c0_6 = arith.constant 0 : index
    %6 = vector.load %arg4[%c0_5, %c0_6] : memref<8x32xf32, #tpu.memory_space<vmem>>, vector<8x32xf32>
    %cst = arith.constant dense<0.000000e+00> : vector<32x32xf32>
    %7 = tpu.matmul %5, %6, %cst {dimension_numbers = #tpu.dot_dimension_numbers<[1], [0], [0], [1], [0, 0, 1, 1], [], []>} : vector<32x8xf32>, vector<8x32xf32>, vector<32x32xf32> -> vector<32x32xf32>
    %c0_7 = arith.constant 0 : index
    %c0_8 = arith.constant 0 : index
    %c0_9 = arith.constant 0 : index
    %8 = vector.load %arg8[%c0_7, %c0_8, %c0_9] : memref<2x6x32xf32, #tpu.memory_space<vmem>>, vector<1x6x32xf32>
    %9 = vector.shape_cast %8 : vector<1x6x32xf32> to vector<6x32xf32>
    %10 = vector.extract_strided_slice %9 {offsets = [0, 0], sizes = [1, 32], strides = [1, 1]} : vector<6x32xf32> to vector<1x32xf32>
    %11 = vector.extract_strided_slice %9 {offsets = [1, 0], sizes = [1, 32], strides = [1, 1]} : vector<6x32xf32> to vector<1x32xf32>
    %12 = vector.extract_strided_slice %9 {offsets = [2, 0], sizes = [1, 32], strides = [1, 1]} : vector<6x32xf32> to vector<1x32xf32>
    %13 = vector.extract_strided_slice %9 {offsets = [3, 0], sizes = [1, 32], strides = [1, 1]} : vector<6x32xf32> to vector<1x32xf32>
    %14 = vector.extract_strided_slice %9 {offsets = [4, 0], sizes = [1, 32], strides = [1, 1]} : vector<6x32xf32> to vector<1x32xf32>
    %15 = vector.extract_strided_slice %9 {offsets = [5, 0], sizes = [1, 32], strides = [1, 1]} : vector<6x32xf32> to vector<1x32xf32>
    %c0_10 = arith.constant 0 : index
    %c0_11 = arith.constant 0 : index
    %c0_12 = arith.constant 0 : index
    %16 = vector.load %arg5[%c0_10, %c0_11, %c0_12] : memref<2x32x96xf32, #tpu.memory_space<vmem>>, vector<1x32x96xf32>
    %17 = vector.shape_cast %16 : vector<1x32x96xf32> to vector<32x96xf32>
    %cst_13 = arith.constant dense<0.000000e+00> : vector<32x96xf32>
    %18 = tpu.matmul %7, %17, %cst_13 {dimension_numbers = #tpu.dot_dimension_numbers<[1], [0], [0], [1], [0, 0, 1, 1], [], []>} : vector<32x32xf32>, vector<32x96xf32>, vector<32x96xf32> -> vector<32x96xf32>
    %c0_14 = arith.constant 0 : index
    %c0_15 = arith.constant 0 : index
    %c0_16 = arith.constant 0 : index
    %19 = vector.load %arg6[%c0_14, %c0_15, %c0_16] : memref<2x1x96xf32, #tpu.memory_space<vmem>>, vector<1x1x96xf32>
    %20 = vector.shape_cast %19 : vector<1x1x96xf32> to vector<1x96xf32>
    %21 = vector.broadcast %20 : vector<1x96xf32> to vector<32x96xf32>
    %22 = arith.addf %18, %21 : vector<32x96xf32>
    %23 = vector.shape_cast %22 : vector<32x96xf32> to vector<2x16x96xf32>
    %24 = vector.extract_strided_slice %23 {offsets = [0, 0, 0], sizes = [2, 16, 8], strides = [1, 1, 1]} : vector<2x16x96xf32> to vector<2x16x8xf32>
    %25 = vector.extract_strided_slice %23 {offsets = [0, 0, 32], sizes = [2, 16, 8], strides = [1, 1, 1]} : vector<2x16x96xf32> to vector<2x16x8xf32>
    %26 = vector.extract_strided_slice %23 {offsets = [0, 0, 64], sizes = [2, 16, 8], strides = [1, 1, 1]} : vector<2x16x96xf32> to vector<2x16x8xf32>
    "tpu.trace_start"() <{level = 10 : i32, message = "bqd,bkd->bqk"}> : () -> ()
    %cst_17 = arith.constant dense<0.000000e+00> : vector<2x16x16xf32>
    %27 = tpu.matmul %24, %25, %cst_17 {dimension_numbers = #tpu.dot_dimension_numbers<[2], [2], [1], [1], [0, 0, 0, 1, 1, 1], [0], [0]>} : vector<2x16x8xf32>, vector<2x16x8xf32>, vector<2x16x16xf32> -> vector<2x16x16xf32>
    "tpu.trace_stop"() : () -> ()
    %cst_18 = arith.constant 0.353553385 : f32
    %28 = vector.broadcast %cst_18 : f32 to vector<2x16x16xf32>
    %29 = arith.mulf %27, %28 : vector<2x16x16xf32>
    %30 = arith.addf %29, %4 : vector<2x16x16xf32>
    %cst_19 = arith.constant dense<0xFF800000> : vector<2x16xf32>
    %31 = vector.multi_reduction <maximumf>, %30, %cst_19 [2] : vector<2x16x16xf32> to vector<2x16xf32>
    %32 = vector.shape_cast %31 : vector<2x16xf32> to vector<2x16x1xf32>
    %33 = vector.broadcast %32 : vector<2x16x1xf32> to vector<2x16x16xf32>
    %34 = arith.subf %30, %33 : vector<2x16x16xf32>
    %35 = math.exp %34 : vector<2x16x16xf32>
    %cst_20 = arith.constant dense<0.000000e+00> : vector<2x16xf32>
    %36 = vector.multi_reduction <add>, %35, %cst_20 [2] : vector<2x16x16xf32> to vector<2x16xf32>
    %37 = vector.shape_cast %36 : vector<2x16xf32> to vector<2x16x1xf32>
    %38 = vector.broadcast %37 : vector<2x16x1xf32> to vector<2x16x16xf32>
    %39 = arith.divf %35, %38 : vector<2x16x16xf32>
    "tpu.trace_start"() <{level = 10 : i32, message = "bqk,bkd->bqd"}> : () -> ()
    %cst_21 = arith.constant dense<0.000000e+00> : vector<2x16x8xf32>
    %40 = tpu.matmul %39, %26, %cst_21 {dimension_numbers = #tpu.dot_dimension_numbers<[2], [1], [1], [2], [0, 0, 0, 1, 1, 2], [0], [0]>} : vector<2x16x16xf32>, vector<2x16x8xf32>, vector<2x16x8xf32> -> vector<2x16x8xf32>
    "tpu.trace_stop"() : () -> ()
    %41 = vector.extract_strided_slice %23 {offsets = [0, 0, 8], sizes = [2, 16, 8], strides = [1, 1, 1]} : vector<2x16x96xf32> to vector<2x16x8xf32>
    %42 = vector.extract_strided_slice %23 {offsets = [0, 0, 40], sizes = [2, 16, 8], strides = [1, 1, 1]} : vector<2x16x96xf32> to vector<2x16x8xf32>
    %43 = vector.extract_strided_slice %23 {offsets = [0, 0, 72], sizes = [2, 16, 8], strides = [1, 1, 1]} : vector<2x16x96xf32> to vector<2x16x8xf32>
    "tpu.trace_start"() <{level = 10 : i32, message = "bqd,bkd->bqk"}> : () -> ()
    %cst_22 = arith.constant dense<0.000000e+00> : vector<2x16x16xf32>
    %44 = tpu.matmul %41, %42, %cst_22 {dimension_numbers = #tpu.dot_dimension_numbers<[2], [2], [1], [1], [0, 0, 0, 1, 1, 1], [0], [0]>} : vector<2x16x8xf32>, vector<2x16x8xf32>, vector<2x16x16xf32> -> vector<2x16x16xf32>
    "tpu.trace_stop"() : () -> ()
    %cst_23 = arith.constant 0.353553385 : f32
    %45 = vector.broadcast %cst_23 : f32 to vector<2x16x16xf32>
    %46 = arith.mulf %44, %45 : vector<2x16x16xf32>
    %47 = arith.addf %46, %4 : vector<2x16x16xf32>
    %cst_24 = arith.constant dense<0xFF800000> : vector<2x16xf32>
    %48 = vector.multi_reduction <maximumf>, %47, %cst_24 [2] : vector<2x16x16xf32> to vector<2x16xf32>
    %49 = vector.shape_cast %48 : vector<2x16xf32> to vector<2x16x1xf32>
    %50 = vector.broadcast %49 : vector<2x16x1xf32> to vector<2x16x16xf32>
    %51 = arith.subf %47, %50 : vector<2x16x16xf32>
    %52 = math.exp %51 : vector<2x16x16xf32>
    %cst_25 = arith.constant dense<0.000000e+00> : vector<2x16xf32>
    %53 = vector.multi_reduction <add>, %52, %cst_25 [2] : vector<2x16x16xf32> to vector<2x16xf32>
    %54 = vector.shape_cast %53 : vector<2x16xf32> to vector<2x16x1xf32>
    %55 = vector.broadcast %54 : vector<2x16x1xf32> to vector<2x16x16xf32>
    %56 = arith.divf %52, %55 : vector<2x16x16xf32>
    "tpu.trace_start"() <{level = 10 : i32, message = "bqk,bkd->bqd"}> : () -> ()
    %cst_26 = arith.constant dense<0.000000e+00> : vector<2x16x8xf32>
    %57 = tpu.matmul %56, %43, %cst_26 {dimension_numbers = #tpu.dot_dimension_numbers<[2], [1], [1], [2], [0, 0, 0, 1, 1, 2], [0], [0]>} : vector<2x16x16xf32>, vector<2x16x8xf32>, vector<2x16x8xf32> -> vector<2x16x8xf32>
    "tpu.trace_stop"() : () -> ()
    %58 = vector.extract_strided_slice %23 {offsets = [0, 0, 16], sizes = [2, 16, 8], strides = [1, 1, 1]} : vector<2x16x96xf32> to vector<2x16x8xf32>
    %59 = vector.extract_strided_slice %23 {offsets = [0, 0, 48], sizes = [2, 16, 8], strides = [1, 1, 1]} : vector<2x16x96xf32> to vector<2x16x8xf32>
    %60 = vector.extract_strided_slice %23 {offsets = [0, 0, 80], sizes = [2, 16, 8], strides = [1, 1, 1]} : vector<2x16x96xf32> to vector<2x16x8xf32>
    "tpu.trace_start"() <{level = 10 : i32, message = "bqd,bkd->bqk"}> : () -> ()
    %cst_27 = arith.constant dense<0.000000e+00> : vector<2x16x16xf32>
    %61 = tpu.matmul %58, %59, %cst_27 {dimension_numbers = #tpu.dot_dimension_numbers<[2], [2], [1], [1], [0, 0, 0, 1, 1, 1], [0], [0]>} : vector<2x16x8xf32>, vector<2x16x8xf32>, vector<2x16x16xf32> -> vector<2x16x16xf32>
    "tpu.trace_stop"() : () -> ()
    %cst_28 = arith.constant 0.353553385 : f32
    %62 = vector.broadcast %cst_28 : f32 to vector<2x16x16xf32>
    %63 = arith.mulf %61, %62 : vector<2x16x16xf32>
    %64 = arith.addf %63, %4 : vector<2x16x16xf32>
    %cst_29 = arith.constant dense<0xFF800000> : vector<2x16xf32>
    %65 = vector.multi_reduction <maximumf>, %64, %cst_29 [2] : vector<2x16x16xf32> to vector<2x16xf32>
    %66 = vector.shape_cast %65 : vector<2x16xf32> to vector<2x16x1xf32>
    %67 = vector.broadcast %66 : vector<2x16x1xf32> to vector<2x16x16xf32>
    %68 = arith.subf %64, %67 : vector<2x16x16xf32>
    %69 = math.exp %68 : vector<2x16x16xf32>
    %cst_30 = arith.constant dense<0.000000e+00> : vector<2x16xf32>
    %70 = vector.multi_reduction <add>, %69, %cst_30 [2] : vector<2x16x16xf32> to vector<2x16xf32>
    %71 = vector.shape_cast %70 : vector<2x16xf32> to vector<2x16x1xf32>
    %72 = vector.broadcast %71 : vector<2x16x1xf32> to vector<2x16x16xf32>
    %73 = arith.divf %69, %72 : vector<2x16x16xf32>
    "tpu.trace_start"() <{level = 10 : i32, message = "bqk,bkd->bqd"}> : () -> ()
    %cst_31 = arith.constant dense<0.000000e+00> : vector<2x16x8xf32>
    %74 = tpu.matmul %73, %60, %cst_31 {dimension_numbers = #tpu.dot_dimension_numbers<[2], [1], [1], [2], [0, 0, 0, 1, 1, 2], [0], [0]>} : vector<2x16x16xf32>, vector<2x16x8xf32>, vector<2x16x8xf32> -> vector<2x16x8xf32>
    "tpu.trace_stop"() : () -> ()
    %75 = vector.extract_strided_slice %23 {offsets = [0, 0, 24], sizes = [2, 16, 8], strides = [1, 1, 1]} : vector<2x16x96xf32> to vector<2x16x8xf32>
    %76 = vector.extract_strided_slice %23 {offsets = [0, 0, 56], sizes = [2, 16, 8], strides = [1, 1, 1]} : vector<2x16x96xf32> to vector<2x16x8xf32>
    %77 = vector.extract_strided_slice %23 {offsets = [0, 0, 88], sizes = [2, 16, 8], strides = [1, 1, 1]} : vector<2x16x96xf32> to vector<2x16x8xf32>
    "tpu.trace_start"() <{level = 10 : i32, message = "bqd,bkd->bqk"}> : () -> ()
    %cst_32 = arith.constant dense<0.000000e+00> : vector<2x16x16xf32>
    %78 = tpu.matmul %75, %76, %cst_32 {dimension_numbers = #tpu.dot_dimension_numbers<[2], [2], [1], [1], [0, 0, 0, 1, 1, 1], [0], [0]>} : vector<2x16x8xf32>, vector<2x16x8xf32>, vector<2x16x16xf32> -> vector<2x16x16xf32>
    "tpu.trace_stop"() : () -> ()
    %cst_33 = arith.constant 0.353553385 : f32
    %79 = vector.broadcast %cst_33 : f32 to vector<2x16x16xf32>
    %80 = arith.mulf %78, %79 : vector<2x16x16xf32>
    %81 = arith.addf %80, %4 : vector<2x16x16xf32>
    %cst_34 = arith.constant dense<0xFF800000> : vector<2x16xf32>
    %82 = vector.multi_reduction <maximumf>, %81, %cst_34 [2] : vector<2x16x16xf32> to vector<2x16xf32>
    %83 = vector.shape_cast %82 : vector<2x16xf32> to vector<2x16x1xf32>
    %84 = vector.broadcast %83 : vector<2x16x1xf32> to vector<2x16x16xf32>
    %85 = arith.subf %81, %84 : vector<2x16x16xf32>
    %86 = math.exp %85 : vector<2x16x16xf32>
    %cst_35 = arith.constant dense<0.000000e+00> : vector<2x16xf32>
    %87 = vector.multi_reduction <add>, %86, %cst_35 [2] : vector<2x16x16xf32> to vector<2x16xf32>
    %88 = vector.shape_cast %87 : vector<2x16xf32> to vector<2x16x1xf32>
    %89 = vector.broadcast %88 : vector<2x16x1xf32> to vector<2x16x16xf32>
    %90 = arith.divf %86, %89 : vector<2x16x16xf32>
    "tpu.trace_start"() <{level = 10 : i32, message = "bqk,bkd->bqd"}> : () -> ()
    %cst_36 = arith.constant dense<0.000000e+00> : vector<2x16x8xf32>
    %91 = tpu.matmul %90, %77, %cst_36 {dimension_numbers = #tpu.dot_dimension_numbers<[2], [1], [1], [2], [0, 0, 0, 1, 1, 2], [0], [0]>} : vector<2x16x16xf32>, vector<2x16x8xf32>, vector<2x16x8xf32> -> vector<2x16x8xf32>
    "tpu.trace_stop"() : () -> ()
    %92 = tpu.concatenate %40, %57, %74, %91 in 2 : vector<2x16x8xf32>, vector<2x16x8xf32>, vector<2x16x8xf32>, vector<2x16x8xf32> -> vector<2x16x32xf32>
    %93 = vector.shape_cast %92 : vector<2x16x32xf32> to vector<32x32xf32>
    %c0_37 = arith.constant 0 : index
    %c0_38 = arith.constant 0 : index
    %c0_39 = arith.constant 0 : index
    %94 = vector.load %arg7[%c0_37, %c0_38, %c0_39] : memref<2x32x32xf32, #tpu.memory_space<vmem>>, vector<1x32x32xf32>
    %95 = vector.shape_cast %94 : vector<1x32x32xf32> to vector<32x32xf32>
    %cst_40 = arith.constant dense<0.000000e+00> : vector<32x32xf32>
    %96 = tpu.matmul %93, %95, %cst_40 {dimension_numbers = #tpu.dot_dimension_numbers<[1], [0], [0], [1], [0, 0, 1, 1], [], []>} : vector<32x32xf32>, vector<32x32xf32>, vector<32x32xf32> -> vector<32x32xf32>
    %97 = vector.broadcast %10 : vector<1x32xf32> to vector<32x32xf32>
    %98 = arith.addf %96, %97 : vector<32x32xf32>
    %99 = arith.addf %98, %7 : vector<32x32xf32>
    %cst_41 = arith.constant dense<0.000000e+00> : vector<32xf32>
    %100 = vector.multi_reduction <add>, %99, %cst_41 [1] : vector<32x32xf32> to vector<32xf32>
    %101 = vector.shape_cast %100 : vector<32xf32> to vector<32x1xf32>
    %cst_42 = arith.constant 3.200000e+01 : f32
    %102 = vector.broadcast %cst_42 : f32 to vector<32x1xf32>
    %103 = arith.divf %101, %102 : vector<32x1xf32>
    %104 = vector.broadcast %103 : vector<32x1xf32> to vector<32x32xf32>
    %105 = arith.subf %99, %104 : vector<32x32xf32>
    %106 = arith.mulf %105, %105 : vector<32x32xf32>
    %cst_43 = arith.constant dense<0.000000e+00> : vector<32xf32>
    %107 = vector.multi_reduction <add>, %106, %cst_43 [1] : vector<32x32xf32> to vector<32xf32>
    %108 = vector.shape_cast %107 : vector<32xf32> to vector<32x1xf32>
    %cst_44 = arith.constant 3.200000e+01 : f32
    %109 = vector.broadcast %cst_44 : f32 to vector<32x1xf32>
    %110 = arith.divf %108, %109 : vector<32x1xf32>
    %cst_45 = arith.constant 9.99999974E-6 : f32
    %111 = vector.broadcast %cst_45 : f32 to vector<32x1xf32>
    %112 = arith.addf %110, %111 : vector<32x1xf32>
    %113 = math.rsqrt %112 : vector<32x1xf32>
    %114 = vector.broadcast %113 : vector<32x1xf32> to vector<32x32xf32>
    %115 = arith.mulf %105, %114 : vector<32x32xf32>
    %116 = vector.broadcast %11 : vector<1x32xf32> to vector<32x32xf32>
    %117 = arith.mulf %115, %116 : vector<32x32xf32>
    %118 = vector.broadcast %12 : vector<1x32xf32> to vector<32x32xf32>
    %119 = arith.addf %117, %118 : vector<32x32xf32>
    %120 = vector.broadcast %0 : vector<32x1xf32> to vector<32x32xf32>
    %121 = arith.mulf %119, %120 : vector<32x32xf32>
    %c0_46 = arith.constant 0 : index
    %c0_47 = arith.constant 0 : index
    %c0_48 = arith.constant 0 : index
    %122 = vector.load %arg9[%c0_46, %c0_47, %c0_48] : memref<2x32x64xf32, #tpu.memory_space<vmem>>, vector<1x32x64xf32>
    %123 = vector.shape_cast %122 : vector<1x32x64xf32> to vector<32x64xf32>
    %cst_49 = arith.constant dense<0.000000e+00> : vector<32x64xf32>
    %124 = tpu.matmul %121, %123, %cst_49 {dimension_numbers = #tpu.dot_dimension_numbers<[1], [0], [0], [1], [0, 0, 1, 1], [], []>} : vector<32x32xf32>, vector<32x64xf32>, vector<32x64xf32> -> vector<32x64xf32>
    %c0_50 = arith.constant 0 : index
    %c0_51 = arith.constant 0 : index
    %c0_52 = arith.constant 0 : index
    %125 = vector.load %arg10[%c0_50, %c0_51, %c0_52] : memref<2x1x64xf32, #tpu.memory_space<vmem>>, vector<1x1x64xf32>
    %126 = vector.shape_cast %125 : vector<1x1x64xf32> to vector<1x64xf32>
    %127 = vector.broadcast %126 : vector<1x64xf32> to vector<32x64xf32>
    %128 = arith.addf %124, %127 : vector<32x64xf32>
    %cst_53 = arith.constant 0.000000e+00 : f32
    %129 = vector.broadcast %cst_53 : f32 to vector<32x64xf32>
    %130 = arith.maximumf %128, %129 : vector<32x64xf32>
    %c0_54 = arith.constant 0 : index
    %c0_55 = arith.constant 0 : index
    %c0_56 = arith.constant 0 : index
    %131 = vector.load %arg11[%c0_54, %c0_55, %c0_56] : memref<2x64x32xf32, #tpu.memory_space<vmem>>, vector<1x64x32xf32>
    %132 = vector.shape_cast %131 : vector<1x64x32xf32> to vector<64x32xf32>
    %cst_57 = arith.constant dense<0.000000e+00> : vector<32x32xf32>
    %133 = tpu.matmul %130, %132, %cst_57 {dimension_numbers = #tpu.dot_dimension_numbers<[1], [0], [0], [1], [0, 0, 1, 1], [], []>} : vector<32x64xf32>, vector<64x32xf32>, vector<32x32xf32> -> vector<32x32xf32>
    %134 = vector.broadcast %13 : vector<1x32xf32> to vector<32x32xf32>
    %135 = arith.addf %133, %134 : vector<32x32xf32>
    %136 = arith.addf %135, %121 : vector<32x32xf32>
    %cst_58 = arith.constant dense<0.000000e+00> : vector<32xf32>
    %137 = vector.multi_reduction <add>, %136, %cst_58 [1] : vector<32x32xf32> to vector<32xf32>
    %138 = vector.shape_cast %137 : vector<32xf32> to vector<32x1xf32>
    %cst_59 = arith.constant 3.200000e+01 : f32
    %139 = vector.broadcast %cst_59 : f32 to vector<32x1xf32>
    %140 = arith.divf %138, %139 : vector<32x1xf32>
    %141 = vector.broadcast %140 : vector<32x1xf32> to vector<32x32xf32>
    %142 = arith.subf %136, %141 : vector<32x32xf32>
    %143 = arith.mulf %142, %142 : vector<32x32xf32>
    %cst_60 = arith.constant dense<0.000000e+00> : vector<32xf32>
    %144 = vector.multi_reduction <add>, %143, %cst_60 [1] : vector<32x32xf32> to vector<32xf32>
    %145 = vector.shape_cast %144 : vector<32xf32> to vector<32x1xf32>
    %cst_61 = arith.constant 3.200000e+01 : f32
    %146 = vector.broadcast %cst_61 : f32 to vector<32x1xf32>
    %147 = arith.divf %145, %146 : vector<32x1xf32>
    %cst_62 = arith.constant 9.99999974E-6 : f32
    %148 = vector.broadcast %cst_62 : f32 to vector<32x1xf32>
    %149 = arith.addf %147, %148 : vector<32x1xf32>
    %150 = math.rsqrt %149 : vector<32x1xf32>
    %151 = vector.broadcast %150 : vector<32x1xf32> to vector<32x32xf32>
    %152 = arith.mulf %142, %151 : vector<32x32xf32>
    %153 = vector.broadcast %14 : vector<1x32xf32> to vector<32x32xf32>
    %154 = arith.mulf %152, %153 : vector<32x32xf32>
    %155 = vector.broadcast %15 : vector<1x32xf32> to vector<32x32xf32>
    %156 = arith.addf %154, %155 : vector<32x32xf32>
    %157 = vector.broadcast %0 : vector<32x1xf32> to vector<32x32xf32>
    %158 = arith.mulf %156, %157 : vector<32x32xf32>
    %c1 = arith.constant 1 : index
    %c0_63 = arith.constant 0 : index
    %c0_64 = arith.constant 0 : index
    %159 = vector.load %arg8[%c1, %c0_63, %c0_64] : memref<2x6x32xf32, #tpu.memory_space<vmem>>, vector<1x6x32xf32>
    %160 = vector.shape_cast %159 : vector<1x6x32xf32> to vector<6x32xf32>
    %161 = vector.extract_strided_slice %160 {offsets = [0, 0], sizes = [1, 32], strides = [1, 1]} : vector<6x32xf32> to vector<1x32xf32>
    %162 = vector.extract_strided_slice %160 {offsets = [1, 0], sizes = [1, 32], strides = [1, 1]} : vector<6x32xf32> to vector<1x32xf32>
    %163 = vector.extract_strided_slice %160 {offsets = [2, 0], sizes = [1, 32], strides = [1, 1]} : vector<6x32xf32> to vector<1x32xf32>
    %164 = vector.extract_strided_slice %160 {offsets = [3, 0], sizes = [1, 32], strides = [1, 1]} : vector<6x32xf32> to vector<1x32xf32>
    %165 = vector.extract_strided_slice %160 {offsets = [4, 0], sizes = [1, 32], strides = [1, 1]} : vector<6x32xf32> to vector<1x32xf32>
    %166 = vector.extract_strided_slice %160 {offsets = [5, 0], sizes = [1, 32], strides = [1, 1]} : vector<6x32xf32> to vector<1x32xf32>
    %c1_65 = arith.constant 1 : index
    %c0_66 = arith.constant 0 : index
    %c0_67 = arith.constant 0 : index
    %167 = vector.load %arg5[%c1_65, %c0_66, %c0_67] : memref<2x32x96xf32, #tpu.memory_space<vmem>>, vector<1x32x96xf32>
    %168 = vector.shape_cast %167 : vector<1x32x96xf32> to vector<32x96xf32>
    %cst_68 = arith.constant dense<0.000000e+00> : vector<32x96xf32>
    %169 = tpu.matmul %158, %168, %cst_68 {dimension_numbers = #tpu.dot_dimension_numbers<[1], [0], [0], [1], [0, 0, 1, 1], [], []>} : vector<32x32xf32>, vector<32x96xf32>, vector<32x96xf32> -> vector<32x96xf32>
    %c1_69 = arith.constant 1 : index
    %c0_70 = arith.constant 0 : index
    %c0_71 = arith.constant 0 : index
    %170 = vector.load %arg6[%c1_69, %c0_70, %c0_71] : memref<2x1x96xf32, #tpu.memory_space<vmem>>, vector<1x1x96xf32>
    %171 = vector.shape_cast %170 : vector<1x1x96xf32> to vector<1x96xf32>
    %172 = vector.broadcast %171 : vector<1x96xf32> to vector<32x96xf32>
    %173 = arith.addf %169, %172 : vector<32x96xf32>
    %174 = vector.shape_cast %173 : vector<32x96xf32> to vector<2x16x96xf32>
    %175 = vector.extract_strided_slice %174 {offsets = [0, 0, 0], sizes = [2, 16, 8], strides = [1, 1, 1]} : vector<2x16x96xf32> to vector<2x16x8xf32>
    %176 = vector.extract_strided_slice %174 {offsets = [0, 0, 32], sizes = [2, 16, 8], strides = [1, 1, 1]} : vector<2x16x96xf32> to vector<2x16x8xf32>
    %177 = vector.extract_strided_slice %174 {offsets = [0, 0, 64], sizes = [2, 16, 8], strides = [1, 1, 1]} : vector<2x16x96xf32> to vector<2x16x8xf32>
    "tpu.trace_start"() <{level = 10 : i32, message = "bqd,bkd->bqk"}> : () -> ()
    %cst_72 = arith.constant dense<0.000000e+00> : vector<2x16x16xf32>
    %178 = tpu.matmul %175, %176, %cst_72 {dimension_numbers = #tpu.dot_dimension_numbers<[2], [2], [1], [1], [0, 0, 0, 1, 1, 1], [0], [0]>} : vector<2x16x8xf32>, vector<2x16x8xf32>, vector<2x16x16xf32> -> vector<2x16x16xf32>
    "tpu.trace_stop"() : () -> ()
    %cst_73 = arith.constant 0.353553385 : f32
    %179 = vector.broadcast %cst_73 : f32 to vector<2x16x16xf32>
    %180 = arith.mulf %178, %179 : vector<2x16x16xf32>
    %181 = arith.addf %180, %4 : vector<2x16x16xf32>
    %cst_74 = arith.constant dense<0xFF800000> : vector<2x16xf32>
    %182 = vector.multi_reduction <maximumf>, %181, %cst_74 [2] : vector<2x16x16xf32> to vector<2x16xf32>
    %183 = vector.shape_cast %182 : vector<2x16xf32> to vector<2x16x1xf32>
    %184 = vector.broadcast %183 : vector<2x16x1xf32> to vector<2x16x16xf32>
    %185 = arith.subf %181, %184 : vector<2x16x16xf32>
    %186 = math.exp %185 : vector<2x16x16xf32>
    %cst_75 = arith.constant dense<0.000000e+00> : vector<2x16xf32>
    %187 = vector.multi_reduction <add>, %186, %cst_75 [2] : vector<2x16x16xf32> to vector<2x16xf32>
    %188 = vector.shape_cast %187 : vector<2x16xf32> to vector<2x16x1xf32>
    %189 = vector.broadcast %188 : vector<2x16x1xf32> to vector<2x16x16xf32>
    %190 = arith.divf %186, %189 : vector<2x16x16xf32>
    "tpu.trace_start"() <{level = 10 : i32, message = "bqk,bkd->bqd"}> : () -> ()
    %cst_76 = arith.constant dense<0.000000e+00> : vector<2x16x8xf32>
    %191 = tpu.matmul %190, %177, %cst_76 {dimension_numbers = #tpu.dot_dimension_numbers<[2], [1], [1], [2], [0, 0, 0, 1, 1, 2], [0], [0]>} : vector<2x16x16xf32>, vector<2x16x8xf32>, vector<2x16x8xf32> -> vector<2x16x8xf32>
    "tpu.trace_stop"() : () -> ()
    %192 = vector.extract_strided_slice %174 {offsets = [0, 0, 8], sizes = [2, 16, 8], strides = [1, 1, 1]} : vector<2x16x96xf32> to vector<2x16x8xf32>
    %193 = vector.extract_strided_slice %174 {offsets = [0, 0, 40], sizes = [2, 16, 8], strides = [1, 1, 1]} : vector<2x16x96xf32> to vector<2x16x8xf32>
    %194 = vector.extract_strided_slice %174 {offsets = [0, 0, 72], sizes = [2, 16, 8], strides = [1, 1, 1]} : vector<2x16x96xf32> to vector<2x16x8xf32>
    "tpu.trace_start"() <{level = 10 : i32, message = "bqd,bkd->bqk"}> : () -> ()
    %cst_77 = arith.constant dense<0.000000e+00> : vector<2x16x16xf32>
    %195 = tpu.matmul %192, %193, %cst_77 {dimension_numbers = #tpu.dot_dimension_numbers<[2], [2], [1], [1], [0, 0, 0, 1, 1, 1], [0], [0]>} : vector<2x16x8xf32>, vector<2x16x8xf32>, vector<2x16x16xf32> -> vector<2x16x16xf32>
    "tpu.trace_stop"() : () -> ()
    %cst_78 = arith.constant 0.353553385 : f32
    %196 = vector.broadcast %cst_78 : f32 to vector<2x16x16xf32>
    %197 = arith.mulf %195, %196 : vector<2x16x16xf32>
    %198 = arith.addf %197, %4 : vector<2x16x16xf32>
    %cst_79 = arith.constant dense<0xFF800000> : vector<2x16xf32>
    %199 = vector.multi_reduction <maximumf>, %198, %cst_79 [2] : vector<2x16x16xf32> to vector<2x16xf32>
    %200 = vector.shape_cast %199 : vector<2x16xf32> to vector<2x16x1xf32>
    %201 = vector.broadcast %200 : vector<2x16x1xf32> to vector<2x16x16xf32>
    %202 = arith.subf %198, %201 : vector<2x16x16xf32>
    %203 = math.exp %202 : vector<2x16x16xf32>
    %cst_80 = arith.constant dense<0.000000e+00> : vector<2x16xf32>
    %204 = vector.multi_reduction <add>, %203, %cst_80 [2] : vector<2x16x16xf32> to vector<2x16xf32>
    %205 = vector.shape_cast %204 : vector<2x16xf32> to vector<2x16x1xf32>
    %206 = vector.broadcast %205 : vector<2x16x1xf32> to vector<2x16x16xf32>
    %207 = arith.divf %203, %206 : vector<2x16x16xf32>
    "tpu.trace_start"() <{level = 10 : i32, message = "bqk,bkd->bqd"}> : () -> ()
    %cst_81 = arith.constant dense<0.000000e+00> : vector<2x16x8xf32>
    %208 = tpu.matmul %207, %194, %cst_81 {dimension_numbers = #tpu.dot_dimension_numbers<[2], [1], [1], [2], [0, 0, 0, 1, 1, 2], [0], [0]>} : vector<2x16x16xf32>, vector<2x16x8xf32>, vector<2x16x8xf32> -> vector<2x16x8xf32>
    "tpu.trace_stop"() : () -> ()
    %209 = vector.extract_strided_slice %174 {offsets = [0, 0, 16], sizes = [2, 16, 8], strides = [1, 1, 1]} : vector<2x16x96xf32> to vector<2x16x8xf32>
    %210 = vector.extract_strided_slice %174 {offsets = [0, 0, 48], sizes = [2, 16, 8], strides = [1, 1, 1]} : vector<2x16x96xf32> to vector<2x16x8xf32>
    %211 = vector.extract_strided_slice %174 {offsets = [0, 0, 80], sizes = [2, 16, 8], strides = [1, 1, 1]} : vector<2x16x96xf32> to vector<2x16x8xf32>
    "tpu.trace_start"() <{level = 10 : i32, message = "bqd,bkd->bqk"}> : () -> ()
    %cst_82 = arith.constant dense<0.000000e+00> : vector<2x16x16xf32>
    %212 = tpu.matmul %209, %210, %cst_82 {dimension_numbers = #tpu.dot_dimension_numbers<[2], [2], [1], [1], [0, 0, 0, 1, 1, 1], [0], [0]>} : vector<2x16x8xf32>, vector<2x16x8xf32>, vector<2x16x16xf32> -> vector<2x16x16xf32>
    "tpu.trace_stop"() : () -> ()
    %cst_83 = arith.constant 0.353553385 : f32
    %213 = vector.broadcast %cst_83 : f32 to vector<2x16x16xf32>
    %214 = arith.mulf %212, %213 : vector<2x16x16xf32>
    %215 = arith.addf %214, %4 : vector<2x16x16xf32>
    %cst_84 = arith.constant dense<0xFF800000> : vector<2x16xf32>
    %216 = vector.multi_reduction <maximumf>, %215, %cst_84 [2] : vector<2x16x16xf32> to vector<2x16xf32>
    %217 = vector.shape_cast %216 : vector<2x16xf32> to vector<2x16x1xf32>
    %218 = vector.broadcast %217 : vector<2x16x1xf32> to vector<2x16x16xf32>
    %219 = arith.subf %215, %218 : vector<2x16x16xf32>
    %220 = math.exp %219 : vector<2x16x16xf32>
    %cst_85 = arith.constant dense<0.000000e+00> : vector<2x16xf32>
    %221 = vector.multi_reduction <add>, %220, %cst_85 [2] : vector<2x16x16xf32> to vector<2x16xf32>
    %222 = vector.shape_cast %221 : vector<2x16xf32> to vector<2x16x1xf32>
    %223 = vector.broadcast %222 : vector<2x16x1xf32> to vector<2x16x16xf32>
    %224 = arith.divf %220, %223 : vector<2x16x16xf32>
    "tpu.trace_start"() <{level = 10 : i32, message = "bqk,bkd->bqd"}> : () -> ()
    %cst_86 = arith.constant dense<0.000000e+00> : vector<2x16x8xf32>
    %225 = tpu.matmul %224, %211, %cst_86 {dimension_numbers = #tpu.dot_dimension_numbers<[2], [1], [1], [2], [0, 0, 0, 1, 1, 2], [0], [0]>} : vector<2x16x16xf32>, vector<2x16x8xf32>, vector<2x16x8xf32> -> vector<2x16x8xf32>
    "tpu.trace_stop"() : () -> ()
    %226 = vector.extract_strided_slice %174 {offsets = [0, 0, 24], sizes = [2, 16, 8], strides = [1, 1, 1]} : vector<2x16x96xf32> to vector<2x16x8xf32>
    %227 = vector.extract_strided_slice %174 {offsets = [0, 0, 56], sizes = [2, 16, 8], strides = [1, 1, 1]} : vector<2x16x96xf32> to vector<2x16x8xf32>
    %228 = vector.extract_strided_slice %174 {offsets = [0, 0, 88], sizes = [2, 16, 8], strides = [1, 1, 1]} : vector<2x16x96xf32> to vector<2x16x8xf32>
    "tpu.trace_start"() <{level = 10 : i32, message = "bqd,bkd->bqk"}> : () -> ()
    %cst_87 = arith.constant dense<0.000000e+00> : vector<2x16x16xf32>
    %229 = tpu.matmul %226, %227, %cst_87 {dimension_numbers = #tpu.dot_dimension_numbers<[2], [2], [1], [1], [0, 0, 0, 1, 1, 1], [0], [0]>} : vector<2x16x8xf32>, vector<2x16x8xf32>, vector<2x16x16xf32> -> vector<2x16x16xf32>
    "tpu.trace_stop"() : () -> ()
    %cst_88 = arith.constant 0.353553385 : f32
    %230 = vector.broadcast %cst_88 : f32 to vector<2x16x16xf32>
    %231 = arith.mulf %229, %230 : vector<2x16x16xf32>
    %232 = arith.addf %231, %4 : vector<2x16x16xf32>
    %cst_89 = arith.constant dense<0xFF800000> : vector<2x16xf32>
    %233 = vector.multi_reduction <maximumf>, %232, %cst_89 [2] : vector<2x16x16xf32> to vector<2x16xf32>
    %234 = vector.shape_cast %233 : vector<2x16xf32> to vector<2x16x1xf32>
    %235 = vector.broadcast %234 : vector<2x16x1xf32> to vector<2x16x16xf32>
    %236 = arith.subf %232, %235 : vector<2x16x16xf32>
    %237 = math.exp %236 : vector<2x16x16xf32>
    %cst_90 = arith.constant dense<0.000000e+00> : vector<2x16xf32>
    %238 = vector.multi_reduction <add>, %237, %cst_90 [2] : vector<2x16x16xf32> to vector<2x16xf32>
    %239 = vector.shape_cast %238 : vector<2x16xf32> to vector<2x16x1xf32>
    %240 = vector.broadcast %239 : vector<2x16x1xf32> to vector<2x16x16xf32>
    %241 = arith.divf %237, %240 : vector<2x16x16xf32>
    "tpu.trace_start"() <{level = 10 : i32, message = "bqk,bkd->bqd"}> : () -> ()
    %cst_91 = arith.constant dense<0.000000e+00> : vector<2x16x8xf32>
    %242 = tpu.matmul %241, %228, %cst_91 {dimension_numbers = #tpu.dot_dimension_numbers<[2], [1], [1], [2], [0, 0, 0, 1, 1, 2], [0], [0]>} : vector<2x16x16xf32>, vector<2x16x8xf32>, vector<2x16x8xf32> -> vector<2x16x8xf32>
    "tpu.trace_stop"() : () -> ()
    %243 = tpu.concatenate %191, %208, %225, %242 in 2 : vector<2x16x8xf32>, vector<2x16x8xf32>, vector<2x16x8xf32>, vector<2x16x8xf32> -> vector<2x16x32xf32>
    %244 = vector.shape_cast %243 : vector<2x16x32xf32> to vector<32x32xf32>
    %c1_92 = arith.constant 1 : index
    %c0_93 = arith.constant 0 : index
    %c0_94 = arith.constant 0 : index
    %245 = vector.load %arg7[%c1_92, %c0_93, %c0_94] : memref<2x32x32xf32, #tpu.memory_space<vmem>>, vector<1x32x32xf32>
    %246 = vector.shape_cast %245 : vector<1x32x32xf32> to vector<32x32xf32>
    %cst_95 = arith.constant dense<0.000000e+00> : vector<32x32xf32>
    %247 = tpu.matmul %244, %246, %cst_95 {dimension_numbers = #tpu.dot_dimension_numbers<[1], [0], [0], [1], [0, 0, 1, 1], [], []>} : vector<32x32xf32>, vector<32x32xf32>, vector<32x32xf32> -> vector<32x32xf32>
    %248 = vector.broadcast %161 : vector<1x32xf32> to vector<32x32xf32>
    %249 = arith.addf %247, %248 : vector<32x32xf32>
    %250 = arith.addf %249, %158 : vector<32x32xf32>
    %cst_96 = arith.constant dense<0.000000e+00> : vector<32xf32>
    %251 = vector.multi_reduction <add>, %250, %cst_96 [1] : vector<32x32xf32> to vector<32xf32>
    %252 = vector.shape_cast %251 : vector<32xf32> to vector<32x1xf32>
    %cst_97 = arith.constant 3.200000e+01 : f32
    %253 = vector.broadcast %cst_97 : f32 to vector<32x1xf32>
    %254 = arith.divf %252, %253 : vector<32x1xf32>
    %255 = vector.broadcast %254 : vector<32x1xf32> to vector<32x32xf32>
    %256 = arith.subf %250, %255 : vector<32x32xf32>
    %257 = arith.mulf %256, %256 : vector<32x32xf32>
    %cst_98 = arith.constant dense<0.000000e+00> : vector<32xf32>
    %258 = vector.multi_reduction <add>, %257, %cst_98 [1] : vector<32x32xf32> to vector<32xf32>
    %259 = vector.shape_cast %258 : vector<32xf32> to vector<32x1xf32>
    %cst_99 = arith.constant 3.200000e+01 : f32
    %260 = vector.broadcast %cst_99 : f32 to vector<32x1xf32>
    %261 = arith.divf %259, %260 : vector<32x1xf32>
    %cst_100 = arith.constant 9.99999974E-6 : f32
    %262 = vector.broadcast %cst_100 : f32 to vector<32x1xf32>
    %263 = arith.addf %261, %262 : vector<32x1xf32>
    %264 = math.rsqrt %263 : vector<32x1xf32>
    %265 = vector.broadcast %264 : vector<32x1xf32> to vector<32x32xf32>
    %266 = arith.mulf %256, %265 : vector<32x32xf32>
    %267 = vector.broadcast %162 : vector<1x32xf32> to vector<32x32xf32>
    %268 = arith.mulf %266, %267 : vector<32x32xf32>
    %269 = vector.broadcast %163 : vector<1x32xf32> to vector<32x32xf32>
    %270 = arith.addf %268, %269 : vector<32x32xf32>
    %271 = vector.broadcast %0 : vector<32x1xf32> to vector<32x32xf32>
    %272 = arith.mulf %270, %271 : vector<32x32xf32>
    %c1_101 = arith.constant 1 : index
    %c0_102 = arith.constant 0 : index
    %c0_103 = arith.constant 0 : index
    %273 = vector.load %arg9[%c1_101, %c0_102, %c0_103] : memref<2x32x64xf32, #tpu.memory_space<vmem>>, vector<1x32x64xf32>
    %274 = vector.shape_cast %273 : vector<1x32x64xf32> to vector<32x64xf32>
    %cst_104 = arith.constant dense<0.000000e+00> : vector<32x64xf32>
    %275 = tpu.matmul %272, %274, %cst_104 {dimension_numbers = #tpu.dot_dimension_numbers<[1], [0], [0], [1], [0, 0, 1, 1], [], []>} : vector<32x32xf32>, vector<32x64xf32>, vector<32x64xf32> -> vector<32x64xf32>
    %c1_105 = arith.constant 1 : index
    %c0_106 = arith.constant 0 : index
    %c0_107 = arith.constant 0 : index
    %276 = vector.load %arg10[%c1_105, %c0_106, %c0_107] : memref<2x1x64xf32, #tpu.memory_space<vmem>>, vector<1x1x64xf32>
    %277 = vector.shape_cast %276 : vector<1x1x64xf32> to vector<1x64xf32>
    %278 = vector.broadcast %277 : vector<1x64xf32> to vector<32x64xf32>
    %279 = arith.addf %275, %278 : vector<32x64xf32>
    %cst_108 = arith.constant 0.000000e+00 : f32
    %280 = vector.broadcast %cst_108 : f32 to vector<32x64xf32>
    %281 = arith.maximumf %279, %280 : vector<32x64xf32>
    %c1_109 = arith.constant 1 : index
    %c0_110 = arith.constant 0 : index
    %c0_111 = arith.constant 0 : index
    %282 = vector.load %arg11[%c1_109, %c0_110, %c0_111] : memref<2x64x32xf32, #tpu.memory_space<vmem>>, vector<1x64x32xf32>
    %283 = vector.shape_cast %282 : vector<1x64x32xf32> to vector<64x32xf32>
    %cst_112 = arith.constant dense<0.000000e+00> : vector<32x32xf32>
    %284 = tpu.matmul %281, %283, %cst_112 {dimension_numbers = #tpu.dot_dimension_numbers<[1], [0], [0], [1], [0, 0, 1, 1], [], []>} : vector<32x64xf32>, vector<64x32xf32>, vector<32x32xf32> -> vector<32x32xf32>
    %285 = vector.broadcast %164 : vector<1x32xf32> to vector<32x32xf32>
    %286 = arith.addf %284, %285 : vector<32x32xf32>
    %287 = arith.addf %286, %272 : vector<32x32xf32>
    %cst_113 = arith.constant dense<0.000000e+00> : vector<32xf32>
    %288 = vector.multi_reduction <add>, %287, %cst_113 [1] : vector<32x32xf32> to vector<32xf32>
    %289 = vector.shape_cast %288 : vector<32xf32> to vector<32x1xf32>
    %cst_114 = arith.constant 3.200000e+01 : f32
    %290 = vector.broadcast %cst_114 : f32 to vector<32x1xf32>
    %291 = arith.divf %289, %290 : vector<32x1xf32>
    %292 = vector.broadcast %291 : vector<32x1xf32> to vector<32x32xf32>
    %293 = arith.subf %287, %292 : vector<32x32xf32>
    %294 = arith.mulf %293, %293 : vector<32x32xf32>
    %cst_115 = arith.constant dense<0.000000e+00> : vector<32xf32>
    %295 = vector.multi_reduction <add>, %294, %cst_115 [1] : vector<32x32xf32> to vector<32xf32>
    %296 = vector.shape_cast %295 : vector<32xf32> to vector<32x1xf32>
    %cst_116 = arith.constant 3.200000e+01 : f32
    %297 = vector.broadcast %cst_116 : f32 to vector<32x1xf32>
    %298 = arith.divf %296, %297 : vector<32x1xf32>
    %cst_117 = arith.constant 9.99999974E-6 : f32
    %299 = vector.broadcast %cst_117 : f32 to vector<32x1xf32>
    %300 = arith.addf %298, %299 : vector<32x1xf32>
    %301 = math.rsqrt %300 : vector<32x1xf32>
    %302 = vector.broadcast %301 : vector<32x1xf32> to vector<32x32xf32>
    %303 = arith.mulf %293, %302 : vector<32x32xf32>
    %304 = vector.broadcast %165 : vector<1x32xf32> to vector<32x32xf32>
    %305 = arith.mulf %303, %304 : vector<32x32xf32>
    %306 = vector.broadcast %166 : vector<1x32xf32> to vector<32x32xf32>
    %307 = arith.addf %305, %306 : vector<32x32xf32>
    %308 = vector.broadcast %0 : vector<32x1xf32> to vector<32x32xf32>
    %309 = arith.mulf %307, %308 : vector<32x32xf32>
    %310 = vector.shape_cast %309 : vector<32x32xf32> to vector<2x16x32xf32>
    %c0_118 = arith.constant 0 : index
    %c0_119 = arith.constant 0 : index
    %311 = vector.load %arg12[%c0_118, %c0_119] : memref<1x16xf32, #tpu.memory_space<vmem>>, vector<1x16xf32>
    %312 = vector.shape_cast %311 : vector<1x16xf32> to vector<1x1x16xf32>
    %313 = vector.shape_cast %312 : vector<1x1x16xf32> to vector<1x1x16xf32>
    %314 = vector.broadcast %313 : vector<1x1x16xf32> to vector<2x1x16xf32>
    "tpu.trace_start"() <{level = 10 : i32, message = "bqf,bfd->bqd"}> : () -> ()
    %cst_120 = arith.constant dense<0.000000e+00> : vector<2x1x32xf32>
    %315 = tpu.matmul %314, %310, %cst_120 {dimension_numbers = #tpu.dot_dimension_numbers<[2], [1], [1], [2], [0, 0, 0, 1, 1, 2], [0], [0]>} : vector<2x1x16xf32>, vector<2x16x32xf32>, vector<2x1x32xf32> -> vector<2x1x32xf32>
    "tpu.trace_stop"() : () -> ()
    %316 = vector.shape_cast %315 : vector<2x1x32xf32> to vector<2x32xf32>
    %c0_121 = arith.constant 0 : index
    %c0_122 = arith.constant 0 : index
    %317 = vector.load %arg13[%c0_121, %c0_122] : memref<1x1xf32, #tpu.memory_space<vmem>>, vector<1x1xf32>
    %318 = vector.broadcast %317 : vector<1x1xf32> to vector<2x32xf32>
    %319 = arith.addf %316, %318 : vector<2x32xf32>
    %c0_123 = arith.constant 0 : index
    %c0_124 = arith.constant 0 : index
    %320 = vector.load %arg14[%c0_123, %c0_124] : memref<2x32xf32, #tpu.memory_space<vmem>>, vector<2x32xf32>
    tpu.vector_store %arg14[%c0_123, %c0_124], %319 {strides = array<i32>} : memref<2x32xf32, #tpu.memory_space<vmem>>, vector<2x32xf32>,
    return
  }
  func.func @transform_0(%arg0: i32) -> (i32, i32) {
    %c0_i32 = arith.constant 0 : i32
    %c0_i32_0 = arith.constant 0 : i32
    return %arg0, %c0_i32 : i32, i32
  }
  func.func @transform_1(%arg0: i32) -> (i32, i32) {
    %c0_i32 = arith.constant 0 : i32
    %c0_i32_0 = arith.constant 0 : i32
    return %arg0, %c0_i32 : i32, i32
  }
  func.func @transform_2(%arg0: i32) -> (i32, i32) {
    %c0_i32 = arith.constant 0 : i32
    %c0_i32_0 = arith.constant 0 : i32
    return %arg0, %c0_i32 : i32, i32
  }
  func.func @transform_3(%arg0: i32) -> (i32, i32) {
    %c0_i32 = arith.constant 0 : i32
    %c0_i32_0 = arith.constant 0 : i32
    %c0_i32_1 = arith.constant 0 : i32
    return %c0_i32, %c0_i32_0 : i32, i32
  }
  func.func @transform_4(%arg0: i32) -> (i32, i32, i32) {
    %c0_i32 = arith.constant 0 : i32
    %c0_i32_0 = arith.constant 0 : i32
    %c0_i32_1 = arith.constant 0 : i32
    %c0_i32_2 = arith.constant 0 : i32
    return %c0_i32, %c0_i32_0, %c0_i32_1 : i32, i32, i32
  }
  func.func @transform_5(%arg0: i32) -> (i32, i32, i32) {
    %c0_i32 = arith.constant 0 : i32
    %c0_i32_0 = arith.constant 0 : i32
    %c0_i32_1 = arith.constant 0 : i32
    %c0_i32_2 = arith.constant 0 : i32
    return %c0_i32, %c0_i32_0, %c0_i32_1 : i32, i32, i32
  }
  func.func @transform_6(%arg0: i32) -> (i32, i32, i32) {
    %c0_i32 = arith.constant 0 : i32
    %c0_i32_0 = arith.constant 0 : i32
    %c0_i32_1 = arith.constant 0 : i32
    %c0_i32_2 = arith.constant 0 : i32
    return %c0_i32, %c0_i32_0, %c0_i32_1 : i32, i32, i32
  }
  func.func @transform_7(%arg0: i32) -> (i32, i32, i32) {
    %c0_i32 = arith.constant 0 : i32
    %c0_i32_0 = arith.constant 0 : i32
    %c0_i32_1 = arith.constant 0 : i32
    %c0_i32_2 = arith.constant 0 : i32
    return %c0_i32, %c0_i32_0, %c0_i32_1 : i32, i32, i32
  }
  func.func @transform_8(%arg0: i32) -> (i32, i32, i32) {
    %c0_i32 = arith.constant 0 : i32
    %c0_i32_0 = arith.constant 0 : i32
    %c0_i32_1 = arith.constant 0 : i32
    %c0_i32_2 = arith.constant 0 : i32
    return %c0_i32, %c0_i32_0, %c0_i32_1 : i32, i32, i32
  }
  func.func @transform_9(%arg0: i32) -> (i32, i32, i32) {
    %c0_i32 = arith.constant 0 : i32
    %c0_i32_0 = arith.constant 0 : i32
    %c0_i32_1 = arith.constant 0 : i32
    %c0_i32_2 = arith.constant 0 : i32
    return %c0_i32, %c0_i32_0, %c0_i32_1 : i32, i32, i32
  }
  func.func @transform_10(%arg0: i32) -> (i32, i32, i32) {
    %c0_i32 = arith.constant 0 : i32
    %c0_i32_0 = arith.constant 0 : i32
    %c0_i32_1 = arith.constant 0 : i32
    %c0_i32_2 = arith.constant 0 : i32
    return %c0_i32, %c0_i32_0, %c0_i32_1 : i32, i32, i32
  }
  func.func @transform_11(%arg0: i32) -> (i32, i32) {
    %c0_i32 = arith.constant 0 : i32
    %c0_i32_0 = arith.constant 0 : i32
    %c0_i32_1 = arith.constant 0 : i32
    return %c0_i32, %c0_i32_0 : i32, i32
  }
  func.func @transform_12(%arg0: i32) -> (i32, i32) {
    %c0_i32 = arith.constant 0 : i32
    %c0_i32_0 = arith.constant 0 : i32
    %c0_i32_1 = arith.constant 0 : i32
    return %c0_i32, %c0_i32_0 : i32, i32
  }
  func.func @transform_13(%arg0: i32) -> (i32, i32) {
    %c0_i32 = arith.constant 0 : i32
    %c0_i32_0 = arith.constant 0 : i32
    return %arg0, %c0_i32 : i32, i32
  }
}

</mosaic_0001>

<llo_original>
// kernel: tpu_custom_call.1
$region0: #{tpu_custom_call.1}
  #allocation0 [shape = 'u32[]', space=smem, size = 0x4, offset = 0x4, fixed_abs, tag = 'smem constant byte address 0x4 - core index']
  #allocation1 [shape = 'u32[144,128]{1,0:T(1,128)}', space=vmem, size = 0x12000, scoped, tag = 'internal scratch']
  #allocation2 [shape = 'f32[1,1]{1,0:T(1,128)S(1)}', space=vmem, size = 0x200, scoped, tag = 'scoped memory for tpu_custom_call.1']
  %s0 = inlined_call_operand.vmem [shape: f32[32,8], index: 0, kind: input, shape index: {}]
  %s1 = inlined_call_operand.vmem [shape: f32[32,1], index: 1, kind: input, shape index: {}]
  %s2 = inlined_call_operand.vmem [shape: f32[2,16], index: 2, kind: input, shape index: {}]
  %s3 = inlined_call_operand.vmem [shape: f32[8,32], index: 3, kind: input, shape index: {}]
  %s4 = inlined_call_operand.vmem [shape: f32[2,32,96], index: 4, kind: input, shape index: {}]
  %s5 = inlined_call_operand.vmem [shape: f32[2,1,96], index: 5, kind: input, shape index: {}]
  %s6 = inlined_call_operand.vmem [shape: f32[2,32,32], index: 6, kind: input, shape index: {}]
  %s7 = inlined_call_operand.vmem [shape: f32[2,6,32], index: 7, kind: input, shape index: {}]
  %s8 = inlined_call_operand.vmem [shape: f32[2,32,64], index: 8, kind: input, shape index: {}]
  %s9 = inlined_call_operand.vmem [shape: f32[2,1,64], index: 9, kind: input, shape index: {}]
  %s10 = inlined_call_operand.vmem [shape: f32[2,64,32], index: 10, kind: input, shape index: {}]
  %s11 = inlined_call_operand.vmem [shape: f32[1,16], index: 11, kind: input, shape index: {}]
  %s12 = inlined_call_operand.<no memory space> [shape: f32[1,1], index: 12, kind: input, shape index: {}]
  %s13 = inlined_call_operand.hbm [shape: f32[2,32], index: 13, kind: output, shape index: {}]
  %s14 = sld [smem:[#allocation0]]
  $region62: #{tpu_custom_call.1} parent=0
    _
  %s16 = ssub.s32 1, %s14
  %s17 = scalar_select 0, %s16, %s14
  %v18 = vstv %s12
  %19 = vst [vmem:[#allocation2] sm:$0x1] %v18
  $region1: #{tpu_custom_call.1} parent=0
    #allocation3 [shape = 'u8[1024]{0}', space=vmem, size = 0x400, scoped, tag = 'output window, operand 0, single buffered']
    #allocation4 [shape = 's32[1]{0}', space=sflag, size = 0x4, scoped, tag = 'scoped memory for tpu_custom_call.1']
    %20 = vsyncpa [#allocation4], 0
    // Predicated region
    $region2: #{tpu_custom_call.1} parent=1 // pred_check
      _
    $region3: #{tpu_custom_call.1} parent=1 // pred_check_branch
      %22 = sbr.rel (0) target = $region5
    $region4: #{tpu_custom_call.1} parent=1 // pred_region
      _
    $region5: #{tpu_custom_call.1} parent=1 // pred_fallthru
      _
    // Predicated region
    $region6: #{tpu_custom_call.1} parent=1 // pred_check
      _
    $region7: #{tpu_custom_call.1} parent=1 // pred_check_branch
      %24 = sbr.rel (0) target = $region9
    $region8: #{tpu_custom_call.1} parent=1 // pred_region
      _
    $region9: #{tpu_custom_call.1} parent=1 // pred_fallthru
      _
    // Predicated region
    $region10: #{tpu_custom_call.1} parent=1 // pred_check
      _
    $region11: #{tpu_custom_call.1} parent=1 // pred_check_branch
      %26 = sbr.rel (0) target = $region13
    $region12: #{tpu_custom_call.1} parent=1 // pred_region
      _
    $region13: #{tpu_custom_call.1} parent=1 // pred_fallthru
      _
    // Predicated region
    $region14: #{tpu_custom_call.1} parent=1 // pred_check
      _
    $region15: #{tpu_custom_call.1} parent=1 // pred_check_branch
      %28 = sbr.rel (0) target = $region17
    $region16: #{tpu_custom_call.1} parent=1 // pred_region
      _
    $region17: #{tpu_custom_call.1} parent=1 // pred_fallthru
      _
    // Predicated region
    $region18: #{tpu_custom_call.1} parent=1 // pred_check
      _
    $region19: #{tpu_custom_call.1} parent=1 // pred_check_branch
      %30 = sbr.rel (0) target = $region21
    $region20: #{tpu_custom_call.1} parent=1 // pred_region
      _
    $region21: #{tpu_custom_call.1} parent=1 // pred_fallthru
      _
    // Predicated region
    $region22: #{tpu_custom_call.1} parent=1 // pred_check
      _
    $region23: #{tpu_custom_call.1} parent=1 // pred_check_branch
      %32 = sbr.rel (0) target = $region25
    $region24: #{tpu_custom_call.1} parent=1 // pred_region
      _
    $region25: #{tpu_custom_call.1} parent=1 // pred_fallthru
      _
    // Predicated region
    $region26: #{tpu_custom_call.1} parent=1 // pred_check
      _
    $region27: #{tpu_custom_call.1} parent=1 // pred_check_branch
      %34 = sbr.rel (0) target = $region29
    $region28: #{tpu_custom_call.1} parent=1 // pred_region
      _
    $region29: #{tpu_custom_call.1} parent=1 // pred_fallthru
      _
    // Predicated region
    $region30: #{tpu_custom_call.1} parent=1 // pred_check
      _
    $region31: #{tpu_custom_call.1} parent=1 // pred_check_branch
      %36 = sbr.rel (0) target = $region33
    $region32: #{tpu_custom_call.1} parent=1 // pred_region
      _
    $region33: #{tpu_custom_call.1} parent=1 // pred_fallthru
      _
    // Predicated region
    $region34: #{tpu_custom_call.1} parent=1 // pred_check
      _
    $region35: #{tpu_custom_call.1} parent=1 // pred_check_branch
      %38 = sbr.rel (0) target = $region37
    $region36: #{tpu_custom_call.1} parent=1 // pred_region
      _
    $region37: #{tpu_custom_call.1} parent=1 // pred_fallthru
      _
    // Predicated region
    $region38: #{tpu_custom_call.1} parent=1 // pred_check
      _
    $region39: #{tpu_custom_call.1} parent=1 // pred_check_branch
      %40 = sbr.rel (0) target = $region41
    $region40: #{tpu_custom_call.1} parent=1 // pred_region
      _
    $region41: #{tpu_custom_call.1} parent=1 // pred_fallthru
      _
    // Predicated region
    $region42: #{tpu_custom_call.1} parent=1 // pred_check
      _
    $region43: #{tpu_custom_call.1} parent=1 // pred_check_branch
      %42 = sbr.rel (0) target = $region45
    $region44: #{tpu_custom_call.1} parent=1 // pred_region
      _
    $region45: #{tpu_custom_call.1} parent=1 // pred_fallthru
      _
    // Predicated region
    $region46: #{tpu_custom_call.1} parent=1 // pred_check
      _
    $region47: #{tpu_custom_call.1} parent=1 // pred_check_branch
      %44 = sbr.rel (0) target = $region49
    $region48: #{tpu_custom_call.1} parent=1 // pred_region
      _
    $region49: #{tpu_custom_call.1} parent=1 // pred_fallthru
      _
    // Predicated region
    $region50: #{tpu_custom_call.1} parent=1 // pred_check
      _
    $region51: #{tpu_custom_call.1} parent=1 // pred_check_branch
      %46 = sbr.rel (0) target = $region53
    $region52: #{tpu_custom_call.1} parent=1 // pred_region
      _
    $region53: #{tpu_custom_call.1} parent=1 // pred_fallthru
      _
    %v47 = vld [vmem:[%s1] sm:$0xff]
    %v48 = vld [vmem:[%s1 + $0x8] sm:$0xff]
    %v49 = vld [vmem:[%s1 + $0x10] sm:$0xff]
    %v50 = vld [vmem:[%s1 + $0x18] sm:$0xff]
    %v51 = vld [vmem:[%s2] sm:$0x3]
    %v54 = vunpack.c.l.s4 1966171168
    %v55 = vunpack.c.0.s8 %v54
    %v56 = vlaneseq
    %v57 = vshrl.u32 %v56, 7
    %v58 = vsub.s32 %v55, %v57
    %v59 = vrot.slane %v51, %v58
    %v60 = vcombine.high %v59, %v59
    %v62 = vunpack.c.l.s4 1966171168
    %v63 = vunpack.c.0.s8 %v62
    %v64 = vlaneseq
    %v65 = vshrl.u32 %v64, 7
    %v66 = vsub.s32 %v63, %v65
    %v67 = vrot.slane %v59, %v66
    %v69 = vunpack.c.l.s4 1966171168
    %v70 = vunpack.c.0.s8 %v69
    %v71 = vlaneseq
    %v72 = vshrl.u32 %v71, 7
    %v73 = vsub.s32 %v70, %v72
    %v74 = vrot.slane %v60, %v73
    %v75 = vlaneseq
    %v76 = vshrl.u32 %v75, 7
    %v77 = vsub.s32 0, %v76
    %v78 = vrot.slane %v67, %v77
    %v79 = vlaneseq
    %v80 = vshrl.u32 %v79, 7
    %v81 = vsub.s32 0, %v80
    %v82 = vrot.slane %v74, %v81
    %v85 = vld [vmem:[%s0] sm:$0xff]
    %v86 = vld [vmem:[%s0 + $0x8] sm:$0xff]
    %v87 = vld [vmem:[%s0 + $0x10] sm:$0xff]
    %v88 = vld [vmem:[%s0 + $0x18] sm:$0xff]
    %v89 = vld [vmem:[%s3] sm:$0xff]
    %vm90 = vcmask 64512
    %v92 = vsel %vm90, %v85, 0
    %v95 = vsel %vm90, %v86, 0
    %v98 = vsel %vm90, %v87, 0
    %v101 = vsel %vm90, %v88, 0
    %103 = vmatprep.subr.mxu0 0.0
    %104 = vmatpush1.msra.mxu0 0.0
    %105 = vmatprep.subr.mxu0 0.0
    %106 = vmatpush1.msra.mxu0 0.0
    %107 = vmatprep.subr.mxu0 0.0
    %108 = vmatpush1.msra.mxu0 0.0
    %109 = vmatprep.subr.mxu0 0.0
    %110 = vmatpush1.msra.mxu0 0.0
    %111 = vmatprep.subr.mxu0 0.0
    %112 = vmatpush1.msra.mxu0 0.0
    %113 = vmatprep.subr.mxu0 0.0
    %114 = vmatpush1.msra.mxu0 0.0
    %115 = vmatprep.subr.mxu0 0.0
    %116 = vmatpush1.msra.mxu0 0.0
    %117 = vmatprep.subr.mxu0 0.0
    %118 = vmatpush1.msra.mxu0 0.0
    %119 = vmatprep.subr.mxu0 0.0
    %120 = vmatpush1.msra.mxu0 0.0
    %121 = vmatprep.subr.mxu0 0.0
    %122 = vmatpush1.msra.mxu0 0.0
    %123 = vmatprep.subr.mxu0 0.0
    %124 = vmatpush1.msra.mxu0 0.0
    %125 = vmatprep.subr.mxu0 0.0
    %126 = vmatpush1.msra.mxu0 0.0
    %127 = vmatprep.subr.mxu0 0.0
    %128 = vmatpush1.msra.mxu0 0.0
    %129 = vmatprep.subr.mxu0 0.0
    %130 = vmatpush1.msra.mxu0 0.0
    %131 = vmatprep.subr.mxu0 0.0
    %132 = vmatpush1.msra.mxu0 0.0
    %133 = vmatprep.subr.mxu0 0.0
    %134 = vmatpush1.msra.mxu0 %v89
    %135 = vmatprep.subr.mxu0 0.0
    %136 = vmatpush2.msra.mxu0 0.0
    %137 = vmatprep.subr.mxu0 0.0
    %138 = vmatpush2.msra.mxu0 0.0
    %139 = vmatprep.subr.mxu0 0.0
    %140 = vmatpush2.msra.mxu0 0.0
    %141 = vmatprep.subr.mxu0 0.0
    %142 = vmatpush2.msra.mxu0 0.0
    %143 = vmatprep.subr.mxu0 0.0
    %144 = vmatpush2.msra.mxu0 0.0
    %145 = vmatprep.subr.mxu0 0.0
    %146 = vmatpush2.msra.mxu0 0.0
    %147 = vmatprep.subr.mxu0 0.0
    %148 = vmatpush2.msra.mxu0 0.0
    %149 = vmatprep.subr.mxu0 0.0
    %150 = vmatpush2.msra.mxu0 0.0
    %151 = vmatprep.subr.mxu0 0.0
    %152 = vmatpush2.msra.mxu0 0.0
    %153 = vmatprep.subr.mxu0 0.0
    %154 = vmatpush2.msra.mxu0 0.0
    %155 = vmatprep.subr.mxu0 0.0
    %156 = vmatpush2.msra.mxu0 0.0
    %157 = vmatprep.subr.mxu0 0.0
    %158 = vmatpush2.msra.mxu0 0.0
    %159 = vmatprep.subr.mxu0 0.0
    %160 = vmatpush2.msra.mxu0 0.0
    %161 = vmatprep.subr.mxu0 0.0
    %162 = vmatpush2.msra.mxu0 0.0
    %163 = vmatprep.subr.mxu0 0.0
    %164 = vmatpush2.msra.mxu0 0.0
    %165 = vmatprep.subr.mxu0 0.0
    %166 = vmatpush2.msra.mxu0 0.0
    %167 = vmatprep.mubr.f32.mxu0 0.0
    %168 = vmatmul.mubr.f32.gmra.mxu0 %v92
    %v169 = vpop.f32.mrf.mxu0
    %v170 = vadd.f32 0.0, %v169
    %v171 = vpop.f32.mrf.mxu0
    %172 = vmatprep.mubr.f32.mxu0 0.0
    %173 = vmatmul.mubr.f32.gmra.mxu0 %v95
    %v174 = vpop.f32.mrf.mxu0
    %v175 = vadd.f32 0.0, %v174
    %v176 = vpop.f32.mrf.mxu0
    %177 = vmatprep.mubr.f32.mxu0 0.0
    %178 = vmatmul.mubr.f32.gmra.mxu0 %v98
    %v179 = vpop.f32.mrf.mxu0
    %v180 = vadd.f32 0.0, %v179
    %v181 = vpop.f32.mrf.mxu0
    %182 = vmatprep.mubr.f32.mxu0 0.0
    %183 = vmatmul.mubr.f32.gmra.mxu0 %v101
    %v184 = vpop.f32.mrf.mxu0
    %v185 = vadd.f32 0.0, %v184
    %v186 = vpop.f32.mrf.mxu0
    %187 = vdwg.mxu0
    %v188 = vld [vmem:[%s7] sm:$0x3f]
    %v189 = vld [vmem:[%s4] sm:$0xff]
    %v190 = vld [vmem:[%s4 + $0x8] sm:$0xff]
    %v191 = vld [vmem:[%s4 + $0x10] sm:$0xff]
    %v192 = vld [vmem:[%s4 + $0x18] sm:$0xff]
    %v193 = vld [vmem:[%s5] sm:$0x1]
    %v195 = vlaneseq
    %v196 = vshrl.u32 %v195, 7
    %v197 = vsub.s32 0, %v196
    %v198 = vrot.slane %v193, %v197
    %vm200 = vcmask 261120
    %v202 = vsel %vm200, %v170, 0
    %v205 = vsel %vm200, %v175, 0
    %v208 = vsel %vm200, %v180, 0
    %v211 = vsel %vm200, %v185, 0
    %213 = vmatprep.subr.mxu0 0.0
    %214 = vmatpush1.msra.mxu0 0.0
    %215 = vmatprep.subr.mxu0 0.0
    %216 = vmatpush1.msra.mxu0 0.0
    %217 = vmatprep.subr.mxu0 0.0
    %218 = vmatpush1.msra.mxu0 0.0
    %219 = vmatprep.subr.mxu0 0.0
    %220 = vmatpush1.msra.mxu0 0.0
    %221 = vmatprep.subr.mxu0 0.0
    %222 = vmatpush1.msra.mxu0 0.0
    %223 = vmatprep.subr.mxu0 0.0
    %224 = vmatpush1.msra.mxu0 0.0
    %225 = vmatprep.subr.mxu0 0.0
    %226 = vmatpush1.msra.mxu0 0.0
    %227 = vmatprep.subr.mxu0 0.0
    %228 = vmatpush1.msra.mxu0 0.0
    %229 = vmatprep.subr.mxu0 0.0
    %230 = vmatpush1.msra.mxu0 0.0
    %231 = vmatprep.subr.mxu0 0.0
    %232 = vmatpush1.msra.mxu0 0.0
    %233 = vmatprep.subr.mxu0 0.0
    %234 = vmatpush1.msra.mxu0 0.0
    %235 = vmatprep.subr.mxu0 0.0
    %236 = vmatpush1.msra.mxu0 0.0
    %237 = vmatprep.subr.mxu0 0.0
    %238 = vmatpush1.msra.mxu0 %v192
    %239 = vmatprep.subr.mxu0 0.0
    %240 = vmatpush1.msra.mxu0 %v191
    %241 = vmatprep.subr.mxu0 0.0
    %242 = vmatpush1.msra.mxu0 %v190
    %243 = vmatprep.subr.mxu0 0.0
    %244 = vmatpush1.msra.mxu0 %v189
    %245 = vmatprep.subr.mxu0 0.0
    %246 = vmatpush2.msra.mxu0 0.0
    %247 = vmatprep.subr.mxu0 0.0
    %248 = vmatpush2.msra.mxu0 0.0
    %249 = vmatprep.subr.mxu0 0.0
    %250 = vmatpush2.msra.mxu0 0.0
    %251 = vmatprep.subr.mxu0 0.0
    %252 = vmatpush2.msra.mxu0 0.0
    %253 = vmatprep.subr.mxu0 0.0
    %254 = vmatpush2.msra.mxu0 0.0
    %255 = vmatprep.subr.mxu0 0.0
    %256 = vmatpush2.msra.mxu0 0.0
    %257 = vmatprep.subr.mxu0 0.0
    %258 = vmatpush2.msra.mxu0 0.0
    %259 = vmatprep.subr.mxu0 0.0
    %260 = vmatpush2.msra.mxu0 0.0
    %261 = vmatprep.subr.mxu0 0.0
    %262 = vmatpush2.msra.mxu0 0.0
    %263 = vmatprep.subr.mxu0 0.0
    %264 = vmatpush2.msra.mxu0 0.0
    %265 = vmatprep.subr.mxu0 0.0
    %266 = vmatpush2.msra.mxu0 0.0
    %267 = vmatprep.subr.mxu0 0.0
    %268 = vmatpush2.msra.mxu0 0.0
    %269 = vmatprep.subr.mxu0 0.0
    %270 = vmatpush2.msra.mxu0 0.0
    %271 = vmatprep.subr.mxu0 0.0
    %272 = vmatpush2.msra.mxu0 0.0
    %273 = vmatprep.subr.mxu0 0.0
    %274 = vmatpush2.msra.mxu0 0.0
    %275 = vmatprep.subr.mxu0 0.0
    %276 = vmatpush2.msra.mxu0 0.0
    %277 = vmatprep.mubr.f32.mxu0 0.0
    %278 = vmatmul.mubr.f32.gmra.mxu0 %v202
    %v279 = vpop.f32.mrf.mxu0
    %v280 = vadd.f32 %v198, %v279
    %v281 = vpop.f32.mrf.mxu0
    %282 = vmatprep.mubr.f32.mxu0 0.0
    %283 = vmatmul.mubr.f32.gmra.mxu0 %v205
    %v284 = vpop.f32.mrf.mxu0
    %v285 = vadd.f32 %v198, %v284
    %v286 = vpop.f32.mrf.mxu0
    %287 = vmatprep.mubr.f32.mxu0 0.0
    %288 = vmatmul.mubr.f32.gmra.mxu0 %v208
    %v289 = vpop.f32.mrf.mxu0
    %v290 = vadd.f32 %v198, %v289
    %v291 = vpop.f32.mrf.mxu0
    %292 = vmatprep.mubr.f32.mxu0 0.0
    %293 = vmatmul.mubr.f32.gmra.mxu0 %v211
    %v294 = vpop.f32.mrf.mxu0
    %v295 = vadd.f32 %v198, %v294
    %v296 = vpop.f32.mrf.mxu0
    %297 = vdwg.mxu0
    %300 = vrot.lane.b32.xlu0 %v280, 96
    %v301 = vpop.permute.xlu0 %300
    %302 = vrot.lane.b32.xlu0 %v285, 96
    %v303 = vpop.permute.xlu0 %302
    %v304 = vsel %vm90, %v280, 0
    %v306 = vsel %vm90, %v285, 0
    %v308 = vsel %vm90, %v301, 0
    %v310 = vsel %vm90, %v303, 0
    %312 = vmatprep.subr.mxu0 0.0
    %313 = vmatpush1.xpose.msra.mxu0 0.0
    %314 = vmatprep.subr.mxu0 0.0
    %315 = vmatpush1.xpose.msra.mxu0 0.0
    %316 = vmatprep.subr.mxu0 0.0
    %317 = vmatpush1.xpose.msra.mxu0 0.0
    %318 = vmatprep.subr.mxu0 0.0
    %319 = vmatpush1.xpose.msra.mxu0 0.0
    %320 = vmatprep.subr.mxu0 0.0
    %321 = vmatpush1.xpose.msra.mxu0 0.0
    %322 = vmatprep.subr.mxu0 0.0
    %323 = vmatpush1.xpose.msra.mxu0 0.0
    %324 = vmatprep.subr.mxu0 0.0
    %325 = vmatpush1.xpose.msra.mxu0 0.0
    %326 = vmatprep.subr.mxu0 0.0
    %327 = vmatpush1.xpose.msra.mxu0 0.0
    %328 = vmatprep.subr.mxu0 0.0
    %329 = vmatpush1.xpose.msra.mxu0 0.0
    %330 = vmatprep.subr.mxu0 0.0
    %331 = vmatpush1.xpose.msra.mxu0 0.0
    %332 = vmatprep.subr.mxu0 0.0
    %333 = vmatpush1.xpose.msra.mxu0 0.0
    %334 = vmatprep.subr.mxu0 0.0
    %335 = vmatpush1.xpose.msra.mxu0 0.0
    %336 = vmatprep.subr.mxu0 0.0
    %337 = vmatpush1.xpose.msra.mxu0 0.0
    %338 = vmatprep.subr.mxu0 0.0
    %339 = vmatpush1.xpose.msra.mxu0 0.0
    %340 = vmatprep.subr.mxu0 0.0
    %341 = vmatpush1.xpose.msra.mxu0 %v310
    %342 = vmatprep.subr.mxu0 0.0
    %343 = vmatpush1.xpose.msra.mxu0 %v308
    %344 = vmatprep.subr.mxu0 0.0
    %345 = vmatpush2.xpose.msra.mxu0 0.0
    %346 = vmatprep.subr.mxu0 0.0
    %347 = vmatpush2.xpose.msra.mxu0 0.0
    %348 = vmatprep.subr.mxu0 0.0
    %349 = vmatpush2.xpose.msra.mxu0 0.0
    %350 = vmatprep.subr.mxu0 0.0
    %351 = vmatpush2.xpose.msra.mxu0 0.0
    %352 = vmatprep.subr.mxu0 0.0
    %353 = vmatpush2.xpose.msra.mxu0 0.0
    %354 = vmatprep.subr.mxu0 0.0
    %355 = vmatpush2.xpose.msra.mxu0 0.0
    %356 = vmatprep.subr.mxu0 0.0
    %357 = vmatpush2.xpose.msra.mxu0 0.0
    %358 = vmatprep.subr.mxu0 0.0
    %359 = vmatpush2.xpose.msra.mxu0 0.0
    %360 = vmatprep.subr.mxu0 0.0
    %361 = vmatpush2.xpose.msra.mxu0 0.0
    %362 = vmatprep.subr.mxu0 0.0
    %363 = vmatpush2.xpose.msra.mxu0 0.0
    %364 = vmatprep.subr.mxu0 0.0
    %365 = vmatpush2.xpose.msra.mxu0 0.0
    %366 = vmatprep.subr.mxu0 0.0
    %367 = vmatpush2.xpose.msra.mxu0 0.0
    %368 = vmatprep.subr.mxu0 0.0
    %369 = vmatpush2.xpose.msra.mxu0 0.0
    %370 = vmatprep.subr.mxu0 0.0
    %371 = vmatpush2.xpose.msra.mxu0 0.0
    %372 = vmatprep.subr.mxu0 0.0
    %373 = vmatpush2.xpose.msra.mxu0 0.0
    %374 = vmatprep.subr.mxu0 0.0
    %375 = vmatpush2.xpose.msra.mxu0 0.0
    %376 = vmatprep.mubr.f32.mxu0 0.0
    %377 = vmatmul.mubr.f32.gmra.mxu0 %v304
    %v378 = vpop.f32.mrf.mxu0
    %v379 = vadd.f32 0.0, %v378
    %v380 = vpop.f32.mrf.mxu0
    %381 = vmatprep.mubr.f32.mxu0 0.0
    %382 = vmatmul.mubr.f32.gmra.mxu0 %v306
    %v383 = vpop.f32.mrf.mxu0
    %v384 = vadd.f32 0.0, %v383
    %v385 = vpop.f32.mrf.mxu0
    %386 = vdwg.mxu0
    %389 = vrot.lane.b32.xlu0 %v290, 96
    %v390 = vpop.permute.xlu0 %389
    %391 = vrot.lane.b32.xlu0 %v295, 96
    %v392 = vpop.permute.xlu0 %391
    %v393 = vsel %vm90, %v290, 0
    %v395 = vsel %vm90, %v295, 0
    %v397 = vsel %vm90, %v390, 0
    %v399 = vsel %vm90, %v392, 0
    %401 = vmatprep.subr.mxu0 0.0
    %402 = vmatpush1.xpose.msra.mxu0 0.0
    %403 = vmatprep.subr.mxu0 0.0
    %404 = vmatpush1.xpose.msra.mxu0 0.0
    %405 = vmatprep.subr.mxu0 0.0
    %406 = vmatpush1.xpose.msra.mxu0 0.0
    %407 = vmatprep.subr.mxu0 0.0
    %408 = vmatpush1.xpose.msra.mxu0 0.0
    %409 = vmatprep.subr.mxu0 0.0
    %410 = vmatpush1.xpose.msra.mxu0 0.0
    %411 = vmatprep.subr.mxu0 0.0
    %412 = vmatpush1.xpose.msra.mxu0 0.0
    %413 = vmatprep.subr.mxu0 0.0
    %414 = vmatpush1.xpose.msra.mxu0 0.0
    %415 = vmatprep.subr.mxu0 0.0
    %416 = vmatpush1.xpose.msra.mxu0 0.0
    %417 = vmatprep.subr.mxu0 0.0
    %418 = vmatpush1.xpose.msra.mxu0 0.0
    %419 = vmatprep.subr.mxu0 0.0
    %420 = vmatpush1.xpose.msra.mxu0 0.0
    %421 = vmatprep.subr.mxu0 0.0
    %422 = vmatpush1.xpose.msra.mxu0 0.0
    %423 = vmatprep.subr.mxu0 0.0
    %424 = vmatpush1.xpose.msra.mxu0 0.0
    %425 = vmatprep.subr.mxu0 0.0
    %426 = vmatpush1.xpose.msra.mxu0 0.0
    %427 = vmatprep.subr.mxu0 0.0
    %428 = vmatpush1.xpose.msra.mxu0 0.0
    %429 = vmatprep.subr.mxu0 0.0
    %430 = vmatpush1.xpose.msra.mxu0 %v399
    %431 = vmatprep.subr.mxu0 0.0
    %432 = vmatpush1.xpose.msra.mxu0 %v397
    %433 = vmatprep.subr.mxu0 0.0
    %434 = vmatpush2.xpose.msra.mxu0 0.0
    %435 = vmatprep.subr.mxu0 0.0
    %436 = vmatpush2.xpose.msra.mxu0 0.0
    %437 = vmatprep.subr.mxu0 0.0
    %438 = vmatpush2.xpose.msra.mxu0 0.0
    %439 = vmatprep.subr.mxu0 0.0
    %440 = vmatpush2.xpose.msra.mxu0 0.0
    %441 = vmatprep.subr.mxu0 0.0
    %442 = vmatpush2.xpose.msra.mxu0 0.0
    %443 = vmatprep.subr.mxu0 0.0
    %444 = vmatpush2.xpose.msra.mxu0 0.0
    %445 = vmatprep.subr.mxu0 0.0
    %446 = vmatpush2.xpose.msra.mxu0 0.0
    %447 = vmatprep.subr.mxu0 0.0
    %448 = vmatpush2.xpose.msra.mxu0 0.0
    %449 = vmatprep.subr.mxu0 0.0
    %450 = vmatpush2.xpose.msra.mxu0 0.0
    %451 = vmatprep.subr.mxu0 0.0
    %452 = vmatpush2.xpose.msra.mxu0 0.0
    %453 = vmatprep.subr.mxu0 0.0
    %454 = vmatpush2.xpose.msra.mxu0 0.0
    %455 = vmatprep.subr.mxu0 0.0
    %456 = vmatpush2.xpose.msra.mxu0 0.0
    %457 = vmatprep.subr.mxu0 0.0
    %458 = vmatpush2.xpose.msra.mxu0 0.0
    %459 = vmatprep.subr.mxu0 0.0
    %460 = vmatpush2.xpose.msra.mxu0 0.0
    %461 = vmatprep.subr.mxu0 0.0
    %462 = vmatpush2.xpose.msra.mxu0 0.0
    %463 = vmatprep.subr.mxu0 0.0
    %464 = vmatpush2.xpose.msra.mxu0 0.0
    %465 = vmatprep.mubr.f32.mxu0 0.0
    %466 = vmatmul.mubr.f32.gmra.mxu0 %v393
    %v467 = vpop.f32.mrf.mxu0
    %v468 = vadd.f32 0.0, %v467
    %v469 = vpop.f32.mrf.mxu0
    %470 = vmatprep.mubr.f32.mxu0 0.0
    %471 = vmatmul.mubr.f32.gmra.mxu0 %v395
    %v472 = vpop.f32.mrf.mxu0
    %v473 = vadd.f32 0.0, %v472
    %v474 = vpop.f32.mrf.mxu0
    %475 = vdwg.mxu0
    %v476 = vmul.f32 %v379, 0.35355338
    %v477 = vmul.f32 %v384, 0.35355338
    %v478 = vmul.f32 %v468, 0.35355338
    %v479 = vmul.f32 %v473, 0.35355338
    %v480 = vadd.f32 %v476, %v78
    %v481 = vadd.f32 %v477, %v78
    %v482 = vadd.f32 %v478, %v82
    %v483 = vadd.f32 %v479, %v82
    %vm484 = vcmask 130048
    %v485 = vsel %vm484, %v480, -inf
    %486 = vmax.xlane.f32.xlu0 %v485
    %v487 = vpop.xlane.xlu0 %486
    %v488 = vsel %vm484, %v481, -inf
    %489 = vmax.xlane.f32.xlu0 %v488
    %v490 = vpop.xlane.xlu0 %489
    %v491 = vsel %vm484, %v482, -inf
    %492 = vmax.xlane.f32.xlu0 %v491
    %v493 = vpop.xlane.xlu0 %492
    %v494 = vsel %vm484, %v483, -inf
    %495 = vmax.xlane.f32.xlu0 %v494
    %v496 = vpop.xlane.xlu0 %495
    %v497 = vsub.f32 %v480, %v487
    %v498 = vsub.f32 %v481, %v490
    %v499 = vsub.f32 %v482, %v493
    %v500 = vsub.f32 %v483, %v496
    %v501 = vmul.f32 %v497, 1.442695
    %v502 = vpow.pop %v501
    %v503 = vmul.f32 %v498, 1.442695
    %v504 = vpow.pop %v503
    %v505 = vmul.f32 %v499, 1.442695
    %v506 = vpow.pop %v505
    %v507 = vmul.f32 %v500, 1.442695
    %v508 = vpow.pop %v507
    %v509 = vsel %vm484, %v502, 0.0
    %510 = vadd.xlane.f32.xlu0 %v509
    %v511 = vpop.xlane.xlu0 %510
    %v512 = vsel %vm484, %v504, 0.0
    %513 = vadd.xlane.f32.xlu0 %v512
    %v514 = vpop.xlane.xlu0 %513
    %v515 = vsel %vm484, %v506, 0.0
    %516 = vadd.xlane.f32.xlu0 %v515
    %v517 = vpop.xlane.xlu0 %516
    %v518 = vsel %vm484, %v508, 0.0
    %519 = vadd.xlane.f32.xlu0 %v518
    %v520 = vpop.xlane.xlu0 %519
    %v521 = vrcp.pop %v511
    %v522 = vmul.f32 %v502, %v521
    %v523 = vrcp.pop %v514
    %v524 = vmul.f32 %v504, %v523
    %v525 = vrcp.pop %v517
    %v526 = vmul.f32 %v506, %v525
    %v527 = vrcp.pop %v520
    %v528 = vmul.f32 %v508, %v527
    %529 = vrot.lane.b32.xlu0 %v280, 64
    %v530 = vpop.permute.xlu0 %529
    %531 = vrot.lane.b32.xlu0 %v285, 64
    %v532 = vpop.permute.xlu0 %531
    %v536 = vsel %vm484, %v522, 0
    %v539 = vsel %vm484, %v524, 0
    %541 = vmatprep.subr.mxu0 0.0
    %542 = vmatpush1.msra.mxu0 0.0
    %543 = vmatprep.subr.mxu0 0.0
    %544 = vmatpush1.msra.mxu0 0.0
    %545 = vmatprep.subr.mxu0 0.0
    %546 = vmatpush1.msra.mxu0 0.0
    %547 = vmatprep.subr.mxu0 0.0
    %548 = vmatpush1.msra.mxu0 0.0
    %549 = vmatprep.subr.mxu0 0.0
    %550 = vmatpush1.msra.mxu0 0.0
    %551 = vmatprep.subr.mxu0 0.0
    %552 = vmatpush1.msra.mxu0 0.0
    %553 = vmatprep.subr.mxu0 0.0
    %554 = vmatpush1.msra.mxu0 0.0
    %555 = vmatprep.subr.mxu0 0.0
    %556 = vmatpush1.msra.mxu0 0.0
    %557 = vmatprep.subr.mxu0 0.0
    %558 = vmatpush1.msra.mxu0 0.0
    %559 = vmatprep.subr.mxu0 0.0
    %560 = vmatpush1.msra.mxu0 0.0
    %561 = vmatprep.subr.mxu0 0.0
    %562 = vmatpush1.msra.mxu0 0.0
    %563 = vmatprep.subr.mxu0 0.0
    %564 = vmatpush1.msra.mxu0 0.0
    %565 = vmatprep.subr.mxu0 0.0
    %566 = vmatpush1.msra.mxu0 0.0
    %567 = vmatprep.subr.mxu0 0.0
    %568 = vmatpush1.msra.mxu0 0.0
    %569 = vmatprep.subr.mxu0 0.0
    %570 = vmatpush1.msra.mxu0 %v532
    %571 = vmatprep.subr.mxu0 0.0
    %572 = vmatpush1.msra.mxu0 %v530
    %573 = vmatprep.subr.mxu0 0.0
    %574 = vmatpush2.msra.mxu0 0.0
    %575 = vmatprep.subr.mxu0 0.0
    %576 = vmatpush2.msra.mxu0 0.0
    %577 = vmatprep.subr.mxu0 0.0
    %578 = vmatpush2.msra.mxu0 0.0
    %579 = vmatprep.subr.mxu0 0.0
    %580 = vmatpush2.msra.mxu0 0.0
    %581 = vmatprep.subr.mxu0 0.0
    %582 = vmatpush2.msra.mxu0 0.0
    %583 = vmatprep.subr.mxu0 0.0
    %584 = vmatpush2.msra.mxu0 0.0
    %585 = vmatprep.subr.mxu0 0.0
    %586 = vmatpush2.msra.mxu0 0.0
    %587 = vmatprep.subr.mxu0 0.0
    %588 = vmatpush2.msra.mxu0 0.0
    %589 = vmatprep.subr.mxu0 0.0
    %590 = vmatpush2.msra.mxu0 0.0
    %591 = vmatprep.subr.mxu0 0.0
    %592 = vmatpush2.msra.mxu0 0.0
    %593 = vmatprep.subr.mxu0 0.0
    %594 = vmatpush2.msra.mxu0 0.0
    %595 = vmatprep.subr.mxu0 0.0
    %596 = vmatpush2.msra.mxu0 0.0
    %597 = vmatprep.subr.mxu0 0.0
    %598 = vmatpush2.msra.mxu0 0.0
    %599 = vmatprep.subr.mxu0 0.0
    %600 = vmatpush2.msra.mxu0 0.0
    %601 = vmatprep.subr.mxu0 0.0
    %602 = vmatpush2.msra.mxu0 0.0
    %603 = vmatprep.subr.mxu0 0.0
    %604 = vmatpush2.msra.mxu0 0.0
    %605 = vmatprep.mubr.f32.mxu0 0.0
    %606 = vmatmul.mubr.f32.gmra.mxu0 %v536
    %v607 = vpop.f32.mrf.mxu0
    %v608 = vadd.f32 0.0, %v607
    %v609 = vpop.f32.mrf.mxu0
    %610 = vmatprep.mubr.f32.mxu0 0.0
    %611 = vmatmul.mubr.f32.gmra.mxu0 %v539
    %v612 = vpop.f32.mrf.mxu0
    %v613 = vadd.f32 0.0, %v612
    %v614 = vpop.f32.mrf.mxu0
    %615 = vdwg.mxu0
    %616 = vrot.lane.b32.xlu0 %v290, 64
    %v617 = vpop.permute.xlu0 %616
    %618 = vrot.lane.b32.xlu0 %v295, 64
    %v619 = vpop.permute.xlu0 %618
    %v623 = vsel %vm484, %v526, 0
    %v626 = vsel %vm484, %v528, 0
    %628 = vmatprep.subr.mxu0 0.0
    %629 = vmatpush1.msra.mxu0 0.0
    %630 = vmatprep.subr.mxu0 0.0
    %631 = vmatpush1.msra.mxu0 0.0
    %632 = vmatprep.subr.mxu0 0.0
    %633 = vmatpush1.msra.mxu0 0.0
    %634 = vmatprep.subr.mxu0 0.0
    %635 = vmatpush1.msra.mxu0 0.0
    %636 = vmatprep.subr.mxu0 0.0
    %637 = vmatpush1.msra.mxu0 0.0
    %638 = vmatprep.subr.mxu0 0.0
    %639 = vmatpush1.msra.mxu0 0.0
    %640 = vmatprep.subr.mxu0 0.0
    %641 = vmatpush1.msra.mxu0 0.0
    %642 = vmatprep.subr.mxu0 0.0
    %643 = vmatpush1.msra.mxu0 0.0
    %644 = vmatprep.subr.mxu0 0.0
    %645 = vmatpush1.msra.mxu0 0.0
    %646 = vmatprep.subr.mxu0 0.0
    %647 = vmatpush1.msra.mxu0 0.0
    %648 = vmatprep.subr.mxu0 0.0
    %649 = vmatpush1.msra.mxu0 0.0
    %650 = vmatprep.subr.mxu0 0.0
    %651 = vmatpush1.msra.mxu0 0.0
    %652 = vmatprep.subr.mxu0 0.0
    %653 = vmatpush1.msra.mxu0 0.0
    %654 = vmatprep.subr.mxu0 0.0
    %655 = vmatpush1.msra.mxu0 0.0
    %656 = vmatprep.subr.mxu0 0.0
    %657 = vmatpush1.msra.mxu0 %v619
    %658 = vmatprep.subr.mxu0 0.0
    %659 = vmatpush1.msra.mxu0 %v617
    %660 = vmatprep.subr.mxu0 0.0
    %661 = vmatpush2.msra.mxu0 0.0
    %662 = vmatprep.subr.mxu0 0.0
    %663 = vmatpush2.msra.mxu0 0.0
    %664 = vmatprep.subr.mxu0 0.0
    %665 = vmatpush2.msra.mxu0 0.0
    %666 = vmatprep.subr.mxu0 0.0
    %667 = vmatpush2.msra.mxu0 0.0
    %668 = vmatprep.subr.mxu0 0.0
    %669 = vmatpush2.msra.mxu0 0.0
    %670 = vmatprep.subr.mxu0 0.0
    %671 = vmatpush2.msra.mxu0 0.0
    %672 = vmatprep.subr.mxu0 0.0
    %673 = vmatpush2.msra.mxu0 0.0
    %674 = vmatprep.subr.mxu0 0.0
    %675 = vmatpush2.msra.mxu0 0.0
    %676 = vmatprep.subr.mxu0 0.0
    %677 = vmatpush2.msra.mxu0 0.0
    %678 = vmatprep.subr.mxu0 0.0
    %679 = vmatpush2.msra.mxu0 0.0
    %680 = vmatprep.subr.mxu0 0.0
    %681 = vmatpush2.msra.mxu0 0.0
    %682 = vmatprep.subr.mxu0 0.0
    %683 = vmatpush2.msra.mxu0 0.0
    %684 = vmatprep.subr.mxu0 0.0
    %685 = vmatpush2.msra.mxu0 0.0
    %686 = vmatprep.subr.mxu0 0.0
    %687 = vmatpush2.msra.mxu0 0.0
    %688 = vmatprep.subr.mxu0 0.0
    %689 = vmatpush2.msra.mxu0 0.0
    %690 = vmatprep.subr.mxu0 0.0
    %691 = vmatpush2.msra.mxu0 0.0
    %692 = vmatprep.mubr.f32.mxu0 0.0
    %693 = vmatmul.mubr.f32.gmra.mxu0 %v623
    %v694 = vpop.f32.mrf.mxu0
    %v695 = vadd.f32 0.0, %v694
    %v696 = vpop.f32.mrf.mxu0
    %697 = vmatprep.mubr.f32.mxu0 0.0
    %698 = vmatmul.mubr.f32.gmra.mxu0 %v626
    %v699 = vpop.f32.mrf.mxu0
    %v700 = vadd.f32 0.0, %v699
    %v701 = vpop.f32.mrf.mxu0
    %702 = vdwg.mxu0
    %703 = vrot.lane.b32.xlu0 %v280, 120
    %v704 = vpop.permute.xlu0 %703
    %705 = vrot.lane.b32.xlu0 %v285, 120
    %v706 = vpop.permute.xlu0 %705
    %707 = vrot.lane.b32.xlu0 %v280, 88
    %v708 = vpop.permute.xlu0 %707
    %709 = vrot.lane.b32.xlu0 %v285, 88
    %v710 = vpop.permute.xlu0 %709
    %v711 = vsel %vm90, %v704, 0
    %v713 = vsel %vm90, %v706, 0
    %v715 = vsel %vm90, %v708, 0
    %v717 = vsel %vm90, %v710, 0
    %719 = vmatprep.subr.mxu0 0.0
    %720 = vmatpush1.xpose.msra.mxu0 0.0
    %721 = vmatprep.subr.mxu0 0.0
    %722 = vmatpush1.xpose.msra.mxu0 0.0
    %723 = vmatprep.subr.mxu0 0.0
    %724 = vmatpush1.xpose.msra.mxu0 0.0
    %725 = vmatprep.subr.mxu0 0.0
    %726 = vmatpush1.xpose.msra.mxu0 0.0
    %727 = vmatprep.subr.mxu0 0.0
    %728 = vmatpush1.xpose.msra.mxu0 0.0
    %729 = vmatprep.subr.mxu0 0.0
    %730 = vmatpush1.xpose.msra.mxu0 0.0
    %731 = vmatprep.subr.mxu0 0.0
    %732 = vmatpush1.xpose.msra.mxu0 0.0
    %733 = vmatprep.subr.mxu0 0.0
    %734 = vmatpush1.xpose.msra.mxu0 0.0
    %735 = vmatprep.subr.mxu0 0.0
    %736 = vmatpush1.xpose.msra.mxu0 0.0
    %737 = vmatprep.subr.mxu0 0.0
    %738 = vmatpush1.xpose.msra.mxu0 0.0
    %739 = vmatprep.subr.mxu0 0.0
    %740 = vmatpush1.xpose.msra.mxu0 0.0
    %741 = vmatprep.subr.mxu0 0.0
    %742 = vmatpush1.xpose.msra.mxu0 0.0
    %743 = vmatprep.subr.mxu0 0.0
    %744 = vmatpush1.xpose.msra.mxu0 0.0
    %745 = vmatprep.subr.mxu0 0.0
    %746 = vmatpush1.xpose.msra.mxu0 0.0
    %747 = vmatprep.subr.mxu0 0.0
    %748 = vmatpush1.xpose.msra.mxu0 %v717
    %749 = vmatprep.subr.mxu0 0.0
    %750 = vmatpush1.xpose.msra.mxu0 %v715
    %751 = vmatprep.subr.mxu0 0.0
    %752 = vmatpush2.xpose.msra.mxu0 0.0
    %753 = vmatprep.subr.mxu0 0.0
    %754 = vmatpush2.xpose.msra.mxu0 0.0
    %755 = vmatprep.subr.mxu0 0.0
    %756 = vmatpush2.xpose.msra.mxu0 0.0
    %757 = vmatprep.subr.mxu0 0.0
    %758 = vmatpush2.xpose.msra.mxu0 0.0
    %759 = vmatprep.subr.mxu0 0.0
    %760 = vmatpush2.xpose.msra.mxu0 0.0
    %761 = vmatprep.subr.mxu0 0.0
    %762 = vmatpush2.xpose.msra.mxu0 0.0
    %763 = vmatprep.subr.mxu0 0.0
    %764 = vmatpush2.xpose.msra.mxu0 0.0
    %765 = vmatprep.subr.mxu0 0.0
    %766 = vmatpush2.xpose.msra.mxu0 0.0
    %767 = vmatprep.subr.mxu0 0.0
    %768 = vmatpush2.xpose.msra.mxu0 0.0
    %769 = vmatprep.subr.mxu0 0.0
    %770 = vmatpush2.xpose.msra.mxu0 0.0
    %771 = vmatprep.subr.mxu0 0.0
    %772 = vmatpush2.xpose.msra.mxu0 0.0
    %773 = vmatprep.subr.mxu0 0.0
    %774 = vmatpush2.xpose.msra.mxu0 0.0
    %775 = vmatprep.subr.mxu0 0.0
    %776 = vmatpush2.xpose.msra.mxu0 0.0
    %777 = vmatprep.subr.mxu0 0.0
    %778 = vmatpush2.xpose.msra.mxu0 0.0
    %779 = vmatprep.subr.mxu0 0.0
    %780 = vmatpush2.xpose.msra.mxu0 0.0
    %781 = vmatprep.subr.mxu0 0.0
    %782 = vmatpush2.xpose.msra.mxu0 0.0
    %783 = vmatprep.mubr.f32.mxu0 0.0
    %784 = vmatmul.mubr.f32.gmra.mxu0 %v711
    %v785 = vpop.f32.mrf.mxu0
    %v786 = vadd.f32 0.0, %v785
    %v787 = vpop.f32.mrf.mxu0
    %788 = vmatprep.mubr.f32.mxu0 0.0
    %789 = vmatmul.mubr.f32.gmra.mxu0 %v713
    %v790 = vpop.f32.mrf.mxu0
    %v791 = vadd.f32 0.0, %v790
    %v792 = vpop.f32.mrf.mxu0
    %793 = vdwg.mxu0
    %794 = vrot.lane.b32.xlu0 %v290, 120
    %v795 = vpop.permute.xlu0 %794
    %796 = vrot.lane.b32.xlu0 %v295, 120
    %v797 = vpop.permute.xlu0 %796
    %798 = vrot.lane.b32.xlu0 %v290, 88
    %v799 = vpop.permute.xlu0 %798
    %800 = vrot.lane.b32.xlu0 %v295, 88
    %v801 = vpop.permute.xlu0 %800
    %v802 = vsel %vm90, %v795, 0
    %v804 = vsel %vm90, %v797, 0
    %v806 = vsel %vm90, %v799, 0
    %v808 = vsel %vm90, %v801, 0
    %810 = vmatprep.subr.mxu0 0.0
    %811 = vmatpush1.xpose.msra.mxu0 0.0
    %812 = vmatprep.subr.mxu0 0.0
    %813 = vmatpush1.xpose.msra.mxu0 0.0
    %814 = vmatprep.subr.mxu0 0.0
    %815 = vmatpush1.xpose.msra.mxu0 0.0
    %816 = vmatprep.subr.mxu0 0.0
    %817 = vmatpush1.xpose.msra.mxu0 0.0
    %818 = vmatprep.subr.mxu0 0.0
    %819 = vmatpush1.xpose.msra.mxu0 0.0
    %820 = vmatprep.subr.mxu0 0.0
    %821 = vmatpush1.xpose.msra.mxu0 0.0
    %822 = vmatprep.subr.mxu0 0.0
    %823 = vmatpush1.xpose.msra.mxu0 0.0
    %824 = vmatprep.subr.mxu0 0.0
    %825 = vmatpush1.xpose.msra.mxu0 0.0
    %826 = vmatprep.subr.mxu0 0.0
    %827 = vmatpush1.xpose.msra.mxu0 0.0
    %828 = vmatprep.subr.mxu0 0.0
    %829 = vmatpush1.xpose.msra.mxu0 0.0
    %830 = vmatprep.subr.mxu0 0.0
    %831 = vmatpush1.xpose.msra.mxu0 0.0
    %832 = vmatprep.subr.mxu0 0.0
    %833 = vmatpush1.xpose.msra.mxu0 0.0
    %834 = vmatprep.subr.mxu0 0.0
    %835 = vmatpush1.xpose.msra.mxu0 0.0
    %836 = vmatprep.subr.mxu0 0.0
    %837 = vmatpush1.xpose.msra.mxu0 0.0
    %838 = vmatprep.subr.mxu0 0.0
    %839 = vmatpush1.xpose.msra.mxu0 %v808
    %840 = vmatprep.subr.mxu0 0.0
    %841 = vmatpush1.xpose.msra.mxu0 %v806
    %842 = vmatprep.subr.mxu0 0.0
    %843 = vmatpush2.xpose.msra.mxu0 0.0
    %844 = vmatprep.subr.mxu0 0.0
    %845 = vmatpush2.xpose.msra.mxu0 0.0
    %846 = vmatprep.subr.mxu0 0.0
    %847 = vmatpush2.xpose.msra.mxu0 0.0
    %848 = vmatprep.subr.mxu0 0.0
    %849 = vmatpush2.xpose.msra.mxu0 0.0
    %850 = vmatprep.subr.mxu0 0.0
    %851 = vmatpush2.xpose.msra.mxu0 0.0
    %852 = vmatprep.subr.mxu0 0.0
    %853 = vmatpush2.xpose.msra.mxu0 0.0
    %854 = vmatprep.subr.mxu0 0.0
    %855 = vmatpush2.xpose.msra.mxu0 0.0
    %856 = vmatprep.subr.mxu0 0.0
    %857 = vmatpush2.xpose.msra.mxu0 0.0
    %858 = vmatprep.subr.mxu0 0.0
    %859 = vmatpush2.xpose.msra.mxu0 0.0
    %860 = vmatprep.subr.mxu0 0.0
    %861 = vmatpush2.xpose.msra.mxu0 0.0
    %862 = vmatprep.subr.mxu0 0.0
    %863 = vmatpush2.xpose.msra.mxu0 0.0
    %864 = vmatprep.subr.mxu0 0.0
    %865 = vmatpush2.xpose.msra.mxu0 0.0
    %866 = vmatprep.subr.mxu0 0.0
    %867 = vmatpush2.xpose.msra.mxu0 0.0
    %868 = vmatprep.subr.mxu0 0.0
    %869 = vmatpush2.xpose.msra.mxu0 0.0
    %870 = vmatprep.subr.mxu0 0.0
    %871 = vmatpush2.xpose.msra.mxu0 0.0
    %872 = vmatprep.subr.mxu0 0.0
    %873 = vmatpush2.xpose.msra.mxu0 0.0
    %874 = vmatprep.mubr.f32.mxu0 0.0
    %875 = vmatmul.mubr.f32.gmra.mxu0 %v802
    %v876 = vpop.f32.mrf.mxu0
    %v877 = vadd.f32 0.0, %v876
    %v878 = vpop.f32.mrf.mxu0
    %879 = vmatprep.mubr.f32.mxu0 0.0
    %880 = vmatmul.mubr.f32.gmra.mxu0 %v804
    %v881 = vpop.f32.mrf.mxu0
    %v882 = vadd.f32 0.0, %v881
    %v883 = vpop.f32.mrf.mxu0
    %884 = vdwg.mxu0
    %v885 = vmul.f32 %v786, 0.35355338
    %v886 = vmul.f32 %v791, 0.35355338
    %v887 = vmul.f32 %v877, 0.35355338
    %v888 = vmul.f32 %v882, 0.35355338
    %v889 = vadd.f32 %v885, %v78
    %v890 = vadd.f32 %v886, %v78
    %v891 = vadd.f32 %v887, %v82
    %v892 = vadd.f32 %v888, %v82
    %v893 = vsel %vm484, %v889, -inf
    %894 = vmax.xlane.f32.xlu0 %v893
    %v895 = vpop.xlane.xlu0 %894
    %v896 = vsel %vm484, %v890, -inf
    %897 = vmax.xlane.f32.xlu0 %v896
    %v898 = vpop.xlane.xlu0 %897
    %v899 = vsel %vm484, %v891, -inf
    %900 = vmax.xlane.f32.xlu0 %v899
    %v901 = vpop.xlane.xlu0 %900
    %v902 = vsel %vm484, %v892, -inf
    %903 = vmax.xlane.f32.xlu0 %v902
    %v904 = vpop.xlane.xlu0 %903
    %v905 = vsub.f32 %v889, %v895
    %v906 = vsub.f32 %v890, %v898
    %v907 = vsub.f32 %v891, %v901
    %v908 = vsub.f32 %v892, %v904
    %v909 = vmul.f32 %v905, 1.442695
    %v910 = vpow.pop %v909
    %v911 = vmul.f32 %v906, 1.442695
    %v912 = vpow.pop %v911
    %v913 = vmul.f32 %v907, 1.442695
    %v914 = vpow.pop %v913
    %v915 = vmul.f32 %v908, 1.442695
    %v916 = vpow.pop %v915
    %v917 = vsel %vm484, %v910, 0.0
    %918 = vadd.xlane.f32.xlu0 %v917
    %v919 = vpop.xlane.xlu0 %918
    %v920 = vsel %vm484, %v912, 0.0
    %921 = vadd.xlane.f32.xlu0 %v920
    %v922 = vpop.xlane.xlu0 %921
    %v923 = vsel %vm484, %v914, 0.0
    %924 = vadd.xlane.f32.xlu0 %v923
    %v925 = vpop.xlane.xlu0 %924
    %v926 = vsel %vm484, %v916, 0.0
    %927 = vadd.xlane.f32.xlu0 %v926
    %v928 = vpop.xlane.xlu0 %927
    %v929 = vrcp.pop %v919
    %v930 = vmul.f32 %v910, %v929
    %v931 = vrcp.pop %v922
    %v932 = vmul.f32 %v912, %v931
    %v933 = vrcp.pop %v925
    %v934 = vmul.f32 %v914, %v933
    %v935 = vrcp.pop %v928
    %v936 = vmul.f32 %v916, %v935
    %937 = vrot.lane.b32.xlu0 %v280, 56
    %v938 = vpop.permute.xlu0 %937
    %939 = vrot.lane.b32.xlu0 %v285, 56
    %v940 = vpop.permute.xlu0 %939
    %v944 = vsel %vm484, %v930, 0
    %v947 = vsel %vm484, %v932, 0
    %949 = vmatprep.subr.mxu0 0.0
    %950 = vmatpush1.msra.mxu0 0.0
    %951 = vmatprep.subr.mxu0 0.0
    %952 = vmatpush1.msra.mxu0 0.0
    %953 = vmatprep.subr.mxu0 0.0
    %954 = vmatpush1.msra.mxu0 0.0
    %955 = vmatprep.subr.mxu0 0.0
    %956 = vmatpush1.msra.mxu0 0.0
    %957 = vmatprep.subr.mxu0 0.0
    %958 = vmatpush1.msra.mxu0 0.0
    %959 = vmatprep.subr.mxu0 0.0
    %960 = vmatpush1.msra.mxu0 0.0
    %961 = vmatprep.subr.mxu0 0.0
    %962 = vmatpush1.msra.mxu0 0.0
    %963 = vmatprep.subr.mxu0 0.0
    %964 = vmatpush1.msra.mxu0 0.0
    %965 = vmatprep.subr.mxu0 0.0
    %966 = vmatpush1.msra.mxu0 0.0
    %967 = vmatprep.subr.mxu0 0.0
    %968 = vmatpush1.msra.mxu0 0.0
    %969 = vmatprep.subr.mxu0 0.0
    %970 = vmatpush1.msra.mxu0 0.0
    %971 = vmatprep.subr.mxu0 0.0
    %972 = vmatpush1.msra.mxu0 0.0
    %973 = vmatprep.subr.mxu0 0.0
    %974 = vmatpush1.msra.mxu0 0.0
    %975 = vmatprep.subr.mxu0 0.0
    %976 = vmatpush1.msra.mxu0 0.0
    %977 = vmatprep.subr.mxu0 0.0
    %978 = vmatpush1.msra.mxu0 %v940
    %979 = vmatprep.subr.mxu0 0.0
    %980 = vmatpush1.msra.mxu0 %v938
    %981 = vmatprep.subr.mxu0 0.0
    %982 = vmatpush2.msra.mxu0 0.0
    %983 = vmatprep.subr.mxu0 0.0
    %984 = vmatpush2.msra.mxu0 0.0
    %985 = vmatprep.subr.mxu0 0.0
    %986 = vmatpush2.msra.mxu0 0.0
    %987 = vmatprep.subr.mxu0 0.0
    %988 = vmatpush2.msra.mxu0 0.0
    %989 = vmatprep.subr.mxu0 0.0
    %990 = vmatpush2.msra.mxu0 0.0
    %991 = vmatprep.subr.mxu0 0.0
    %992 = vmatpush2.msra.mxu0 0.0
    %993 = vmatprep.subr.mxu0 0.0
    %994 = vmatpush2.msra.mxu0 0.0
    %995 = vmatprep.subr.mxu0 0.0
    %996 = vmatpush2.msra.mxu0 0.0
    %997 = vmatprep.subr.mxu0 0.0
    %998 = vmatpush2.msra.mxu0 0.0
    %999 = vmatprep.subr.mxu0 0.0
    %1000 = vmatpush2.msra.mxu0 0.0
    %1001 = vmatprep.subr.mxu0 0.0
    %1002 = vmatpush2.msra.mxu0 0.0
    %1003 = vmatprep.subr.mxu0 0.0
    %1004 = vmatpush2.msra.mxu0 0.0
    %1005 = vmatprep.subr.mxu0 0.0
    %1006 = vmatpush2.msra.mxu0 0.0
    %1007 = vmatprep.subr.mxu0 0.0
    %1008 = vmatpush2.msra.mxu0 0.0
    %1009 = vmatprep.subr.mxu0 0.0
    %1010 = vmatpush2.msra.mxu0 0.0
    %1011 = vmatprep.subr.mxu0 0.0
    %1012 = vmatpush2.msra.mxu0 0.0
    %1013 = vmatprep.mubr.f32.mxu0 0.0
    %1014 = vmatmul.mubr.f32.gmra.mxu0 %v944
    %v1015 = vpop.f32.mrf.mxu0
    %v1016 = vadd.f32 0.0, %v1015
    %v1017 = vpop.f32.mrf.mxu0
    %1018 = vmatprep.mubr.f32.mxu0 0.0
    %1019 = vmatmul.mubr.f32.gmra.mxu0 %v947
    %v1020 = vpop.f32.mrf.mxu0
    %v1021 = vadd.f32 0.0, %v1020
    %v1022 = vpop.f32.mrf.mxu0
    %1023 = vdwg.mxu0
    %1024 = vrot.lane.b32.xlu0 %v290, 56
    %v1025 = vpop.permute.xlu0 %1024
    %1026 = vrot.lane.b32.xlu0 %v295, 56
    %v1027 = vpop.permute.xlu0 %1026
    %v1031 = vsel %vm484, %v934, 0
    %v1034 = vsel %vm484, %v936, 0
    %1036 = vmatprep.subr.mxu0 0.0
    %1037 = vmatpush1.msra.mxu0 0.0
    %1038 = vmatprep.subr.mxu0 0.0
    %1039 = vmatpush1.msra.mxu0 0.0
    %1040 = vmatprep.subr.mxu0 0.0
    %1041 = vmatpush1.msra.mxu0 0.0
    %1042 = vmatprep.subr.mxu0 0.0
    %1043 = vmatpush1.msra.mxu0 0.0
    %1044 = vmatprep.subr.mxu0 0.0
    %1045 = vmatpush1.msra.mxu0 0.0
    %1046 = vmatprep.subr.mxu0 0.0
    %1047 = vmatpush1.msra.mxu0 0.0
    %1048 = vmatprep.subr.mxu0 0.0
    %1049 = vmatpush1.msra.mxu0 0.0
    %1050 = vmatprep.subr.mxu0 0.0
    %1051 = vmatpush1.msra.mxu0 0.0
    %1052 = vmatprep.subr.mxu0 0.0
    %1053 = vmatpush1.msra.mxu0 0.0
    %1054 = vmatprep.subr.mxu0 0.0
    %1055 = vmatpush1.msra.mxu0 0.0
    %1056 = vmatprep.subr.mxu0 0.0
    %1057 = vmatpush1.msra.mxu0 0.0
    %1058 = vmatprep.subr.mxu0 0.0
    %1059 = vmatpush1.msra.mxu0 0.0
    %1060 = vmatprep.subr.mxu0 0.0
    %1061 = vmatpush1.msra.mxu0 0.0
    %1062 = vmatprep.subr.mxu0 0.0
    %1063 = vmatpush1.msra.mxu0 0.0
    %1064 = vmatprep.subr.mxu0 0.0
    %1065 = vmatpush1.msra.mxu0 %v1027
    %1066 = vmatprep.subr.mxu0 0.0
    %1067 = vmatpush1.msra.mxu0 %v1025
    %1068 = vmatprep.subr.mxu0 0.0
    %1069 = vmatpush2.msra.mxu0 0.0
    %1070 = vmatprep.subr.mxu0 0.0
    %1071 = vmatpush2.msra.mxu0 0.0
    %1072 = vmatprep.subr.mxu0 0.0
    %1073 = vmatpush2.msra.mxu0 0.0
    %1074 = vmatprep.subr.mxu0 0.0
    %1075 = vmatpush2.msra.mxu0 0.0
    %1076 = vmatprep.subr.mxu0 0.0
    %1077 = vmatpush2.msra.mxu0 0.0
    %1078 = vmatprep.subr.mxu0 0.0
    %1079 = vmatpush2.msra.mxu0 0.0
    %1080 = vmatprep.subr.mxu0 0.0
    %1081 = vmatpush2.msra.mxu0 0.0
    %1082 = vmatprep.subr.mxu0 0.0
    %1083 = vmatpush2.msra.mxu0 0.0
    %1084 = vmatprep.subr.mxu0 0.0
    %1085 = vmatpush2.msra.mxu0 0.0
    %1086 = vmatprep.subr.mxu0 0.0
    %1087 = vmatpush2.msra.mxu0 0.0
    %1088 = vmatprep.subr.mxu0 0.0
    %1089 = vmatpush2.msra.mxu0 0.0
    %1090 = vmatprep.subr.mxu0 0.0
    %1091 = vmatpush2.msra.mxu0 0.0
    %1092 = vmatprep.subr.mxu0 0.0
    %1093 = vmatpush2.msra.mxu0 0.0
    %1094 = vmatprep.subr.mxu0 0.0
    %1095 = vmatpush2.msra.mxu0 0.0
    %1096 = vmatprep.subr.mxu0 0.0
    %1097 = vmatpush2.msra.mxu0 0.0
    %1098 = vmatprep.subr.mxu0 0.0
    %1099 = vmatpush2.msra.mxu0 0.0
    %1100 = vmatprep.mubr.f32.mxu0 0.0
    %1101 = vmatmul.mubr.f32.gmra.mxu0 %v1031
    %v1102 = vpop.f32.mrf.mxu0
    %v1103 = vadd.f32 0.0, %v1102
    %v1104 = vpop.f32.mrf.mxu0
    %1105 = vmatprep.mubr.f32.mxu0 0.0
    %1106 = vmatmul.mubr.f32.gmra.mxu0 %v1034
    %v1107 = vpop.f32.mrf.mxu0
    %v1108 = vadd.f32 0.0, %v1107
    %v1109 = vpop.f32.mrf.mxu0
    %1110 = vdwg.mxu0
    %1111 = vrot.lane.b32.xlu0 %v280, 112
    %v1112 = vpop.permute.xlu0 %1111
    %1113 = vrot.lane.b32.xlu0 %v285, 112
    %v1114 = vpop.permute.xlu0 %1113
    %1115 = vrot.lane.b32.xlu0 %v280, 80
    %v1116 = vpop.permute.xlu0 %1115
    %1117 = vrot.lane.b32.xlu0 %v285, 80
    %v1118 = vpop.permute.xlu0 %1117
    %v1119 = vsel %vm90, %v1112, 0
    %v1121 = vsel %vm90, %v1114, 0
    %v1123 = vsel %vm90, %v1116, 0
    %v1125 = vsel %vm90, %v1118, 0
    %1127 = vmatprep.subr.mxu0 0.0
    %1128 = vmatpush1.xpose.msra.mxu0 0.0
    %1129 = vmatprep.subr.mxu0 0.0
    %1130 = vmatpush1.xpose.msra.mxu0 0.0
    %1131 = vmatprep.subr.mxu0 0.0
    %1132 = vmatpush1.xpose.msra.mxu0 0.0
    %1133 = vmatprep.subr.mxu0 0.0
    %1134 = vmatpush1.xpose.msra.mxu0 0.0
    %1135 = vmatprep.subr.mxu0 0.0
    %1136 = vmatpush1.xpose.msra.mxu0 0.0
    %1137 = vmatprep.subr.mxu0 0.0
    %1138 = vmatpush1.xpose.msra.mxu0 0.0
    %1139 = vmatprep.subr.mxu0 0.0
    %1140 = vmatpush1.xpose.msra.mxu0 0.0
    %1141 = vmatprep.subr.mxu0 0.0
    %1142 = vmatpush1.xpose.msra.mxu0 0.0
    %1143 = vmatprep.subr.mxu0 0.0
    %1144 = vmatpush1.xpose.msra.mxu0 0.0
    %1145 = vmatprep.subr.mxu0 0.0
    %1146 = vmatpush1.xpose.msra.mxu0 0.0
    %1147 = vmatprep.subr.mxu0 0.0
    %1148 = vmatpush1.xpose.msra.mxu0 0.0
    %1149 = vmatprep.subr.mxu0 0.0
    %1150 = vmatpush1.xpose.msra.mxu0 0.0
    %1151 = vmatprep.subr.mxu0 0.0
    %1152 = vmatpush1.xpose.msra.mxu0 0.0
    %1153 = vmatprep.subr.mxu0 0.0
    %1154 = vmatpush1.xpose.msra.mxu0 0.0
    %1155 = vmatprep.subr.mxu0 0.0
    %1156 = vmatpush1.xpose.msra.mxu0 %v1125
    %1157 = vmatprep.subr.mxu0 0.0
    %1158 = vmatpush1.xpose.msra.mxu0 %v1123
    %1159 = vmatprep.subr.mxu0 0.0
    %1160 = vmatpush2.xpose.msra.mxu0 0.0
    %1161 = vmatprep.subr.mxu0 0.0
    %1162 = vmatpush2.xpose.msra.mxu0 0.0
    %1163 = vmatprep.subr.mxu0 0.0
    %1164 = vmatpush2.xpose.msra.mxu0 0.0
    %1165 = vmatprep.subr.mxu0 0.0
    %1166 = vmatpush2.xpose.msra.mxu0 0.0
    %1167 = vmatprep.subr.mxu0 0.0
    %1168 = vmatpush2.xpose.msra.mxu0 0.0
    %1169 = vmatprep.subr.mxu0 0.0
    %1170 = vmatpush2.xpose.msra.mxu0 0.0
    %1171 = vmatprep.subr.mxu0 0.0
    %1172 = vmatpush2.xpose.msra.mxu0 0.0
    %1173 = vmatprep.subr.mxu0 0.0
    %1174 = vmatpush2.xpose.msra.mxu0 0.0
    %1175 = vmatprep.subr.mxu0 0.0
    %1176 = vmatpush2.xpose.msra.mxu0 0.0
    %1177 = vmatprep.subr.mxu0 0.0
    %1178 = vmatpush2.xpose.msra.mxu0 0.0
    %1179 = vmatprep.subr.mxu0 0.0
    %1180 = vmatpush2.xpose.msra.mxu0 0.0
    %1181 = vmatprep.subr.mxu0 0.0
    %1182 = vmatpush2.xpose.msra.mxu0 0.0
    %1183 = vmatprep.subr.mxu0 0.0
    %1184 = vmatpush2.xpose.msra.mxu0 0.0
    %1185 = vmatprep.subr.mxu0 0.0
    %1186 = vmatpush2.xpose.msra.mxu0 0.0
    %1187 = vmatprep.subr.mxu0 0.0
    %1188 = vmatpush2.xpose.msra.mxu0 0.0
    %1189 = vmatprep.subr.mxu0 0.0
    %1190 = vmatpush2.xpose.msra.mxu0 0.0
    %1191 = vmatprep.mubr.f32.mxu0 0.0
    %1192 = vmatmul.mubr.f32.gmra.mxu0 %v1119
    %v1193 = vpop.f32.mrf.mxu0
    %v1194 = vadd.f32 0.0, %v1193
    %v1195 = vpop.f32.mrf.mxu0
    %1196 = vmatprep.mubr.f32.mxu0 0.0
    %1197 = vmatmul.mubr.f32.gmra.mxu0 %v1121
    %v1198 = vpop.f32.mrf.mxu0
    %v1199 = vadd.f32 0.0, %v1198
    %v1200 = vpop.f32.mrf.mxu0
    %1201 = vdwg.mxu0
    %1202 = vrot.lane.b32.xlu0 %v290, 112
    %v1203 = vpop.permute.xlu0 %1202
    %1204 = vrot.lane.b32.xlu0 %v295, 112
    %v1205 = vpop.permute.xlu0 %1204
    %1206 = vrot.lane.b32.xlu0 %v290, 80
    %v1207 = vpop.permute.xlu0 %1206
    %1208 = vrot.lane.b32.xlu0 %v295, 80
    %v1209 = vpop.permute.xlu0 %1208
    %v1210 = vsel %vm90, %v1203, 0
    %v1212 = vsel %vm90, %v1205, 0
    %v1214 = vsel %vm90, %v1207, 0
    %v1216 = vsel %vm90, %v1209, 0
    %1218 = vmatprep.subr.mxu0 0.0
    %1219 = vmatpush1.xpose.msra.mxu0 0.0
    %1220 = vmatprep.subr.mxu0 0.0
    %1221 = vmatpush1.xpose.msra.mxu0 0.0
    %1222 = vmatprep.subr.mxu0 0.0
    %1223 = vmatpush1.xpose.msra.mxu0 0.0
    %1224 = vmatprep.subr.mxu0 0.0
    %1225 = vmatpush1.xpose.msra.mxu0 0.0
    %1226 = vmatprep.subr.mxu0 0.0
    %1227 = vmatpush1.xpose.msra.mxu0 0.0
    %1228 = vmatprep.subr.mxu0 0.0
    %1229 = vmatpush1.xpose.msra.mxu0 0.0
    %1230 = vmatprep.subr.mxu0 0.0
    %1231 = vmatpush1.xpose.msra.mxu0 0.0
    %1232 = vmatprep.subr.mxu0 0.0
    %1233 = vmatpush1.xpose.msra.mxu0 0.0
    %1234 = vmatprep.subr.mxu0 0.0
    %1235 = vmatpush1.xpose.msra.mxu0 0.0
    %1236 = vmatprep.subr.mxu0 0.0
    %1237 = vmatpush1.xpose.msra.mxu0 0.0
    %1238 = vmatprep.subr.mxu0 0.0
    %1239 = vmatpush1.xpose.msra.mxu0 0.0
    %1240 = vmatprep.subr.mxu0 0.0
    %1241 = vmatpush1.xpose.msra.mxu0 0.0
    %1242 = vmatprep.subr.mxu0 0.0
    %1243 = vmatpush1.xpose.msra.mxu0 0.0
    %1244 = vmatprep.subr.mxu0 0.0
    %1245 = vmatpush1.xpose.msra.mxu0 0.0
    %1246 = vmatprep.subr.mxu0 0.0
    %1247 = vmatpush1.xpose.msra.mxu0 %v1216
    %1248 = vmatprep.subr.mxu0 0.0
    %1249 = vmatpush1.xpose.msra.mxu0 %v1214
    %1250 = vmatprep.subr.mxu0 0.0
    %1251 = vmatpush2.xpose.msra.mxu0 0.0
    %1252 = vmatprep.subr.mxu0 0.0
    %1253 = vmatpush2.xpose.msra.mxu0 0.0
    %1254 = vmatprep.subr.mxu0 0.0
    %1255 = vmatpush2.xpose.msra.mxu0 0.0
    %1256 = vmatprep.subr.mxu0 0.0
    %1257 = vmatpush2.xpose.msra.mxu0 0.0
    %1258 = vmatprep.subr.mxu0 0.0
    %1259 = vmatpush2.xpose.msra.mxu0 0.0
    %1260 = vmatprep.subr.mxu0 0.0
    %1261 = vmatpush2.xpose.msra.mxu0 0.0
    %1262 = vmatprep.subr.mxu0 0.0
    %1263 = vmatpush2.xpose.msra.mxu0 0.0
    %1264 = vmatprep.subr.mxu0 0.0
    %1265 = vmatpush2.xpose.msra.mxu0 0.0
    %1266 = vmatprep.subr.mxu0 0.0
    %1267 = vmatpush2.xpose.msra.mxu0 0.0
    %1268 = vmatprep.subr.mxu0 0.0
    %1269 = vmatpush2.xpose.msra.mxu0 0.0
    %1270 = vmatprep.subr.mxu0 0.0
    %1271 = vmatpush2.xpose.msra.mxu0 0.0
    %1272 = vmatprep.subr.mxu0 0.0
    %1273 = vmatpush2.xpose.msra.mxu0 0.0
    %1274 = vmatprep.subr.mxu0 0.0
    %1275 = vmatpush2.xpose.msra.mxu0 0.0
    %1276 = vmatprep.subr.mxu0 0.0
    %1277 = vmatpush2.xpose.msra.mxu0 0.0
    %1278 = vmatprep.subr.mxu0 0.0
    %1279 = vmatpush2.xpose.msra.mxu0 0.0
    %1280 = vmatprep.subr.mxu0 0.0
    %1281 = vmatpush2.xpose.msra.mxu0 0.0
    %1282 = vmatprep.mubr.f32.mxu0 0.0
    %1283 = vmatmul.mubr.f32.gmra.mxu0 %v1210
    %v1284 = vpop.f32.mrf.mxu0
    %v1285 = vadd.f32 0.0, %v1284
    %v1286 = vpop.f32.mrf.mxu0
    %1287 = vmatprep.mubr.f32.mxu0 0.0
    %1288 = vmatmul.mubr.f32.gmra.mxu0 %v1212
    %v1289 = vpop.f32.mrf.mxu0
    %v1290 = vadd.f32 0.0, %v1289
    %v1291 = vpop.f32.mrf.mxu0
    %1292 = vdwg.mxu0
    %v1293 = vmul.f32 %v1194, 0.35355338
    %v1294 = vmul.f32 %v1199, 0.35355338
    %v1295 = vmul.f32 %v1285, 0.35355338
    %v1296 = vmul.f32 %v1290, 0.35355338
    %v1297 = vadd.f32 %v1293, %v78
    %v1298 = vadd.f32 %v1294, %v78
    %v1299 = vadd.f32 %v1295, %v82
    %v1300 = vadd.f32 %v1296, %v82
    %v1301 = vsel %vm484, %v1297, -inf
    %1302 = vmax.xlane.f32.xlu0 %v1301
    %v1303 = vpop.xlane.xlu0 %1302
    %v1304 = vsel %vm484, %v1298, -inf
    %1305 = vmax.xlane.f32.xlu0 %v1304
    %v1306 = vpop.xlane.xlu0 %1305
    %v1307 = vsel %vm484, %v1299, -inf
    %1308 = vmax.xlane.f32.xlu0 %v1307
    %v1309 = vpop.xlane.xlu0 %1308
    %v1310 = vsel %vm484, %v1300, -inf
    %1311 = vmax.xlane.f32.xlu0 %v1310
    %v1312 = vpop.xlane.xlu0 %1311
    %v1313 = vsub.f32 %v1297, %v1303
    %v1314 = vsub.f32 %v1298, %v1306
    %v1315 = vsub.f32 %v1299, %v1309
    %v1316 = vsub.f32 %v1300, %v1312
    %v1317 = vmul.f32 %v1313, 1.442695
    %v1318 = vpow.pop %v1317
    %v1319 = vmul.f32 %v1314, 1.442695
    %v1320 = vpow.pop %v1319
    %v1321 = vmul.f32 %v1315, 1.442695
    %v1322 = vpow.pop %v1321
    %v1323 = vmul.f32 %v1316, 1.442695
    %v1324 = vpow.pop %v1323
    %v1325 = vsel %vm484, %v1318, 0.0
    %1326 = vadd.xlane.f32.xlu0 %v1325
    %v1327 = vpop.xlane.xlu0 %1326
    %v1328 = vsel %vm484, %v1320, 0.0
    %1329 = vadd.xlane.f32.xlu0 %v1328
    %v1330 = vpop.xlane.xlu0 %1329
    %v1331 = vsel %vm484, %v1322, 0.0
    %1332 = vadd.xlane.f32.xlu0 %v1331
    %v1333 = vpop.xlane.xlu0 %1332
    %v1334 = vsel %vm484, %v1324, 0.0
    %1335 = vadd.xlane.f32.xlu0 %v1334
    %v1336 = vpop.xlane.xlu0 %1335
    %v1337 = vrcp.pop %v1327
    %v1338 = vmul.f32 %v1318, %v1337
    %v1339 = vrcp.pop %v1330
    %v1340 = vmul.f32 %v1320, %v1339
    %v1341 = vrcp.pop %v1333
    %v1342 = vmul.f32 %v1322, %v1341
    %v1343 = vrcp.pop %v1336
    %v1344 = vmul.f32 %v1324, %v1343
    %1345 = vrot.lane.b32.xlu0 %v280, 48
    %v1346 = vpop.permute.xlu0 %1345
    %1347 = vrot.lane.b32.xlu0 %v285, 48
    %v1348 = vpop.permute.xlu0 %1347
    %v1352 = vsel %vm484, %v1338, 0
    %v1355 = vsel %vm484, %v1340, 0
    %1357 = vmatprep.subr.mxu0 0.0
    %1358 = vmatpush1.msra.mxu0 0.0
    %1359 = vmatprep.subr.mxu0 0.0
    %1360 = vmatpush1.msra.mxu0 0.0
    %1361 = vmatprep.subr.mxu0 0.0
    %1362 = vmatpush1.msra.mxu0 0.0
    %1363 = vmatprep.subr.mxu0 0.0
    %1364 = vmatpush1.msra.mxu0 0.0
    %1365 = vmatprep.subr.mxu0 0.0
    %1366 = vmatpush1.msra.mxu0 0.0
    %1367 = vmatprep.subr.mxu0 0.0
    %1368 = vmatpush1.msra.mxu0 0.0
    %1369 = vmatprep.subr.mxu0 0.0
    %1370 = vmatpush1.msra.mxu0 0.0
    %1371 = vmatprep.subr.mxu0 0.0
    %1372 = vmatpush1.msra.mxu0 0.0
    %1373 = vmatprep.subr.mxu0 0.0
    %1374 = vmatpush1.msra.mxu0 0.0
    %1375 = vmatprep.subr.mxu0 0.0
    %1376 = vmatpush1.msra.mxu0 0.0
    %1377 = vmatprep.subr.mxu0 0.0
    %1378 = vmatpush1.msra.mxu0 0.0
    %1379 = vmatprep.subr.mxu0 0.0
    %1380 = vmatpush1.msra.mxu0 0.0
    %1381 = vmatprep.subr.mxu0 0.0
    %1382 = vmatpush1.msra.mxu0 0.0
    %1383 = vmatprep.subr.mxu0 0.0
    %1384 = vmatpush1.msra.mxu0 0.0
    %1385 = vmatprep.subr.mxu0 0.0
    %1386 = vmatpush1.msra.mxu0 %v1348
    %1387 = vmatprep.subr.mxu0 0.0
    %1388 = vmatpush1.msra.mxu0 %v1346
    %1389 = vmatprep.subr.mxu0 0.0
    %1390 = vmatpush2.msra.mxu0 0.0
    %1391 = vmatprep.subr.mxu0 0.0
    %1392 = vmatpush2.msra.mxu0 0.0
    %1393 = vmatprep.subr.mxu0 0.0
    %1394 = vmatpush2.msra.mxu0 0.0
    %1395 = vmatprep.subr.mxu0 0.0
    %1396 = vmatpush2.msra.mxu0 0.0
    %1397 = vmatprep.subr.mxu0 0.0
    %1398 = vmatpush2.msra.mxu0 0.0
    %1399 = vmatprep.subr.mxu0 0.0
    %1400 = vmatpush2.msra.mxu0 0.0
    %1401 = vmatprep.subr.mxu0 0.0
    %1402 = vmatpush2.msra.mxu0 0.0
    %1403 = vmatprep.subr.mxu0 0.0
    %1404 = vmatpush2.msra.mxu0 0.0
    %1405 = vmatprep.subr.mxu0 0.0
    %1406 = vmatpush2.msra.mxu0 0.0
    %1407 = vmatprep.subr.mxu0 0.0
    %1408 = vmatpush2.msra.mxu0 0.0
    %1409 = vmatprep.subr.mxu0 0.0
    %1410 = vmatpush2.msra.mxu0 0.0
    %1411 = vmatprep.subr.mxu0 0.0
    %1412 = vmatpush2.msra.mxu0 0.0
    %1413 = vmatprep.subr.mxu0 0.0
    %1414 = vmatpush2.msra.mxu0 0.0
    %1415 = vmatprep.subr.mxu0 0.0
    %1416 = vmatpush2.msra.mxu0 0.0
    %1417 = vmatprep.subr.mxu0 0.0
    %1418 = vmatpush2.msra.mxu0 0.0
    %1419 = vmatprep.subr.mxu0 0.0
    %1420 = vmatpush2.msra.mxu0 0.0
    %1421 = vmatprep.mubr.f32.mxu0 0.0
    %1422 = vmatmul.mubr.f32.gmra.mxu0 %v1352
    %v1423 = vpop.f32.mrf.mxu0
    %v1424 = vadd.f32 0.0, %v1423
    %v1425 = vpop.f32.mrf.mxu0
    %1426 = vmatprep.mubr.f32.mxu0 0.0
    %1427 = vmatmul.mubr.f32.gmra.mxu0 %v1355
    %v1428 = vpop.f32.mrf.mxu0
    %v1429 = vadd.f32 0.0, %v1428
    %v1430 = vpop.f32.mrf.mxu0
    %1431 = vdwg.mxu0
    %1432 = vrot.lane.b32.xlu0 %v290, 48
    %v1433 = vpop.permute.xlu0 %1432
    %1434 = vrot.lane.b32.xlu0 %v295, 48
    %v1435 = vpop.permute.xlu0 %1434
    %v1439 = vsel %vm484, %v1342, 0
    %v1442 = vsel %vm484, %v1344, 0
    %1444 = vmatprep.subr.mxu0 0.0
    %1445 = vmatpush1.msra.mxu0 0.0
    %1446 = vmatprep.subr.mxu0 0.0
    %1447 = vmatpush1.msra.mxu0 0.0
    %1448 = vmatprep.subr.mxu0 0.0
    %1449 = vmatpush1.msra.mxu0 0.0
    %1450 = vmatprep.subr.mxu0 0.0
    %1451 = vmatpush1.msra.mxu0 0.0
    %1452 = vmatprep.subr.mxu0 0.0
    %1453 = vmatpush1.msra.mxu0 0.0
    %1454 = vmatprep.subr.mxu0 0.0
    %1455 = vmatpush1.msra.mxu0 0.0
    %1456 = vmatprep.subr.mxu0 0.0
    %1457 = vmatpush1.msra.mxu0 0.0
    %1458 = vmatprep.subr.mxu0 0.0
    %1459 = vmatpush1.msra.mxu0 0.0
    %1460 = vmatprep.subr.mxu0 0.0
    %1461 = vmatpush1.msra.mxu0 0.0
    %1462 = vmatprep.subr.mxu0 0.0
    %1463 = vmatpush1.msra.mxu0 0.0
    %1464 = vmatprep.subr.mxu0 0.0
    %1465 = vmatpush1.msra.mxu0 0.0
    %1466 = vmatprep.subr.mxu0 0.0
    %1467 = vmatpush1.msra.mxu0 0.0
    %1468 = vmatprep.subr.mxu0 0.0
    %1469 = vmatpush1.msra.mxu0 0.0
    %1470 = vmatprep.subr.mxu0 0.0
    %1471 = vmatpush1.msra.mxu0 0.0
    %1472 = vmatprep.subr.mxu0 0.0
    %1473 = vmatpush1.msra.mxu0 %v1435
    %1474 = vmatprep.subr.mxu0 0.0
    %1475 = vmatpush1.msra.mxu0 %v1433
    %1476 = vmatprep.subr.mxu0 0.0
    %1477 = vmatpush2.msra.mxu0 0.0
    %1478 = vmatprep.subr.mxu0 0.0
    %1479 = vmatpush2.msra.mxu0 0.0
    %1480 = vmatprep.subr.mxu0 0.0
    %1481 = vmatpush2.msra.mxu0 0.0
    %1482 = vmatprep.subr.mxu0 0.0
    %1483 = vmatpush2.msra.mxu0 0.0
    %1484 = vmatprep.subr.mxu0 0.0
    %1485 = vmatpush2.msra.mxu0 0.0
    %1486 = vmatprep.subr.mxu0 0.0
    %1487 = vmatpush2.msra.mxu0 0.0
    %1488 = vmatprep.subr.mxu0 0.0
    %1489 = vmatpush2.msra.mxu0 0.0
    %1490 = vmatprep.subr.mxu0 0.0
    %1491 = vmatpush2.msra.mxu0 0.0
    %1492 = vmatprep.subr.mxu0 0.0
    %1493 = vmatpush2.msra.mxu0 0.0
    %1494 = vmatprep.subr.mxu0 0.0
    %1495 = vmatpush2.msra.mxu0 0.0
    %1496 = vmatprep.subr.mxu0 0.0
    %1497 = vmatpush2.msra.mxu0 0.0
    %1498 = vmatprep.subr.mxu0 0.0
    %1499 = vmatpush2.msra.mxu0 0.0
    %1500 = vmatprep.subr.mxu0 0.0
    %1501 = vmatpush2.msra.mxu0 0.0
    %1502 = vmatprep.subr.mxu0 0.0
    %1503 = vmatpush2.msra.mxu0 0.0
    %1504 = vmatprep.subr.mxu0 0.0
    %1505 = vmatpush2.msra.mxu0 0.0
    %1506 = vmatprep.subr.mxu0 0.0
    %1507 = vmatpush2.msra.mxu0 0.0
    %1508 = vmatprep.mubr.f32.mxu0 0.0
    %1509 = vmatmul.mubr.f32.gmra.mxu0 %v1439
    %v1510 = vpop.f32.mrf.mxu0
    %v1511 = vadd.f32 0.0, %v1510
    %v1512 = vpop.f32.mrf.mxu0
    %1513 = vmatprep.mubr.f32.mxu0 0.0
    %1514 = vmatmul.mubr.f32.gmra.mxu0 %v1442
    %v1515 = vpop.f32.mrf.mxu0
    %v1516 = vadd.f32 0.0, %v1515
    %v1517 = vpop.f32.mrf.mxu0
    %1518 = vdwg.mxu0
    %1519 = vrot.lane.b32.xlu0 %v280, 104
    %v1520 = vpop.permute.xlu0 %1519
    %1521 = vrot.lane.b32.xlu0 %v285, 104
    %v1522 = vpop.permute.xlu0 %1521
    %1523 = vrot.lane.b32.xlu0 %v280, 72
    %v1524 = vpop.permute.xlu0 %1523
    %1525 = vrot.lane.b32.xlu0 %v285, 72
    %v1526 = vpop.permute.xlu0 %1525
    %v1527 = vsel %vm90, %v1520, 0
    %v1529 = vsel %vm90, %v1522, 0
    %v1531 = vsel %vm90, %v1524, 0
    %v1533 = vsel %vm90, %v1526, 0
    %1535 = vmatprep.subr.mxu0 0.0
    %1536 = vmatpush1.xpose.msra.mxu0 0.0
    %1537 = vmatprep.subr.mxu0 0.0
    %1538 = vmatpush1.xpose.msra.mxu0 0.0
    %1539 = vmatprep.subr.mxu0 0.0
    %1540 = vmatpush1.xpose.msra.mxu0 0.0
    %1541 = vmatprep.subr.mxu0 0.0
    %1542 = vmatpush1.xpose.msra.mxu0 0.0
    %1543 = vmatprep.subr.mxu0 0.0
    %1544 = vmatpush1.xpose.msra.mxu0 0.0
    %1545 = vmatprep.subr.mxu0 0.0
    %1546 = vmatpush1.xpose.msra.mxu0 0.0
    %1547 = vmatprep.subr.mxu0 0.0
    %1548 = vmatpush1.xpose.msra.mxu0 0.0
    %1549 = vmatprep.subr.mxu0 0.0
    %1550 = vmatpush1.xpose.msra.mxu0 0.0
    %1551 = vmatprep.subr.mxu0 0.0
    %1552 = vmatpush1.xpose.msra.mxu0 0.0
    %1553 = vmatprep.subr.mxu0 0.0
    %1554 = vmatpush1.xpose.msra.mxu0 0.0
    %1555 = vmatprep.subr.mxu0 0.0
    %1556 = vmatpush1.xpose.msra.mxu0 0.0
    %1557 = vmatprep.subr.mxu0 0.0
    %1558 = vmatpush1.xpose.msra.mxu0 0.0
    %1559 = vmatprep.subr.mxu0 0.0
    %1560 = vmatpush1.xpose.msra.mxu0 0.0
    %1561 = vmatprep.subr.mxu0 0.0
    %1562 = vmatpush1.xpose.msra.mxu0 0.0
    %1563 = vmatprep.subr.mxu0 0.0
    %1564 = vmatpush1.xpose.msra.mxu0 %v1533
    %1565 = vmatprep.subr.mxu0 0.0
    %1566 = vmatpush1.xpose.msra.mxu0 %v1531
    %1567 = vmatprep.subr.mxu0 0.0
    %1568 = vmatpush2.xpose.msra.mxu0 0.0
    %1569 = vmatprep.subr.mxu0 0.0
    %1570 = vmatpush2.xpose.msra.mxu0 0.0
    %1571 = vmatprep.subr.mxu0 0.0
    %1572 = vmatpush2.xpose.msra.mxu0 0.0
    %1573 = vmatprep.subr.mxu0 0.0
    %1574 = vmatpush2.xpose.msra.mxu0 0.0
    %1575 = vmatprep.subr.mxu0 0.0
    %1576 = vmatpush2.xpose.msra.mxu0 0.0
    %1577 = vmatprep.subr.mxu0 0.0
    %1578 = vmatpush2.xpose.msra.mxu0 0.0
    %1579 = vmatprep.subr.mxu0 0.0
    %1580 = vmatpush2.xpose.msra.mxu0 0.0
    %1581 = vmatprep.subr.mxu0 0.0
    %1582 = vmatpush2.xpose.msra.mxu0 0.0
    %1583 = vmatprep.subr.mxu0 0.0
    %1584 = vmatpush2.xpose.msra.mxu0 0.0
    %1585 = vmatprep.subr.mxu0 0.0
    %1586 = vmatpush2.xpose.msra.mxu0 0.0
    %1587 = vmatprep.subr.mxu0 0.0
    %1588 = vmatpush2.xpose.msra.mxu0 0.0
    %1589 = vmatprep.subr.mxu0 0.0
    %1590 = vmatpush2.xpose.msra.mxu0 0.0
    %1591 = vmatprep.subr.mxu0 0.0
    %1592 = vmatpush2.xpose.msra.mxu0 0.0
    %1593 = vmatprep.subr.mxu0 0.0
    %1594 = vmatpush2.xpose.msra.mxu0 0.0
    %1595 = vmatprep.subr.mxu0 0.0
    %1596 = vmatpush2.xpose.msra.mxu0 0.0
    %1597 = vmatprep.subr.mxu0 0.0
    %1598 = vmatpush2.xpose.msra.mxu0 0.0
    %1599 = vmatprep.mubr.f32.mxu0 0.0
    %1600 = vmatmul.mubr.f32.gmra.mxu0 %v1527
    %v1601 = vpop.f32.mrf.mxu0
    %v1602 = vadd.f32 0.0, %v1601
    %v1603 = vpop.f32.mrf.mxu0
    %1604 = vmatprep.mubr.f32.mxu0 0.0
    %1605 = vmatmul.mubr.f32.gmra.mxu0 %v1529
    %v1606 = vpop.f32.mrf.mxu0
    %v1607 = vadd.f32 0.0, %v1606
    %v1608 = vpop.f32.mrf.mxu0
    %1609 = vdwg.mxu0
    %1610 = vrot.lane.b32.xlu0 %v290, 104
    %v1611 = vpop.permute.xlu0 %1610
    %1612 = vrot.lane.b32.xlu0 %v295, 104
    %v1613 = vpop.permute.xlu0 %1612
    %1614 = vrot.lane.b32.xlu0 %v290, 72
    %v1615 = vpop.permute.xlu0 %1614
    %1616 = vrot.lane.b32.xlu0 %v295, 72
    %v1617 = vpop.permute.xlu0 %1616
    %v1618 = vsel %vm90, %v1611, 0
    %v1620 = vsel %vm90, %v1613, 0
    %v1622 = vsel %vm90, %v1615, 0
    %v1624 = vsel %vm90, %v1617, 0
    %1626 = vmatprep.subr.mxu0 0.0
    %1627 = vmatpush1.xpose.msra.mxu0 0.0
    %1628 = vmatprep.subr.mxu0 0.0
    %1629 = vmatpush1.xpose.msra.mxu0 0.0
    %1630 = vmatprep.subr.mxu0 0.0
    %1631 = vmatpush1.xpose.msra.mxu0 0.0
    %1632 = vmatprep.subr.mxu0 0.0
    %1633 = vmatpush1.xpose.msra.mxu0 0.0
    %1634 = vmatprep.subr.mxu0 0.0
    %1635 = vmatpush1.xpose.msra.mxu0 0.0
    %1636 = vmatprep.subr.mxu0 0.0
    %1637 = vmatpush1.xpose.msra.mxu0 0.0
    %1638 = vmatprep.subr.mxu0 0.0
    %1639 = vmatpush1.xpose.msra.mxu0 0.0
    %1640 = vmatprep.subr.mxu0 0.0
    %1641 = vmatpush1.xpose.msra.mxu0 0.0
    %1642 = vmatprep.subr.mxu0 0.0
    %1643 = vmatpush1.xpose.msra.mxu0 0.0
    %1644 = vmatprep.subr.mxu0 0.0
    %1645 = vmatpush1.xpose.msra.mxu0 0.0
    %1646 = vmatprep.subr.mxu0 0.0
    %1647 = vmatpush1.xpose.msra.mxu0 0.0
    %1648 = vmatprep.subr.mxu0 0.0
    %1649 = vmatpush1.xpose.msra.mxu0 0.0
    %1650 = vmatprep.subr.mxu0 0.0
    %1651 = vmatpush1.xpose.msra.mxu0 0.0
    %1652 = vmatprep.subr.mxu0 0.0
    %1653 = vmatpush1.xpose.msra.mxu0 0.0
    %1654 = vmatprep.subr.mxu0 0.0
    %1655 = vmatpush1.xpose.msra.mxu0 %v1624
    %1656 = vmatprep.subr.mxu0 0.0
    %1657 = vmatpush1.xpose.msra.mxu0 %v1622
    %1658 = vmatprep.subr.mxu0 0.0
    %1659 = vmatpush2.xpose.msra.mxu0 0.0
    %1660 = vmatprep.subr.mxu0 0.0
    %1661 = vmatpush2.xpose.msra.mxu0 0.0
    %1662 = vmatprep.subr.mxu0 0.0
    %1663 = vmatpush2.xpose.msra.mxu0 0.0
    %1664 = vmatprep.subr.mxu0 0.0
    %1665 = vmatpush2.xpose.msra.mxu0 0.0
    %1666 = vmatprep.subr.mxu0 0.0
    %1667 = vmatpush2.xpose.msra.mxu0 0.0
    %1668 = vmatprep.subr.mxu0 0.0
    %1669 = vmatpush2.xpose.msra.mxu0 0.0
    %1670 = vmatprep.subr.mxu0 0.0
    %1671 = vmatpush2.xpose.msra.mxu0 0.0
    %1672 = vmatprep.subr.mxu0 0.0
    %1673 = vmatpush2.xpose.msra.mxu0 0.0
    %1674 = vmatprep.subr.mxu0 0.0
    %1675 = vmatpush2.xpose.msra.mxu0 0.0
    %1676 = vmatprep.subr.mxu0 0.0
    %1677 = vmatpush2.xpose.msra.mxu0 0.0
    %1678 = vmatprep.subr.mxu0 0.0
    %1679 = vmatpush2.xpose.msra.mxu0 0.0
    %1680 = vmatprep.subr.mxu0 0.0
    %1681 = vmatpush2.xpose.msra.mxu0 0.0
    %1682 = vmatprep.subr.mxu0 0.0
    %1683 = vmatpush2.xpose.msra.mxu0 0.0
    %1684 = vmatprep.subr.mxu0 0.0
    %1685 = vmatpush2.xpose.msra.mxu0 0.0
    %1686 = vmatprep.subr.mxu0 0.0
    %1687 = vmatpush2.xpose.msra.mxu0 0.0
    %1688 = vmatprep.subr.mxu0 0.0
    %1689 = vmatpush2.xpose.msra.mxu0 0.0
    %1690 = vmatprep.mubr.f32.mxu0 0.0
    %1691 = vmatmul.mubr.f32.gmra.mxu0 %v1618
    %v1692 = vpop.f32.mrf.mxu0
    %v1693 = vadd.f32 0.0, %v1692
    %v1694 = vpop.f32.mrf.mxu0
    %1695 = vmatprep.mubr.f32.mxu0 0.0
    %1696 = vmatmul.mubr.f32.gmra.mxu0 %v1620
    %v1697 = vpop.f32.mrf.mxu0
    %v1698 = vadd.f32 0.0, %v1697
    %v1699 = vpop.f32.mrf.mxu0
    %1700 = vdwg.mxu0
    %v1701 = vmul.f32 %v1602, 0.35355338
    %v1702 = vmul.f32 %v1607, 0.35355338
    %v1703 = vmul.f32 %v1693, 0.35355338
    %v1704 = vmul.f32 %v1698, 0.35355338
    %v1705 = vadd.f32 %v1701, %v78
    %v1706 = vadd.f32 %v1702, %v78
    %v1707 = vadd.f32 %v1703, %v82
    %v1708 = vadd.f32 %v1704, %v82
    %v1709 = vsel %vm484, %v1705, -inf
    %1710 = vmax.xlane.f32.xlu0 %v1709
    %v1711 = vpop.xlane.xlu0 %1710
    %v1712 = vsel %vm484, %v1706, -inf
    %1713 = vmax.xlane.f32.xlu0 %v1712
    %v1714 = vpop.xlane.xlu0 %1713
    %v1715 = vsel %vm484, %v1707, -inf
    %1716 = vmax.xlane.f32.xlu0 %v1715
    %v1717 = vpop.xlane.xlu0 %1716
    %v1718 = vsel %vm484, %v1708, -inf
    %1719 = vmax.xlane.f32.xlu0 %v1718
    %v1720 = vpop.xlane.xlu0 %1719
    %v1721 = vsub.f32 %v1705, %v1711
    %v1722 = vsub.f32 %v1706, %v1714
    %v1723 = vsub.f32 %v1707, %v1717
    %v1724 = vsub.f32 %v1708, %v1720
    %v1725 = vmul.f32 %v1721, 1.442695
    %v1726 = vpow.pop %v1725
    %v1727 = vmul.f32 %v1722, 1.442695
    %v1728 = vpow.pop %v1727
    %v1729 = vmul.f32 %v1723, 1.442695
    %v1730 = vpow.pop %v1729
    %v1731 = vmul.f32 %v1724, 1.442695
    %v1732 = vpow.pop %v1731
    %v1733 = vsel %vm484, %v1726, 0.0
    %1734 = vadd.xlane.f32.xlu0 %v1733
    %v1735 = vpop.xlane.xlu0 %1734
    %v1736 = vsel %vm484, %v1728, 0.0
    %1737 = vadd.xlane.f32.xlu0 %v1736
    %v1738 = vpop.xlane.xlu0 %1737
    %v1739 = vsel %vm484, %v1730, 0.0
    %1740 = vadd.xlane.f32.xlu0 %v1739
    %v1741 = vpop.xlane.xlu0 %1740
    %v1742 = vsel %vm484, %v1732, 0.0
    %1743 = vadd.xlane.f32.xlu0 %v1742
    %v1744 = vpop.xlane.xlu0 %1743
    %v1745 = vrcp.pop %v1735
    %v1746 = vmul.f32 %v1726, %v1745
    %v1747 = vrcp.pop %v1738
    %v1748 = vmul.f32 %v1728, %v1747
    %v1749 = vrcp.pop %v1741
    %v1750 = vmul.f32 %v1730, %v1749
    %v1751 = vrcp.pop %v1744
    %v1752 = vmul.f32 %v1732, %v1751
    %1753 = vrot.lane.b32.xlu0 %v280, 40
    %v1754 = vpop.permute.xlu0 %1753
    %1755 = vrot.lane.b32.xlu0 %v285, 40
    %v1756 = vpop.permute.xlu0 %1755
    %v1760 = vsel %vm484, %v1746, 0
    %v1763 = vsel %vm484, %v1748, 0
    %1765 = vmatprep.subr.mxu0 0.0
    %1766 = vmatpush1.msra.mxu0 0.0
    %1767 = vmatprep.subr.mxu0 0.0
    %1768 = vmatpush1.msra.mxu0 0.0
    %1769 = vmatprep.subr.mxu0 0.0
    %1770 = vmatpush1.msra.mxu0 0.0
    %1771 = vmatprep.subr.mxu0 0.0
    %1772 = vmatpush1.msra.mxu0 0.0
    %1773 = vmatprep.subr.mxu0 0.0
    %1774 = vmatpush1.msra.mxu0 0.0
    %1775 = vmatprep.subr.mxu0 0.0
    %1776 = vmatpush1.msra.mxu0 0.0
    %1777 = vmatprep.subr.mxu0 0.0
    %1778 = vmatpush1.msra.mxu0 0.0
    %1779 = vmatprep.subr.mxu0 0.0
    %1780 = vmatpush1.msra.mxu0 0.0
    %1781 = vmatprep.subr.mxu0 0.0
    %1782 = vmatpush1.msra.mxu0 0.0
    %1783 = vmatprep.subr.mxu0 0.0
    %1784 = vmatpush1.msra.mxu0 0.0
    %1785 = vmatprep.subr.mxu0 0.0
    %1786 = vmatpush1.msra.mxu0 0.0
    %1787 = vmatprep.subr.mxu0 0.0
    %1788 = vmatpush1.msra.mxu0 0.0
    %1789 = vmatprep.subr.mxu0 0.0
    %1790 = vmatpush1.msra.mxu0 0.0
    %1791 = vmatprep.subr.mxu0 0.0
    %1792 = vmatpush1.msra.mxu0 0.0
    %1793 = vmatprep.subr.mxu0 0.0
    %1794 = vmatpush1.msra.mxu0 %v1756
    %1795 = vmatprep.subr.mxu0 0.0
    %1796 = vmatpush1.msra.mxu0 %v1754
    %1797 = vmatprep.subr.mxu0 0.0
    %1798 = vmatpush2.msra.mxu0 0.0
    %1799 = vmatprep.subr.mxu0 0.0
    %1800 = vmatpush2.msra.mxu0 0.0
    %1801 = vmatprep.subr.mxu0 0.0
    %1802 = vmatpush2.msra.mxu0 0.0
    %1803 = vmatprep.subr.mxu0 0.0
    %1804 = vmatpush2.msra.mxu0 0.0
    %1805 = vmatprep.subr.mxu0 0.0
    %1806 = vmatpush2.msra.mxu0 0.0
    %1807 = vmatprep.subr.mxu0 0.0
    %1808 = vmatpush2.msra.mxu0 0.0
    %1809 = vmatprep.subr.mxu0 0.0
    %1810 = vmatpush2.msra.mxu0 0.0
    %1811 = vmatprep.subr.mxu0 0.0
    %1812 = vmatpush2.msra.mxu0 0.0
    %1813 = vmatprep.subr.mxu0 0.0
    %1814 = vmatpush2.msra.mxu0 0.0
    %1815 = vmatprep.subr.mxu0 0.0
    %1816 = vmatpush2.msra.mxu0 0.0
    %1817 = vmatprep.subr.mxu0 0.0
    %1818 = vmatpush2.msra.mxu0 0.0
    %1819 = vmatprep.subr.mxu0 0.0
    %1820 = vmatpush2.msra.mxu0 0.0
    %1821 = vmatprep.subr.mxu0 0.0
    %1822 = vmatpush2.msra.mxu0 0.0
    %1823 = vmatprep.subr.mxu0 0.0
    %1824 = vmatpush2.msra.mxu0 0.0
    %1825 = vmatprep.subr.mxu0 0.0
    %1826 = vmatpush2.msra.mxu0 0.0
    %1827 = vmatprep.subr.mxu0 0.0
    %1828 = vmatpush2.msra.mxu0 0.0
    %1829 = vmatprep.mubr.f32.mxu0 0.0
    %1830 = vmatmul.mubr.f32.gmra.mxu0 %v1760
    %v1831 = vpop.f32.mrf.mxu0
    %v1832 = vadd.f32 0.0, %v1831
    %v1833 = vpop.f32.mrf.mxu0
    %1834 = vmatprep.mubr.f32.mxu0 0.0
    %1835 = vmatmul.mubr.f32.gmra.mxu0 %v1763
    %v1836 = vpop.f32.mrf.mxu0
    %v1837 = vadd.f32 0.0, %v1836
    %v1838 = vpop.f32.mrf.mxu0
    %1839 = vdwg.mxu0
    %1840 = vrot.lane.b32.xlu0 %v290, 40
    %v1841 = vpop.permute.xlu0 %1840
    %1842 = vrot.lane.b32.xlu0 %v295, 40
    %v1843 = vpop.permute.xlu0 %1842
    %v1847 = vsel %vm484, %v1750, 0
    %v1850 = vsel %vm484, %v1752, 0
    %1852 = vmatprep.subr.mxu0 0.0
    %1853 = vmatpush1.msra.mxu0 0.0
    %1854 = vmatprep.subr.mxu0 0.0
    %1855 = vmatpush1.msra.mxu0 0.0
    %1856 = vmatprep.subr.mxu0 0.0
    %1857 = vmatpush1.msra.mxu0 0.0
    %1858 = vmatprep.subr.mxu0 0.0
    %1859 = vmatpush1.msra.mxu0 0.0
    %1860 = vmatprep.subr.mxu0 0.0
    %1861 = vmatpush1.msra.mxu0 0.0
    %1862 = vmatprep.subr.mxu0 0.0
    %1863 = vmatpush1.msra.mxu0 0.0
    %1864 = vmatprep.subr.mxu0 0.0
    %1865 = vmatpush1.msra.mxu0 0.0
    %1866 = vmatprep.subr.mxu0 0.0
    %1867 = vmatpush1.msra.mxu0 0.0
    %1868 = vmatprep.subr.mxu0 0.0
    %1869 = vmatpush1.msra.mxu0 0.0
    %1870 = vmatprep.subr.mxu0 0.0
    %1871 = vmatpush1.msra.mxu0 0.0
    %1872 = vmatprep.subr.mxu0 0.0
    %1873 = vmatpush1.msra.mxu0 0.0
    %1874 = vmatprep.subr.mxu0 0.0
    %1875 = vmatpush1.msra.mxu0 0.0
    %1876 = vmatprep.subr.mxu0 0.0
    %1877 = vmatpush1.msra.mxu0 0.0
    %1878 = vmatprep.subr.mxu0 0.0
    %1879 = vmatpush1.msra.mxu0 0.0
    %1880 = vmatprep.subr.mxu0 0.0
    %1881 = vmatpush1.msra.mxu0 %v1843
    %1882 = vmatprep.subr.mxu0 0.0
    %1883 = vmatpush1.msra.mxu0 %v1841
    %1884 = vmatprep.subr.mxu0 0.0
    %1885 = vmatpush2.msra.mxu0 0.0
    %1886 = vmatprep.subr.mxu0 0.0
    %1887 = vmatpush2.msra.mxu0 0.0
    %1888 = vmatprep.subr.mxu0 0.0
    %1889 = vmatpush2.msra.mxu0 0.0
    %1890 = vmatprep.subr.mxu0 0.0
    %1891 = vmatpush2.msra.mxu0 0.0
    %1892 = vmatprep.subr.mxu0 0.0
    %1893 = vmatpush2.msra.mxu0 0.0
    %1894 = vmatprep.subr.mxu0 0.0
    %1895 = vmatpush2.msra.mxu0 0.0
    %1896 = vmatprep.subr.mxu0 0.0
    %1897 = vmatpush2.msra.mxu0 0.0
    %1898 = vmatprep.subr.mxu0 0.0
    %1899 = vmatpush2.msra.mxu0 0.0
    %1900 = vmatprep.subr.mxu0 0.0
    %1901 = vmatpush2.msra.mxu0 0.0
    %1902 = vmatprep.subr.mxu0 0.0
    %1903 = vmatpush2.msra.mxu0 0.0
    %1904 = vmatprep.subr.mxu0 0.0
    %1905 = vmatpush2.msra.mxu0 0.0
    %1906 = vmatprep.subr.mxu0 0.0
    %1907 = vmatpush2.msra.mxu0 0.0
    %1908 = vmatprep.subr.mxu0 0.0
    %1909 = vmatpush2.msra.mxu0 0.0
    %1910 = vmatprep.subr.mxu0 0.0
    %1911 = vmatpush2.msra.mxu0 0.0
    %1912 = vmatprep.subr.mxu0 0.0
    %1913 = vmatpush2.msra.mxu0 0.0
    %1914 = vmatprep.subr.mxu0 0.0
    %1915 = vmatpush2.msra.mxu0 0.0
    %1916 = vmatprep.mubr.f32.mxu0 0.0
    %1917 = vmatmul.mubr.f32.gmra.mxu0 %v1847
    %v1918 = vpop.f32.mrf.mxu0
    %v1919 = vadd.f32 0.0, %v1918
    %v1920 = vpop.f32.mrf.mxu0
    %1921 = vmatprep.mubr.f32.mxu0 0.0
    %1922 = vmatmul.mubr.f32.gmra.mxu0 %v1850
    %v1923 = vpop.f32.mrf.mxu0
    %v1924 = vadd.f32 0.0, %v1923
    %v1925 = vpop.f32.mrf.mxu0
    %1926 = vdwg.mxu0
    %1931 = vrot.lane.b32.xlu0 %v1016, 8
    %v1932 = vpop.permute.xlu0 %1931
    %1933 = vrot.lane.b32.xlu0 %v1021, 8
    %v1934 = vpop.permute.xlu0 %1933
    %1935 = vrot.lane.b32.xlu0 %v1103, 8
    %v1936 = vpop.permute.xlu0 %1935
    %1937 = vrot.lane.b32.xlu0 %v1108, 8
    %v1938 = vpop.permute.xlu0 %1937
    %1947 = vrot.lane.b32.xlu0 %v1424, 16
    %v1948 = vpop.permute.xlu0 %1947
    %1949 = vrot.lane.b32.xlu0 %v1429, 16
    %v1950 = vpop.permute.xlu0 %1949
    %1951 = vrot.lane.b32.xlu0 %v1511, 16
    %v1952 = vpop.permute.xlu0 %1951
    %1953 = vrot.lane.b32.xlu0 %v1516, 16
    %v1954 = vpop.permute.xlu0 %1953
    %1963 = vrot.lane.b32.xlu0 %v1832, 24
    %v1964 = vpop.permute.xlu0 %1963
    %1965 = vrot.lane.b32.xlu0 %v1837, 24
    %v1966 = vpop.permute.xlu0 %1965
    %1967 = vrot.lane.b32.xlu0 %v1919, 24
    %v1968 = vpop.permute.xlu0 %1967
    %1969 = vrot.lane.b32.xlu0 %v1924, 24
    %v1970 = vpop.permute.xlu0 %1969
    %v1975 = vsel %vm90, %v608, %v1932
    %v1976 = vsel %vm90, %v613, %v1934
    %v1977 = vsel %vm90, %v695, %v1936
    %v1978 = vsel %vm90, %v700, %v1938
    %v1979 = vsel %vm484, %v1975, %v1948
    %v1980 = vsel %vm484, %v1976, %v1950
    %v1981 = vsel %vm484, %v1977, %v1952
    %v1982 = vsel %vm484, %v1978, %v1954
    %vm1983 = vcmask 195584
    %v1984 = vsel %vm1983, %v1979, %v1964
    %v1985 = vsel %vm1983, %v1980, %v1966
    %v1986 = vsel %vm1983, %v1981, %v1968
    %v1987 = vsel %vm1983, %v1982, %v1970
    %v1988 = vld [vmem:[%s6] sm:$0xff]
    %v1989 = vld [vmem:[%s6 + $0x8] sm:$0xff]
    %v1990 = vld [vmem:[%s6 + $0x10] sm:$0xff]
    %v1991 = vld [vmem:[%s6 + $0x18] sm:$0xff]
    %v1992 = vlaneseq
    %v1993 = vshrl.u32 %v1992, 7
    %v1994 = vsub.s32 0, %v1993
    %v1995 = vrot.slane %v188, %v1994
    %v1997 = vsel %vm200, %v1984, 0
    %v2000 = vsel %vm200, %v1985, 0
    %v2003 = vsel %vm200, %v1986, 0
    %v2006 = vsel %vm200, %v1987, 0
    %2008 = vmatprep.subr.mxu0 0.0
    %2009 = vmatpush1.msra.mxu0 0.0
    %2010 = vmatprep.subr.mxu0 0.0
    %2011 = vmatpush1.msra.mxu0 0.0
    %2012 = vmatprep.subr.mxu0 0.0
    %2013 = vmatpush1.msra.mxu0 0.0
    %2014 = vmatprep.subr.mxu0 0.0
    %2015 = vmatpush1.msra.mxu0 0.0
    %2016 = vmatprep.subr.mxu0 0.0
    %2017 = vmatpush1.msra.mxu0 0.0
    %2018 = vmatprep.subr.mxu0 0.0
    %2019 = vmatpush1.msra.mxu0 0.0
    %2020 = vmatprep.subr.mxu0 0.0
    %2021 = vmatpush1.msra.mxu0 0.0
    %2022 = vmatprep.subr.mxu0 0.0
    %2023 = vmatpush1.msra.mxu0 0.0
    %2024 = vmatprep.subr.mxu0 0.0
    %2025 = vmatpush1.msra.mxu0 0.0
    %2026 = vmatprep.subr.mxu0 0.0
    %2027 = vmatpush1.msra.mxu0 0.0
    %2028 = vmatprep.subr.mxu0 0.0
    %2029 = vmatpush1.msra.mxu0 0.0
    %2030 = vmatprep.subr.mxu0 0.0
    %2031 = vmatpush1.msra.mxu0 0.0
    %2032 = vmatprep.subr.mxu0 0.0
    %2033 = vmatpush1.msra.mxu0 %v1991
    %2034 = vmatprep.subr.mxu0 0.0
    %2035 = vmatpush1.msra.mxu0 %v1990
    %2036 = vmatprep.subr.mxu0 0.0
    %2037 = vmatpush1.msra.mxu0 %v1989
    %2038 = vmatprep.subr.mxu0 0.0
    %2039 = vmatpush1.msra.mxu0 %v1988
    %2040 = vmatprep.subr.mxu0 0.0
    %2041 = vmatpush2.msra.mxu0 0.0
    %2042 = vmatprep.subr.mxu0 0.0
    %2043 = vmatpush2.msra.mxu0 0.0
    %2044 = vmatprep.subr.mxu0 0.0
    %2045 = vmatpush2.msra.mxu0 0.0
    %2046 = vmatprep.subr.mxu0 0.0
    %2047 = vmatpush2.msra.mxu0 0.0
    %2048 = vmatprep.subr.mxu0 0.0
    %2049 = vmatpush2.msra.mxu0 0.0
    %2050 = vmatprep.subr.mxu0 0.0
    %2051 = vmatpush2.msra.mxu0 0.0
    %2052 = vmatprep.subr.mxu0 0.0
    %2053 = vmatpush2.msra.mxu0 0.0
    %2054 = vmatprep.subr.mxu0 0.0
    %2055 = vmatpush2.msra.mxu0 0.0
    %2056 = vmatprep.subr.mxu0 0.0
    %2057 = vmatpush2.msra.mxu0 0.0
    %2058 = vmatprep.subr.mxu0 0.0
    %2059 = vmatpush2.msra.mxu0 0.0
    %2060 = vmatprep.subr.mxu0 0.0
    %2061 = vmatpush2.msra.mxu0 0.0
    %2062 = vmatprep.subr.mxu0 0.0
    %2063 = vmatpush2.msra.mxu0 0.0
    %2064 = vmatprep.subr.mxu0 0.0
    %2065 = vmatpush2.msra.mxu0 0.0
    %2066 = vmatprep.subr.mxu0 0.0
    %2067 = vmatpush2.msra.mxu0 0.0
    %2068 = vmatprep.subr.mxu0 0.0
    %2069 = vmatpush2.msra.mxu0 0.0
    %2070 = vmatprep.subr.mxu0 0.0
    %2071 = vmatpush2.msra.mxu0 0.0
    %2072 = vmatprep.mubr.f32.mxu0 0.0
    %2073 = vmatmul.mubr.f32.gmra.mxu0 %v1997
    %v2074 = vpop.f32.mrf.mxu0
    %v2075 = vadd.f32 %v1995, %v2074
    %v2076 = vpop.f32.mrf.mxu0
    %2077 = vmatprep.mubr.f32.mxu0 0.0
    %2078 = vmatmul.mubr.f32.gmra.mxu0 %v2000
    %v2079 = vpop.f32.mrf.mxu0
    %v2080 = vadd.f32 %v1995, %v2079
    %v2081 = vpop.f32.mrf.mxu0
    %2082 = vmatprep.mubr.f32.mxu0 0.0
    %2083 = vmatmul.mubr.f32.gmra.mxu0 %v2003
    %v2084 = vpop.f32.mrf.mxu0
    %v2085 = vadd.f32 %v1995, %v2084
    %v2086 = vpop.f32.mrf.mxu0
    %2087 = vmatprep.mubr.f32.mxu0 0.0
    %2088 = vmatmul.mubr.f32.gmra.mxu0 %v2006
    %v2089 = vpop.f32.mrf.mxu0
    %v2090 = vadd.f32 %v1995, %v2089
    %v2091 = vpop.f32.mrf.mxu0
    %2092 = vdwg.mxu0
    %v2093 = vadd.f32 %v2075, %v170
    %v2094 = vadd.f32 %v2080, %v175
    %v2095 = vadd.f32 %v2085, %v180
    %v2096 = vadd.f32 %v2090, %v185
    %v2097 = vsel %vm200, %v2093, 0.0
    %2098 = vadd.xlane.f32.xlu0 %v2097
    %v2099 = vpop.xlane.xlu0 %2098
    %v2100 = vsel %vm200, %v2094, 0.0
    %2101 = vadd.xlane.f32.xlu0 %v2100
    %v2102 = vpop.xlane.xlu0 %2101
    %v2103 = vsel %vm200, %v2095, 0.0
    %2104 = vadd.xlane.f32.xlu0 %v2103
    %v2105 = vpop.xlane.xlu0 %2104
    %v2106 = vsel %vm200, %v2096, 0.0
    %2107 = vadd.xlane.f32.xlu0 %v2106
    %v2108 = vpop.xlane.xlu0 %2107
    %v2109 = vrcp.pop 32.0
    %v2110 = vmul.f32 %v2099, %v2109
    %v2111 = vmul.f32 %v2102, %v2109
    %v2112 = vmul.f32 %v2105, %v2109
    %v2113 = vmul.f32 %v2108, %v2109
    %v2114 = vsub.f32 %v2093, %v2110
    %v2115 = vsub.f32 %v2094, %v2111
    %v2116 = vsub.f32 %v2095, %v2112
    %v2117 = vsub.f32 %v2096, %v2113
    %v2118 = vmul.f32 %v2114, %v2114
    %v2119 = vmul.f32 %v2115, %v2115
    %v2120 = vmul.f32 %v2116, %v2116
    %v2121 = vmul.f32 %v2117, %v2117
    %v2122 = vsel %vm200, %v2118, 0.0
    %2123 = vadd.xlane.f32.xlu0 %v2122
    %v2124 = vpop.xlane.xlu0 %2123
    %v2125 = vsel %vm200, %v2119, 0.0
    %2126 = vadd.xlane.f32.xlu0 %v2125
    %v2127 = vpop.xlane.xlu0 %2126
    %v2128 = vsel %vm200, %v2120, 0.0
    %2129 = vadd.xlane.f32.xlu0 %v2128
    %v2130 = vpop.xlane.xlu0 %2129
    %v2131 = vsel %vm200, %v2121, 0.0
    %2132 = vadd.xlane.f32.xlu0 %v2131
    %v2133 = vpop.xlane.xlu0 %2132
    %v2134 = vmul.f32 %v2124, %v2109
    %v2135 = vmul.f32 %v2127, %v2109
    %v2136 = vmul.f32 %v2130, %v2109
    %v2137 = vmul.f32 %v2133, %v2109
    %v2138 = vadd.f32 %v2134, 1e-05
    %v2139 = vadd.f32 %v2135, 1e-05
    %v2140 = vadd.f32 %v2136, 1e-05
    %v2141 = vadd.f32 %v2137, 1e-05
    %v2142 = vrsqrt.pop %v2138
    %v2143 = vrsqrt.pop %v2139
    %v2144 = vrsqrt.pop %v2140
    %v2145 = vrsqrt.pop %v2141
    %v2146 = vmul.f32 %v2114, %v2142
    %v2147 = vmul.f32 %v2115, %v2143
    %v2148 = vmul.f32 %v2116, %v2144
    %v2149 = vmul.f32 %v2117, %v2145
    %v2150 = vlaneseq
    %v2151 = vshrl.u32 %v2150, 7
    %v2152 = vsub.s32 1, %v2151
    %v2153 = vrot.slane %v188, %v2152
    %v2154 = vmul.f32 %v2146, %v2153
    %v2155 = vmul.f32 %v2147, %v2153
    %v2156 = vmul.f32 %v2148, %v2153
    %v2157 = vmul.f32 %v2149, %v2153
    %v2158 = vlaneseq
    %v2159 = vshrl.u32 %v2158, 7
    %v2160 = vsub.s32 2, %v2159
    %v2161 = vrot.slane %v188, %v2160
    %v2162 = vadd.f32 %v2154, %v2161
    %v2163 = vadd.f32 %v2155, %v2161
    %v2164 = vadd.f32 %v2156, %v2161
    %v2165 = vadd.f32 %v2157, %v2161
    %2167 = vset.pattern.permute.xlu0 0
    %2168 = vperm.xlu0 %2167, %v47
    %v2169 = vpop.permute.xlu0 %2168
    %2172 = vset.pattern.permute.xlu0 0
    %2173 = vperm.xlu0 %2172, %v48
    %v2174 = vpop.permute.xlu0 %2173
    %2177 = vset.pattern.permute.xlu0 0
    %2178 = vperm.xlu0 %2177, %v49
    %v2179 = vpop.permute.xlu0 %2178
    %2182 = vset.pattern.permute.xlu0 0
    %2183 = vperm.xlu0 %2182, %v50
    %v2184 = vpop.permute.xlu0 %2183
    %v2186 = vmul.f32 %v2162, %v2169
    %v2187 = vmul.f32 %v2163, %v2174
    %v2188 = vmul.f32 %v2164, %v2179
    %v2189 = vmul.f32 %v2165, %v2184
    %v2190 = vld [vmem:[%s8] sm:$0xff]
    %v2191 = vld [vmem:[%s8 + $0x8] sm:$0xff]
    %v2192 = vld [vmem:[%s8 + $0x10] sm:$0xff]
    %v2193 = vld [vmem:[%s8 + $0x18] sm:$0xff]
    %v2194 = vld [vmem:[%s9] sm:$0x1]
    %v2196 = vlaneseq
    %v2197 = vshrl.u32 %v2196, 7
    %v2198 = vsub.s32 0, %v2197
    %v2199 = vrot.slane %v2194, %v2198
    %v2202 = vsel %vm200, %v2186, 0
    %v2205 = vsel %vm200, %v2187, 0
    %v2208 = vsel %vm200, %v2188, 0
    %v2211 = vsel %vm200, %v2189, 0
    %2213 = vmatprep.subr.mxu0 0.0
    %2214 = vmatpush1.msra.mxu0 0.0
    %2215 = vmatprep.subr.mxu0 0.0
    %2216 = vmatpush1.msra.mxu0 0.0
    %2217 = vmatprep.subr.mxu0 0.0
    %2218 = vmatpush1.msra.mxu0 0.0
    %2219 = vmatprep.subr.mxu0 0.0
    %2220 = vmatpush1.msra.mxu0 0.0
    %2221 = vmatprep.subr.mxu0 0.0
    %2222 = vmatpush1.msra.mxu0 0.0
    %2223 = vmatprep.subr.mxu0 0.0
    %2224 = vmatpush1.msra.mxu0 0.0
    %2225 = vmatprep.subr.mxu0 0.0
    %2226 = vmatpush1.msra.mxu0 0.0
    %2227 = vmatprep.subr.mxu0 0.0
    %2228 = vmatpush1.msra.mxu0 0.0
    %2229 = vmatprep.subr.mxu0 0.0
    %2230 = vmatpush1.msra.mxu0 0.0
    %2231 = vmatprep.subr.mxu0 0.0
    %2232 = vmatpush1.msra.mxu0 0.0
    %2233 = vmatprep.subr.mxu0 0.0
    %2234 = vmatpush1.msra.mxu0 0.0
    %2235 = vmatprep.subr.mxu0 0.0
    %2236 = vmatpush1.msra.mxu0 0.0
    %2237 = vmatprep.subr.mxu0 0.0
    %2238 = vmatpush1.msra.mxu0 %v2193
    %2239 = vmatprep.subr.mxu0 0.0
    %2240 = vmatpush1.msra.mxu0 %v2192
    %2241 = vmatprep.subr.mxu0 0.0
    %2242 = vmatpush1.msra.mxu0 %v2191
    %2243 = vmatprep.subr.mxu0 0.0
    %2244 = vmatpush1.msra.mxu0 %v2190
    %2245 = vmatprep.subr.mxu0 0.0
    %2246 = vmatpush2.msra.mxu0 0.0
    %2247 = vmatprep.subr.mxu0 0.0
    %2248 = vmatpush2.msra.mxu0 0.0
    %2249 = vmatprep.subr.mxu0 0.0
    %2250 = vmatpush2.msra.mxu0 0.0
    %2251 = vmatprep.subr.mxu0 0.0
    %2252 = vmatpush2.msra.mxu0 0.0
    %2253 = vmatprep.subr.mxu0 0.0
    %2254 = vmatpush2.msra.mxu0 0.0
    %2255 = vmatprep.subr.mxu0 0.0
    %2256 = vmatpush2.msra.mxu0 0.0
    %2257 = vmatprep.subr.mxu0 0.0
    %2258 = vmatpush2.msra.mxu0 0.0
    %2259 = vmatprep.subr.mxu0 0.0
    %2260 = vmatpush2.msra.mxu0 0.0
    %2261 = vmatprep.subr.mxu0 0.0
    %2262 = vmatpush2.msra.mxu0 0.0
    %2263 = vmatprep.subr.mxu0 0.0
    %2264 = vmatpush2.msra.mxu0 0.0
    %2265 = vmatprep.subr.mxu0 0.0
    %2266 = vmatpush2.msra.mxu0 0.0
    %2267 = vmatprep.subr.mxu0 0.0
    %2268 = vmatpush2.msra.mxu0 0.0
    %2269 = vmatprep.subr.mxu0 0.0
    %2270 = vmatpush2.msra.mxu0 0.0
    %2271 = vmatprep.subr.mxu0 0.0
    %2272 = vmatpush2.msra.mxu0 0.0
    %2273 = vmatprep.subr.mxu0 0.0
    %2274 = vmatpush2.msra.mxu0 0.0
    %2275 = vmatprep.subr.mxu0 0.0
    %2276 = vmatpush2.msra.mxu0 0.0
    %2277 = vmatprep.mubr.f32.mxu0 0.0
    %2278 = vmatmul.mubr.f32.gmra.mxu0 %v2202
    %v2279 = vpop.f32.mrf.mxu0
    %v2280 = vadd.f32 %v2199, %v2279
    %v2281 = vpop.f32.mrf.mxu0
    %2282 = vmatprep.mubr.f32.mxu0 0.0
    %2283 = vmatmul.mubr.f32.gmra.mxu0 %v2205
    %v2284 = vpop.f32.mrf.mxu0
    %v2285 = vadd.f32 %v2199, %v2284
    %v2286 = vpop.f32.mrf.mxu0
    %2287 = vmatprep.mubr.f32.mxu0 0.0
    %2288 = vmatmul.mubr.f32.gmra.mxu0 %v2208
    %v2289 = vpop.f32.mrf.mxu0
    %v2290 = vadd.f32 %v2199, %v2289
    %v2291 = vpop.f32.mrf.mxu0
    %2292 = vmatprep.mubr.f32.mxu0 0.0
    %2293 = vmatmul.mubr.f32.gmra.mxu0 %v2211
    %v2294 = vpop.f32.mrf.mxu0
    %v2295 = vadd.f32 %v2199, %v2294
    %v2296 = vpop.f32.mrf.mxu0
    %2297 = vdwg.mxu0
    %v2298 = vmax.f32 %v2280, 0.0
    %v2299 = vmax.f32 %v2285, 0.0
    %v2300 = vmax.f32 %v2290, 0.0
    %v2301 = vmax.f32 %v2295, 0.0
    %v2302 = vld [vmem:[%s10] sm:$0xff]
    %v2303 = vld [vmem:[%s10 + $0x8] sm:$0xff]
    %v2304 = vld [vmem:[%s10 + $0x10] sm:$0xff]
    %v2305 = vld [vmem:[%s10 + $0x18] sm:$0xff]
    %v2306 = vld [vmem:[%s10 + $0x20] sm:$0xff]
    %v2307 = vld [vmem:[%s10 + $0x28] sm:$0xff]
    %v2308 = vld [vmem:[%s10 + $0x30] sm:$0xff]
    %v2309 = vld [vmem:[%s10 + $0x38] sm:$0xff]
    %v2310 = vlaneseq
    %v2311 = vshrl.u32 %v2310, 7
    %v2312 = vsub.s32 3, %v2311
    %v2313 = vrot.slane %v188, %v2312
    %vm2314 = vcmask 523264
    %v2316 = vsel %vm2314, %v2298, 0
    %v2319 = vsel %vm2314, %v2299, 0
    %v2322 = vsel %vm2314, %v2300, 0
    %v2325 = vsel %vm2314, %v2301, 0
    %2327 = vmatprep.subr.mxu0 0.0
    %2328 = vmatpush1.msra.mxu0 0.0
    %2329 = vmatprep.subr.mxu0 0.0
    %2330 = vmatpush1.msra.mxu0 0.0
    %2331 = vmatprep.subr.mxu0 0.0
    %2332 = vmatpush1.msra.mxu0 0.0
    %2333 = vmatprep.subr.mxu0 0.0
    %2334 = vmatpush1.msra.mxu0 0.0
    %2335 = vmatprep.subr.mxu0 0.0
    %2336 = vmatpush1.msra.mxu0 0.0
    %2337 = vmatprep.subr.mxu0 0.0
    %2338 = vmatpush1.msra.mxu0 0.0
    %2339 = vmatprep.subr.mxu0 0.0
    %2340 = vmatpush1.msra.mxu0 0.0
    %2341 = vmatprep.subr.mxu0 0.0
    %2342 = vmatpush1.msra.mxu0 0.0
    %2343 = vmatprep.subr.mxu0 0.0
    %2344 = vmatpush1.msra.mxu0 %v2309
    %2345 = vmatprep.subr.mxu0 0.0
    %2346 = vmatpush1.msra.mxu0 %v2308
    %2347 = vmatprep.subr.mxu0 0.0
    %2348 = vmatpush1.msra.mxu0 %v2307
    %2349 = vmatprep.subr.mxu0 0.0
    %2350 = vmatpush1.msra.mxu0 %v2306
    %2351 = vmatprep.subr.mxu0 0.0
    %2352 = vmatpush1.msra.mxu0 %v2305
    %2353 = vmatprep.subr.mxu0 0.0
    %2354 = vmatpush1.msra.mxu0 %v2304
    %2355 = vmatprep.subr.mxu0 0.0
    %2356 = vmatpush1.msra.mxu0 %v2303
    %2357 = vmatprep.subr.mxu0 0.0
    %2358 = vmatpush1.msra.mxu0 %v2302
    %2359 = vmatprep.subr.mxu0 0.0
    %2360 = vmatpush2.msra.mxu0 0.0
    %2361 = vmatprep.subr.mxu0 0.0
    %2362 = vmatpush2.msra.mxu0 0.0
    %2363 = vmatprep.subr.mxu0 0.0
    %2364 = vmatpush2.msra.mxu0 0.0
    %2365 = vmatprep.subr.mxu0 0.0
    %2366 = vmatpush2.msra.mxu0 0.0
    %2367 = vmatprep.subr.mxu0 0.0
    %2368 = vmatpush2.msra.mxu0 0.0
    %2369 = vmatprep.subr.mxu0 0.0
    %2370 = vmatpush2.msra.mxu0 0.0
    %2371 = vmatprep.subr.mxu0 0.0
    %2372 = vmatpush2.msra.mxu0 0.0
    %2373 = vmatprep.subr.mxu0 0.0
    %2374 = vmatpush2.msra.mxu0 0.0
    %2375 = vmatprep.subr.mxu0 0.0
    %2376 = vmatpush2.msra.mxu0 0.0
    %2377 = vmatprep.subr.mxu0 0.0
    %2378 = vmatpush2.msra.mxu0 0.0
    %2379 = vmatprep.subr.mxu0 0.0
    %2380 = vmatpush2.msra.mxu0 0.0
    %2381 = vmatprep.subr.mxu0 0.0
    %2382 = vmatpush2.msra.mxu0 0.0
    %2383 = vmatprep.subr.mxu0 0.0
    %2384 = vmatpush2.msra.mxu0 0.0
    %2385 = vmatprep.subr.mxu0 0.0
    %2386 = vmatpush2.msra.mxu0 0.0
    %2387 = vmatprep.subr.mxu0 0.0
    %2388 = vmatpush2.msra.mxu0 0.0
    %2389 = vmatprep.subr.mxu0 0.0
    %2390 = vmatpush2.msra.mxu0 0.0
    %2391 = vmatprep.mubr.f32.mxu0 0.0
    %2392 = vmatmul.mubr.f32.gmra.mxu0 %v2316
    %v2393 = vpop.f32.mrf.mxu0
    %v2394 = vadd.f32 %v2313, %v2393
    %v2395 = vpop.f32.mrf.mxu0
    %2396 = vmatprep.mubr.f32.mxu0 0.0
    %2397 = vmatmul.mubr.f32.gmra.mxu0 %v2319
    %v2398 = vpop.f32.mrf.mxu0
    %v2399 = vadd.f32 %v2313, %v2398
    %v2400 = vpop.f32.mrf.mxu0
    %2401 = vmatprep.mubr.f32.mxu0 0.0
    %2402 = vmatmul.mubr.f32.gmra.mxu0 %v2322
    %v2403 = vpop.f32.mrf.mxu0
    %v2404 = vadd.f32 %v2313, %v2403
    %v2405 = vpop.f32.mrf.mxu0
    %2406 = vmatprep.mubr.f32.mxu0 0.0
    %2407 = vmatmul.mubr.f32.gmra.mxu0 %v2325
    %v2408 = vpop.f32.mrf.mxu0
    %v2409 = vadd.f32 %v2313, %v2408
    %v2410 = vpop.f32.mrf.mxu0
    %2411 = vdwg.mxu0
    %v2412 = vadd.f32 %v2394, %v2186
    %v2413 = vadd.f32 %v2399, %v2187
    %v2414 = vadd.f32 %v2404, %v2188
    %v2415 = vadd.f32 %v2409, %v2189
    %v2416 = vsel %vm200, %v2412, 0.0
    %2417 = vadd.xlane.f32.xlu0 %v2416
    %v2418 = vpop.xlane.xlu0 %2417
    %v2419 = vsel %vm200, %v2413, 0.0
    %2420 = vadd.xlane.f32.xlu0 %v2419
    %v2421 = vpop.xlane.xlu0 %2420
    %v2422 = vsel %vm200, %v2414, 0.0
    %2423 = vadd.xlane.f32.xlu0 %v2422
    %v2424 = vpop.xlane.xlu0 %2423
    %v2425 = vsel %vm200, %v2415, 0.0
    %2426 = vadd.xlane.f32.xlu0 %v2425
    %v2427 = vpop.xlane.xlu0 %2426
    %v2428 = vmul.f32 %v2418, %v2109
    %v2429 = vmul.f32 %v2421, %v2109
    %v2430 = vmul.f32 %v2424, %v2109
    %v2431 = vmul.f32 %v2427, %v2109
    %v2432 = vsub.f32 %v2412, %v2428
    %v2433 = vsub.f32 %v2413, %v2429
    %v2434 = vsub.f32 %v2414, %v2430
    %v2435 = vsub.f32 %v2415, %v2431
    %v2436 = vmul.f32 %v2432, %v2432
    %v2437 = vmul.f32 %v2433, %v2433
    %v2438 = vmul.f32 %v2434, %v2434
    %v2439 = vmul.f32 %v2435, %v2435
    %v2440 = vsel %vm200, %v2436, 0.0
    %2441 = vadd.xlane.f32.xlu0 %v2440
    %v2442 = vpop.xlane.xlu0 %2441
    %v2443 = vsel %vm200, %v2437, 0.0
    %2444 = vadd.xlane.f32.xlu0 %v2443
    %v2445 = vpop.xlane.xlu0 %2444
    %v2446 = vsel %vm200, %v2438, 0.0
    %2447 = vadd.xlane.f32.xlu0 %v2446
    %v2448 = vpop.xlane.xlu0 %2447
    %v2449 = vsel %vm200, %v2439, 0.0
    %2450 = vadd.xlane.f32.xlu0 %v2449
    %v2451 = vpop.xlane.xlu0 %2450
    %v2452 = vmul.f32 %v2442, %v2109
    %v2453 = vmul.f32 %v2445, %v2109
    %v2454 = vmul.f32 %v2448, %v2109
    %v2455 = vmul.f32 %v2451, %v2109
    %v2456 = vadd.f32 %v2452, 1e-05
    %v2457 = vadd.f32 %v2453, 1e-05
    %v2458 = vadd.f32 %v2454, 1e-05
    %v2459 = vadd.f32 %v2455, 1e-05
    %v2460 = vrsqrt.pop %v2456
    %v2461 = vrsqrt.pop %v2457
    %v2462 = vrsqrt.pop %v2458
    %v2463 = vrsqrt.pop %v2459
    %v2464 = vmul.f32 %v2432, %v2460
    %v2465 = vmul.f32 %v2433, %v2461
    %v2466 = vmul.f32 %v2434, %v2462
    %v2467 = vmul.f32 %v2435, %v2463
    %v2468 = vlaneseq
    %v2469 = vshrl.u32 %v2468, 7
    %v2470 = vsub.s32 4, %v2469
    %v2471 = vrot.slane %v188, %v2470
    %v2472 = vmul.f32 %v2464, %v2471
    %v2473 = vmul.f32 %v2465, %v2471
    %v2474 = vmul.f32 %v2466, %v2471
    %v2475 = vmul.f32 %v2467, %v2471
    %v2476 = vlaneseq
    %v2477 = vshrl.u32 %v2476, 7
    %v2478 = vsub.s32 5, %v2477
    %v2479 = vrot.slane %v188, %v2478
    %v2480 = vadd.f32 %v2472, %v2479
    %v2481 = vadd.f32 %v2473, %v2479
    %v2482 = vadd.f32 %v2474, %v2479
    %v2483 = vadd.f32 %v2475, %v2479
    %v2484 = vmul.f32 %v2480, %v2169
    %v2485 = vmul.f32 %v2481, %v2174
    %v2486 = vmul.f32 %v2482, %v2179
    %v2487 = vmul.f32 %v2483, %v2184
    %s2488 = scalar_lea.vmem %s7, 8
    %v2489 = vld [vmem:[%s2488] sm:$0x3f]
    %s2490 = scalar_lea.vmem %s4, 32
    %v2491 = vld [vmem:[%s2490] sm:$0xff]
    %v2492 = vld [vmem:[%s2490 + $0x8] sm:$0xff]
    %v2493 = vld [vmem:[%s2490 + $0x10] sm:$0xff]
    %v2494 = vld [vmem:[%s2490 + $0x18] sm:$0xff]
    %s2495 = scalar_lea.vmem %s5, 1
    %v2496 = vld [vmem:[%s2495] sm:$0x1]
    %v2498 = vlaneseq
    %v2499 = vshrl.u32 %v2498, 7
    %v2500 = vsub.s32 0, %v2499
    %v2501 = vrot.slane %v2496, %v2500
    %v2504 = vsel %vm200, %v2484, 0
    %v2507 = vsel %vm200, %v2485, 0
    %v2510 = vsel %vm200, %v2486, 0
    %v2513 = vsel %vm200, %v2487, 0
    %2515 = vmatprep.subr.mxu0 0.0
    %2516 = vmatpush1.msra.mxu0 0.0
    %2517 = vmatprep.subr.mxu0 0.0
    %2518 = vmatpush1.msra.mxu0 0.0
    %2519 = vmatprep.subr.mxu0 0.0
    %2520 = vmatpush1.msra.mxu0 0.0
    %2521 = vmatprep.subr.mxu0 0.0
    %2522 = vmatpush1.msra.mxu0 0.0
    %2523 = vmatprep.subr.mxu0 0.0
    %2524 = vmatpush1.msra.mxu0 0.0
    %2525 = vmatprep.subr.mxu0 0.0
    %2526 = vmatpush1.msra.mxu0 0.0
    %2527 = vmatprep.subr.mxu0 0.0
    %2528 = vmatpush1.msra.mxu0 0.0
    %2529 = vmatprep.subr.mxu0 0.0
    %2530 = vmatpush1.msra.mxu0 0.0
    %2531 = vmatprep.subr.mxu0 0.0
    %2532 = vmatpush1.msra.mxu0 0.0
    %2533 = vmatprep.subr.mxu0 0.0
    %2534 = vmatpush1.msra.mxu0 0.0
    %2535 = vmatprep.subr.mxu0 0.0
    %2536 = vmatpush1.msra.mxu0 0.0
    %2537 = vmatprep.subr.mxu0 0.0
    %2538 = vmatpush1.msra.mxu0 0.0
    %2539 = vmatprep.subr.mxu0 0.0
    %2540 = vmatpush1.msra.mxu0 %v2494
    %2541 = vmatprep.subr.mxu0 0.0
    %2542 = vmatpush1.msra.mxu0 %v2493
    %2543 = vmatprep.subr.mxu0 0.0
    %2544 = vmatpush1.msra.mxu0 %v2492
    %2545 = vmatprep.subr.mxu0 0.0
    %2546 = vmatpush1.msra.mxu0 %v2491
    %2547 = vmatprep.subr.mxu0 0.0
    %2548 = vmatpush2.msra.mxu0 0.0
    %2549 = vmatprep.subr.mxu0 0.0
    %2550 = vmatpush2.msra.mxu0 0.0
    %2551 = vmatprep.subr.mxu0 0.0
    %2552 = vmatpush2.msra.mxu0 0.0
    %2553 = vmatprep.subr.mxu0 0.0
    %2554 = vmatpush2.msra.mxu0 0.0
    %2555 = vmatprep.subr.mxu0 0.0
    %2556 = vmatpush2.msra.mxu0 0.0
    %2557 = vmatprep.subr.mxu0 0.0
    %2558 = vmatpush2.msra.mxu0 0.0
    %2559 = vmatprep.subr.mxu0 0.0
    %2560 = vmatpush2.msra.mxu0 0.0
    %2561 = vmatprep.subr.mxu0 0.0
    %2562 = vmatpush2.msra.mxu0 0.0
    %2563 = vmatprep.subr.mxu0 0.0
    %2564 = vmatpush2.msra.mxu0 0.0
    %2565 = vmatprep.subr.mxu0 0.0
    %2566 = vmatpush2.msra.mxu0 0.0
    %2567 = vmatprep.subr.mxu0 0.0
    %2568 = vmatpush2.msra.mxu0 0.0
    %2569 = vmatprep.subr.mxu0 0.0
    %2570 = vmatpush2.msra.mxu0 0.0
    %2571 = vmatprep.subr.mxu0 0.0
    %2572 = vmatpush2.msra.mxu0 0.0
    %2573 = vmatprep.subr.mxu0 0.0
    %2574 = vmatpush2.msra.mxu0 0.0
    %2575 = vmatprep.subr.mxu0 0.0
    %2576 = vmatpush2.msra.mxu0 0.0
    %2577 = vmatprep.subr.mxu0 0.0
    %2578 = vmatpush2.msra.mxu0 0.0
    %2579 = vmatprep.mubr.f32.mxu0 0.0
    %2580 = vmatmul.mubr.f32.gmra.mxu0 %v2504
    %v2581 = vpop.f32.mrf.mxu0
    %v2582 = vadd.f32 %v2501, %v2581
    %v2583 = vpop.f32.mrf.mxu0
    %2584 = vmatprep.mubr.f32.mxu0 0.0
    %2585 = vmatmul.mubr.f32.gmra.mxu0 %v2507
    %v2586 = vpop.f32.mrf.mxu0
    %v2587 = vadd.f32 %v2501, %v2586
    %v2588 = vpop.f32.mrf.mxu0
    %2589 = vmatprep.mubr.f32.mxu0 0.0
    %2590 = vmatmul.mubr.f32.gmra.mxu0 %v2510
    %v2591 = vpop.f32.mrf.mxu0
    %v2592 = vadd.f32 %v2501, %v2591
    %v2593 = vpop.f32.mrf.mxu0
    %2594 = vmatprep.mubr.f32.mxu0 0.0
    %2595 = vmatmul.mubr.f32.gmra.mxu0 %v2513
    %v2596 = vpop.f32.mrf.mxu0
    %v2597 = vadd.f32 %v2501, %v2596
    %v2598 = vpop.f32.mrf.mxu0
    %2599 = vdwg.mxu0
    %2602 = vrot.lane.b32.xlu0 %v2582, 96
    %v2603 = vpop.permute.xlu0 %2602
    %2604 = vrot.lane.b32.xlu0 %v2587, 96
    %v2605 = vpop.permute.xlu0 %2604
    %v2606 = vsel %vm90, %v2582, 0
    %v2608 = vsel %vm90, %v2587, 0
    %v2610 = vsel %vm90, %v2603, 0
    %v2612 = vsel %vm90, %v2605, 0
    %2614 = vmatprep.subr.mxu0 0.0
    %2615 = vmatpush1.xpose.msra.mxu0 0.0
    %2616 = vmatprep.subr.mxu0 0.0
    %2617 = vmatpush1.xpose.msra.mxu0 0.0
    %2618 = vmatprep.subr.mxu0 0.0
    %2619 = vmatpush1.xpose.msra.mxu0 0.0
    %2620 = vmatprep.subr.mxu0 0.0
    %2621 = vmatpush1.xpose.msra.mxu0 0.0
    %2622 = vmatprep.subr.mxu0 0.0
    %2623 = vmatpush1.xpose.msra.mxu0 0.0
    %2624 = vmatprep.subr.mxu0 0.0
    %2625 = vmatpush1.xpose.msra.mxu0 0.0
    %2626 = vmatprep.subr.mxu0 0.0
    %2627 = vmatpush1.xpose.msra.mxu0 0.0
    %2628 = vmatprep.subr.mxu0 0.0
    %2629 = vmatpush1.xpose.msra.mxu0 0.0
    %2630 = vmatprep.subr.mxu0 0.0
    %2631 = vmatpush1.xpose.msra.mxu0 0.0
    %2632 = vmatprep.subr.mxu0 0.0
    %2633 = vmatpush1.xpose.msra.mxu0 0.0
    %2634 = vmatprep.subr.mxu0 0.0
    %2635 = vmatpush1.xpose.msra.mxu0 0.0
    %2636 = vmatprep.subr.mxu0 0.0
    %2637 = vmatpush1.xpose.msra.mxu0 0.0
    %2638 = vmatprep.subr.mxu0 0.0
    %2639 = vmatpush1.xpose.msra.mxu0 0.0
    %2640 = vmatprep.subr.mxu0 0.0
    %2641 = vmatpush1.xpose.msra.mxu0 0.0
    %2642 = vmatprep.subr.mxu0 0.0
    %2643 = vmatpush1.xpose.msra.mxu0 %v2612
    %2644 = vmatprep.subr.mxu0 0.0
    %2645 = vmatpush1.xpose.msra.mxu0 %v2610
    %2646 = vmatprep.subr.mxu0 0.0
    %2647 = vmatpush2.xpose.msra.mxu0 0.0
    %2648 = vmatprep.subr.mxu0 0.0
    %2649 = vmatpush2.xpose.msra.mxu0 0.0
    %2650 = vmatprep.subr.mxu0 0.0
    %2651 = vmatpush2.xpose.msra.mxu0 0.0
    %2652 = vmatprep.subr.mxu0 0.0
    %2653 = vmatpush2.xpose.msra.mxu0 0.0
    %2654 = vmatprep.subr.mxu0 0.0
    %2655 = vmatpush2.xpose.msra.mxu0 0.0
    %2656 = vmatprep.subr.mxu0 0.0
    %2657 = vmatpush2.xpose.msra.mxu0 0.0
    %2658 = vmatprep.subr.mxu0 0.0
    %2659 = vmatpush2.xpose.msra.mxu0 0.0
    %2660 = vmatprep.subr.mxu0 0.0
    %2661 = vmatpush2.xpose.msra.mxu0 0.0
    %2662 = vmatprep.subr.mxu0 0.0
    %2663 = vmatpush2.xpose.msra.mxu0 0.0
    %2664 = vmatprep.subr.mxu0 0.0
    %2665 = vmatpush2.xpose.msra.mxu0 0.0
    %2666 = vmatprep.subr.mxu0 0.0
    %2667 = vmatpush2.xpose.msra.mxu0 0.0
    %2668 = vmatprep.subr.mxu0 0.0
    %2669 = vmatpush2.xpose.msra.mxu0 0.0
    %2670 = vmatprep.subr.mxu0 0.0
    %2671 = vmatpush2.xpose.msra.mxu0 0.0
    %2672 = vmatprep.subr.mxu0 0.0
    %2673 = vmatpush2.xpose.msra.mxu0 0.0
    %2674 = vmatprep.subr.mxu0 0.0
    %2675 = vmatpush2.xpose.msra.mxu0 0.0
    %2676 = vmatprep.subr.mxu0 0.0
    %2677 = vmatpush2.xpose.msra.mxu0 0.0
    %2678 = vmatprep.mubr.f32.mxu0 0.0
    %2679 = vmatmul.mubr.f32.gmra.mxu0 %v2606
    %v2680 = vpop.f32.mrf.mxu0
    %v2681 = vadd.f32 0.0, %v2680
    %v2682 = vpop.f32.mrf.mxu0
    %2683 = vmatprep.mubr.f32.mxu0 0.0
    %2684 = vmatmul.mubr.f32.gmra.mxu0 %v2608
    %v2685 = vpop.f32.mrf.mxu0
    %v2686 = vadd.f32 0.0, %v2685
    %v2687 = vpop.f32.mrf.mxu0
    %2688 = vdwg.mxu0
    %2691 = vrot.lane.b32.xlu0 %v2592, 96
    %v2692 = vpop.permute.xlu0 %2691
    %2693 = vrot.lane.b32.xlu0 %v2597, 96
    %v2694 = vpop.permute.xlu0 %2693
    %v2695 = vsel %vm90, %v2592, 0
    %v2697 = vsel %vm90, %v2597, 0
    %v2699 = vsel %vm90, %v2692, 0
    %v2701 = vsel %vm90, %v2694, 0
    %2703 = vmatprep.subr.mxu0 0.0
    %2704 = vmatpush1.xpose.msra.mxu0 0.0
    %2705 = vmatprep.subr.mxu0 0.0
    %2706 = vmatpush1.xpose.msra.mxu0 0.0
    %2707 = vmatprep.subr.mxu0 0.0
    %2708 = vmatpush1.xpose.msra.mxu0 0.0
    %2709 = vmatprep.subr.mxu0 0.0
    %2710 = vmatpush1.xpose.msra.mxu0 0.0
    %2711 = vmatprep.subr.mxu0 0.0
    %2712 = vmatpush1.xpose.msra.mxu0 0.0
    %2713 = vmatprep.subr.mxu0 0.0
    %2714 = vmatpush1.xpose.msra.mxu0 0.0
    %2715 = vmatprep.subr.mxu0 0.0
    %2716 = vmatpush1.xpose.msra.mxu0 0.0
    %2717 = vmatprep.subr.mxu0 0.0
    %2718 = vmatpush1.xpose.msra.mxu0 0.0
    %2719 = vmatprep.subr.mxu0 0.0
    %2720 = vmatpush1.xpose.msra.mxu0 0.0
    %2721 = vmatprep.subr.mxu0 0.0
    %2722 = vmatpush1.xpose.msra.mxu0 0.0
    %2723 = vmatprep.subr.mxu0 0.0
    %2724 = vmatpush1.xpose.msra.mxu0 0.0
    %2725 = vmatprep.subr.mxu0 0.0
    %2726 = vmatpush1.xpose.msra.mxu0 0.0
    %2727 = vmatprep.subr.mxu0 0.0
    %2728 = vmatpush1.xpose.msra.mxu0 0.0
    %2729 = vmatprep.subr.mxu0 0.0
    %2730 = vmatpush1.xpose.msra.mxu0 0.0
    %2731 = vmatprep.subr.mxu0 0.0
    %2732 = vmatpush1.xpose.msra.mxu0 %v2701
    %2733 = vmatprep.subr.mxu0 0.0
    %2734 = vmatpush1.xpose.msra.mxu0 %v2699
    %2735 = vmatprep.subr.mxu0 0.0
    %2736 = vmatpush2.xpose.msra.mxu0 0.0
    %2737 = vmatprep.subr.mxu0 0.0
    %2738 = vmatpush2.xpose.msra.mxu0 0.0
    %2739 = vmatprep.subr.mxu0 0.0
    %2740 = vmatpush2.xpose.msra.mxu0 0.0
    %2741 = vmatprep.subr.mxu0 0.0
    %2742 = vmatpush2.xpose.msra.mxu0 0.0
    %2743 = vmatprep.subr.mxu0 0.0
    %2744 = vmatpush2.xpose.msra.mxu0 0.0
    %2745 = vmatprep.subr.mxu0 0.0
    %2746 = vmatpush2.xpose.msra.mxu0 0.0
    %2747 = vmatprep.subr.mxu0 0.0
    %2748 = vmatpush2.xpose.msra.mxu0 0.0
    %2749 = vmatprep.subr.mxu0 0.0
    %2750 = vmatpush2.xpose.msra.mxu0 0.0
    %2751 = vmatprep.subr.mxu0 0.0
    %2752 = vmatpush2.xpose.msra.mxu0 0.0
    %2753 = vmatprep.subr.mxu0 0.0
    %2754 = vmatpush2.xpose.msra.mxu0 0.0
    %2755 = vmatprep.subr.mxu0 0.0
    %2756 = vmatpush2.xpose.msra.mxu0 0.0
    %2757 = vmatprep.subr.mxu0 0.0
    %2758 = vmatpush2.xpose.msra.mxu0 0.0
    %2759 = vmatprep.subr.mxu0 0.0
    %2760 = vmatpush2.xpose.msra.mxu0 0.0
    %2761 = vmatprep.subr.mxu0 0.0
    %2762 = vmatpush2.xpose.msra.mxu0 0.0
    %2763 = vmatprep.subr.mxu0 0.0
    %2764 = vmatpush2.xpose.msra.mxu0 0.0
    %2765 = vmatprep.subr.mxu0 0.0
    %2766 = vmatpush2.xpose.msra.mxu0 0.0
    %2767 = vmatprep.mubr.f32.mxu0 0.0
    %2768 = vmatmul.mubr.f32.gmra.mxu0 %v2695
    %v2769 = vpop.f32.mrf.mxu0
    %v2770 = vadd.f32 0.0, %v2769
    %v2771 = vpop.f32.mrf.mxu0
    %2772 = vmatprep.mubr.f32.mxu0 0.0
    %2773 = vmatmul.mubr.f32.gmra.mxu0 %v2697
    %v2774 = vpop.f32.mrf.mxu0
    %v2775 = vadd.f32 0.0, %v2774
    %v2776 = vpop.f32.mrf.mxu0
    %2777 = vdwg.mxu0
    %v2778 = vmul.f32 %v2681, 0.35355338
    %v2779 = vmul.f32 %v2686, 0.35355338
    %v2780 = vmul.f32 %v2770, 0.35355338
    %v2781 = vmul.f32 %v2775, 0.35355338
    %v2782 = vadd.f32 %v2778, %v78
    %v2783 = vadd.f32 %v2779, %v78
    %v2784 = vadd.f32 %v2780, %v82
    %v2785 = vadd.f32 %v2781, %v82
    %v2786 = vsel %vm484, %v2782, -inf
    %2787 = vmax.xlane.f32.xlu0 %v2786
    %v2788 = vpop.xlane.xlu0 %2787
    %v2789 = vsel %vm484, %v2783, -inf
    %2790 = vmax.xlane.f32.xlu0 %v2789
    %v2791 = vpop.xlane.xlu0 %2790
    %v2792 = vsel %vm484, %v2784, -inf
    %2793 = vmax.xlane.f32.xlu0 %v2792
    %v2794 = vpop.xlane.xlu0 %2793
    %v2795 = vsel %vm484, %v2785, -inf
    %2796 = vmax.xlane.f32.xlu0 %v2795
    %v2797 = vpop.xlane.xlu0 %2796
    %v2798 = vsub.f32 %v2782, %v2788
    %v2799 = vsub.f32 %v2783, %v2791
    %v2800 = vsub.f32 %v2784, %v2794
    %v2801 = vsub.f32 %v2785, %v2797
    %v2802 = vmul.f32 %v2798, 1.442695
    %v2803 = vpow.pop %v2802
    %v2804 = vmul.f32 %v2799, 1.442695
    %v2805 = vpow.pop %v2804
    %v2806 = vmul.f32 %v2800, 1.442695
    %v2807 = vpow.pop %v2806
    %v2808 = vmul.f32 %v2801, 1.442695
    %v2809 = vpow.pop %v2808
    %v2810 = vsel %vm484, %v2803, 0.0
    %2811 = vadd.xlane.f32.xlu0 %v2810
    %v2812 = vpop.xlane.xlu0 %2811
    %v2813 = vsel %vm484, %v2805, 0.0
    %2814 = vadd.xlane.f32.xlu0 %v2813
    %v2815 = vpop.xlane.xlu0 %2814
    %v2816 = vsel %vm484, %v2807, 0.0
    %2817 = vadd.xlane.f32.xlu0 %v2816
    %v2818 = vpop.xlane.xlu0 %2817
    %v2819 = vsel %vm484, %v2809, 0.0
    %2820 = vadd.xlane.f32.xlu0 %v2819
    %v2821 = vpop.xlane.xlu0 %2820
    %v2822 = vrcp.pop %v2812
    %v2823 = vmul.f32 %v2803, %v2822
    %v2824 = vrcp.pop %v2815
    %v2825 = vmul.f32 %v2805, %v2824
    %v2826 = vrcp.pop %v2818
    %v2827 = vmul.f32 %v2807, %v2826
    %v2828 = vrcp.pop %v2821
    %v2829 = vmul.f32 %v2809, %v2828
    %2830 = vrot.lane.b32.xlu0 %v2582, 64
    %v2831 = vpop.permute.xlu0 %2830
    %2832 = vrot.lane.b32.xlu0 %v2587, 64
    %v2833 = vpop.permute.xlu0 %2832
    %v2837 = vsel %vm484, %v2823, 0
    %v2840 = vsel %vm484, %v2825, 0
    %2842 = vmatprep.subr.mxu0 0.0
    %2843 = vmatpush1.msra.mxu0 0.0
    %2844 = vmatprep.subr.mxu0 0.0
    %2845 = vmatpush1.msra.mxu0 0.0
    %2846 = vmatprep.subr.mxu0 0.0
    %2847 = vmatpush1.msra.mxu0 0.0
    %2848 = vmatprep.subr.mxu0 0.0
    %2849 = vmatpush1.msra.mxu0 0.0
    %2850 = vmatprep.subr.mxu0 0.0
    %2851 = vmatpush1.msra.mxu0 0.0
    %2852 = vmatprep.subr.mxu0 0.0
    %2853 = vmatpush1.msra.mxu0 0.0
    %2854 = vmatprep.subr.mxu0 0.0
    %2855 = vmatpush1.msra.mxu0 0.0
    %2856 = vmatprep.subr.mxu0 0.0
    %2857 = vmatpush1.msra.mxu0 0.0
    %2858 = vmatprep.subr.mxu0 0.0
    %2859 = vmatpush1.msra.mxu0 0.0
    %2860 = vmatprep.subr.mxu0 0.0
    %2861 = vmatpush1.msra.mxu0 0.0
    %2862 = vmatprep.subr.mxu0 0.0
    %2863 = vmatpush1.msra.mxu0 0.0
    %2864 = vmatprep.subr.mxu0 0.0
    %2865 = vmatpush1.msra.mxu0 0.0
    %2866 = vmatprep.subr.mxu0 0.0
    %2867 = vmatpush1.msra.mxu0 0.0
    %2868 = vmatprep.subr.mxu0 0.0
    %2869 = vmatpush1.msra.mxu0 0.0
    %2870 = vmatprep.subr.mxu0 0.0
    %2871 = vmatpush1.msra.mxu0 %v2833
    %2872 = vmatprep.subr.mxu0 0.0
    %2873 = vmatpush1.msra.mxu0 %v2831
    %2874 = vmatprep.subr.mxu0 0.0
    %2875 = vmatpush2.msra.mxu0 0.0
    %2876 = vmatprep.subr.mxu0 0.0
    %2877 = vmatpush2.msra.mxu0 0.0
    %2878 = vmatprep.subr.mxu0 0.0
    %2879 = vmatpush2.msra.mxu0 0.0
    %2880 = vmatprep.subr.mxu0 0.0
    %2881 = vmatpush2.msra.mxu0 0.0
    %2882 = vmatprep.subr.mxu0 0.0
    %2883 = vmatpush2.msra.mxu0 0.0
    %2884 = vmatprep.subr.mxu0 0.0
    %2885 = vmatpush2.msra.mxu0 0.0
    %2886 = vmatprep.subr.mxu0 0.0
    %2887 = vmatpush2.msra.mxu0 0.0
    %2888 = vmatprep.subr.mxu0 0.0
    %2889 = vmatpush2.msra.mxu0 0.0
    %2890 = vmatprep.subr.mxu0 0.0
    %2891 = vmatpush2.msra.mxu0 0.0
    %2892 = vmatprep.subr.mxu0 0.0
    %2893 = vmatpush2.msra.mxu0 0.0
    %2894 = vmatprep.subr.mxu0 0.0
    %2895 = vmatpush2.msra.mxu0 0.0
    %2896 = vmatprep.subr.mxu0 0.0
    %2897 = vmatpush2.msra.mxu0 0.0
    %2898 = vmatprep.subr.mxu0 0.0
    %2899 = vmatpush2.msra.mxu0 0.0
    %2900 = vmatprep.subr.mxu0 0.0
    %2901 = vmatpush2.msra.mxu0 0.0
    %2902 = vmatprep.subr.mxu0 0.0
    %2903 = vmatpush2.msra.mxu0 0.0
    %2904 = vmatprep.subr.mxu0 0.0
    %2905 = vmatpush2.msra.mxu0 0.0
    %2906 = vmatprep.mubr.f32.mxu0 0.0
    %2907 = vmatmul.mubr.f32.gmra.mxu0 %v2837
    %v2908 = vpop.f32.mrf.mxu0
    %v2909 = vadd.f32 0.0, %v2908
    %v2910 = vpop.f32.mrf.mxu0
    %2911 = vmatprep.mubr.f32.mxu0 0.0
    %2912 = vmatmul.mubr.f32.gmra.mxu0 %v2840
    %v2913 = vpop.f32.mrf.mxu0
    %v2914 = vadd.f32 0.0, %v2913
    %v2915 = vpop.f32.mrf.mxu0
    %2916 = vdwg.mxu0
    %2917 = vrot.lane.b32.xlu0 %v2592, 64
    %v2918 = vpop.permute.xlu0 %2917
    %2919 = vrot.lane.b32.xlu0 %v2597, 64
    %v2920 = vpop.permute.xlu0 %2919
    %v2924 = vsel %vm484, %v2827, 0
    %v2927 = vsel %vm484, %v2829, 0
    %2929 = vmatprep.subr.mxu0 0.0
    %2930 = vmatpush1.msra.mxu0 0.0
    %2931 = vmatprep.subr.mxu0 0.0
    %2932 = vmatpush1.msra.mxu0 0.0
    %2933 = vmatprep.subr.mxu0 0.0
    %2934 = vmatpush1.msra.mxu0 0.0
    %2935 = vmatprep.subr.mxu0 0.0
    %2936 = vmatpush1.msra.mxu0 0.0
    %2937 = vmatprep.subr.mxu0 0.0
    %2938 = vmatpush1.msra.mxu0 0.0
    %2939 = vmatprep.subr.mxu0 0.0
    %2940 = vmatpush1.msra.mxu0 0.0
    %2941 = vmatprep.subr.mxu0 0.0
    %2942 = vmatpush1.msra.mxu0 0.0
    %2943 = vmatprep.subr.mxu0 0.0
    %2944 = vmatpush1.msra.mxu0 0.0
    %2945 = vmatprep.subr.mxu0 0.0
    %2946 = vmatpush1.msra.mxu0 0.0
    %2947 = vmatprep.subr.mxu0 0.0
    %2948 = vmatpush1.msra.mxu0 0.0
    %2949 = vmatprep.subr.mxu0 0.0
    %2950 = vmatpush1.msra.mxu0 0.0
    %2951 = vmatprep.subr.mxu0 0.0
    %2952 = vmatpush1.msra.mxu0 0.0
    %2953 = vmatprep.subr.mxu0 0.0
    %2954 = vmatpush1.msra.mxu0 0.0
    %2955 = vmatprep.subr.mxu0 0.0
    %2956 = vmatpush1.msra.mxu0 0.0
    %2957 = vmatprep.subr.mxu0 0.0
    %2958 = vmatpush1.msra.mxu0 %v2920
    %2959 = vmatprep.subr.mxu0 0.0
    %2960 = vmatpush1.msra.mxu0 %v2918
    %2961 = vmatprep.subr.mxu0 0.0
    %2962 = vmatpush2.msra.mxu0 0.0
    %2963 = vmatprep.subr.mxu0 0.0
    %2964 = vmatpush2.msra.mxu0 0.0
    %2965 = vmatprep.subr.mxu0 0.0
    %2966 = vmatpush2.msra.mxu0 0.0
    %2967 = vmatprep.subr.mxu0 0.0
    %2968 = vmatpush2.msra.mxu0 0.0
    %2969 = vmatprep.subr.mxu0 0.0
    %2970 = vmatpush2.msra.mxu0 0.0
    %2971 = vmatprep.subr.mxu0 0.0
    %2972 = vmatpush2.msra.mxu0 0.0
    %2973 = vmatprep.subr.mxu0 0.0
    %2974 = vmatpush2.msra.mxu0 0.0
    %2975 = vmatprep.subr.mxu0 0.0
    %2976 = vmatpush2.msra.mxu0 0.0
    %2977 = vmatprep.subr.mxu0 0.0
    %2978 = vmatpush2.msra.mxu0 0.0
    %2979 = vmatprep.subr.mxu0 0.0
    %2980 = vmatpush2.msra.mxu0 0.0
    %2981 = vmatprep.subr.mxu0 0.0
    %2982 = vmatpush2.msra.mxu0 0.0
    %2983 = vmatprep.subr.mxu0 0.0
    %2984 = vmatpush2.msra.mxu0 0.0
    %2985 = vmatprep.subr.mxu0 0.0
    %2986 = vmatpush2.msra.mxu0 0.0
    %2987 = vmatprep.subr.mxu0 0.0
    %2988 = vmatpush2.msra.mxu0 0.0
    %2989 = vmatprep.subr.mxu0 0.0
    %2990 = vmatpush2.msra.mxu0 0.0
    %2991 = vmatprep.subr.mxu0 0.0
    %2992 = vmatpush2.msra.mxu0 0.0
    %2993 = vmatprep.mubr.f32.mxu0 0.0
    %2994 = vmatmul.mubr.f32.gmra.mxu0 %v2924
    %v2995 = vpop.f32.mrf.mxu0
    %v2996 = vadd.f32 0.0, %v2995
    %v2997 = vpop.f32.mrf.mxu0
    %2998 = vmatprep.mubr.f32.mxu0 0.0
    %2999 = vmatmul.mubr.f32.gmra.mxu0 %v2927
    %v3000 = vpop.f32.mrf.mxu0
    %v3001 = vadd.f32 0.0, %v3000
    %v3002 = vpop.f32.mrf.mxu0
    %3003 = vdwg.mxu0
    %3004 = vrot.lane.b32.xlu0 %v2582, 120
    %v3005 = vpop.permute.xlu0 %3004
    %3006 = vrot.lane.b32.xlu0 %v2587, 120
    %v3007 = vpop.permute.xlu0 %3006
    %3008 = vrot.lane.b32.xlu0 %v2582, 88
    %v3009 = vpop.permute.xlu0 %3008
    %3010 = vrot.lane.b32.xlu0 %v2587, 88
    %v3011 = vpop.permute.xlu0 %3010
    %v3012 = vsel %vm90, %v3005, 0
    %v3014 = vsel %vm90, %v3007, 0
    %v3016 = vsel %vm90, %v3009, 0
    %v3018 = vsel %vm90, %v3011, 0
    %3020 = vmatprep.subr.mxu0 0.0
    %3021 = vmatpush1.xpose.msra.mxu0 0.0
    %3022 = vmatprep.subr.mxu0 0.0
    %3023 = vmatpush1.xpose.msra.mxu0 0.0
    %3024 = vmatprep.subr.mxu0 0.0
    %3025 = vmatpush1.xpose.msra.mxu0 0.0
    %3026 = vmatprep.subr.mxu0 0.0
    %3027 = vmatpush1.xpose.msra.mxu0 0.0
    %3028 = vmatprep.subr.mxu0 0.0
    %3029 = vmatpush1.xpose.msra.mxu0 0.0
    %3030 = vmatprep.subr.mxu0 0.0
    %3031 = vmatpush1.xpose.msra.mxu0 0.0
    %3032 = vmatprep.subr.mxu0 0.0
    %3033 = vmatpush1.xpose.msra.mxu0 0.0
    %3034 = vmatprep.subr.mxu0 0.0
    %3035 = vmatpush1.xpose.msra.mxu0 0.0
    %3036 = vmatprep.subr.mxu0 0.0
    %3037 = vmatpush1.xpose.msra.mxu0 0.0
    %3038 = vmatprep.subr.mxu0 0.0
    %3039 = vmatpush1.xpose.msra.mxu0 0.0
    %3040 = vmatprep.subr.mxu0 0.0
    %3041 = vmatpush1.xpose.msra.mxu0 0.0
    %3042 = vmatprep.subr.mxu0 0.0
    %3043 = vmatpush1.xpose.msra.mxu0 0.0
    %3044 = vmatprep.subr.mxu0 0.0
    %3045 = vmatpush1.xpose.msra.mxu0 0.0
    %3046 = vmatprep.subr.mxu0 0.0
    %3047 = vmatpush1.xpose.msra.mxu0 0.0
    %3048 = vmatprep.subr.mxu0 0.0
    %3049 = vmatpush1.xpose.msra.mxu0 %v3018
    %3050 = vmatprep.subr.mxu0 0.0
    %3051 = vmatpush1.xpose.msra.mxu0 %v3016
    %3052 = vmatprep.subr.mxu0 0.0
    %3053 = vmatpush2.xpose.msra.mxu0 0.0
    %3054 = vmatprep.subr.mxu0 0.0
    %3055 = vmatpush2.xpose.msra.mxu0 0.0
    %3056 = vmatprep.subr.mxu0 0.0
    %3057 = vmatpush2.xpose.msra.mxu0 0.0
    %3058 = vmatprep.subr.mxu0 0.0
    %3059 = vmatpush2.xpose.msra.mxu0 0.0
    %3060 = vmatprep.subr.mxu0 0.0
    %3061 = vmatpush2.xpose.msra.mxu0 0.0
    %3062 = vmatprep.subr.mxu0 0.0
    %3063 = vmatpush2.xpose.msra.mxu0 0.0
    %3064 = vmatprep.subr.mxu0 0.0
    %3065 = vmatpush2.xpose.msra.mxu0 0.0
    %3066 = vmatprep.subr.mxu0 0.0
    %3067 = vmatpush2.xpose.msra.mxu0 0.0
    %3068 = vmatprep.subr.mxu0 0.0
    %3069 = vmatpush2.xpose.msra.mxu0 0.0
    %3070 = vmatprep.subr.mxu0 0.0
    %3071 = vmatpush2.xpose.msra.mxu0 0.0
    %3072 = vmatprep.subr.mxu0 0.0
    %3073 = vmatpush2.xpose.msra.mxu0 0.0
    %3074 = vmatprep.subr.mxu0 0.0
    %3075 = vmatpush2.xpose.msra.mxu0 0.0
    %3076 = vmatprep.subr.mxu0 0.0
    %3077 = vmatpush2.xpose.msra.mxu0 0.0
    %3078 = vmatprep.subr.mxu0 0.0
    %3079 = vmatpush2.xpose.msra.mxu0 0.0
    %3080 = vmatprep.subr.mxu0 0.0
    %3081 = vmatpush2.xpose.msra.mxu0 0.0
    %3082 = vmatprep.subr.mxu0 0.0
    %3083 = vmatpush2.xpose.msra.mxu0 0.0
    %3084 = vmatprep.mubr.f32.mxu0 0.0
    %3085 = vmatmul.mubr.f32.gmra.mxu0 %v3012
    %v3086 = vpop.f32.mrf.mxu0
    %v3087 = vadd.f32 0.0, %v3086
    %v3088 = vpop.f32.mrf.mxu0
    %3089 = vmatprep.mubr.f32.mxu0 0.0
    %3090 = vmatmul.mubr.f32.gmra.mxu0 %v3014
    %v3091 = vpop.f32.mrf.mxu0
    %v3092 = vadd.f32 0.0, %v3091
    %v3093 = vpop.f32.mrf.mxu0
    %3094 = vdwg.mxu0
    %3095 = vrot.lane.b32.xlu0 %v2592, 120
    %v3096 = vpop.permute.xlu0 %3095
    %3097 = vrot.lane.b32.xlu0 %v2597, 120
    %v3098 = vpop.permute.xlu0 %3097
    %3099 = vrot.lane.b32.xlu0 %v2592, 88
    %v3100 = vpop.permute.xlu0 %3099
    %3101 = vrot.lane.b32.xlu0 %v2597, 88
    %v3102 = vpop.permute.xlu0 %3101
    %v3103 = vsel %vm90, %v3096, 0
    %v3105 = vsel %vm90, %v3098, 0
    %v3107 = vsel %vm90, %v3100, 0
    %v3109 = vsel %vm90, %v3102, 0
    %3111 = vmatprep.subr.mxu0 0.0
    %3112 = vmatpush1.xpose.msra.mxu0 0.0
    %3113 = vmatprep.subr.mxu0 0.0
    %3114 = vmatpush1.xpose.msra.mxu0 0.0
    %3115 = vmatprep.subr.mxu0 0.0
    %3116 = vmatpush1.xpose.msra.mxu0 0.0
    %3117 = vmatprep.subr.mxu0 0.0
    %3118 = vmatpush1.xpose.msra.mxu0 0.0
    %3119 = vmatprep.subr.mxu0 0.0
    %3120 = vmatpush1.xpose.msra.mxu0 0.0
    %3121 = vmatprep.subr.mxu0 0.0
    %3122 = vmatpush1.xpose.msra.mxu0 0.0
    %3123 = vmatprep.subr.mxu0 0.0
    %3124 = vmatpush1.xpose.msra.mxu0 0.0
    %3125 = vmatprep.subr.mxu0 0.0
    %3126 = vmatpush1.xpose.msra.mxu0 0.0
    %3127 = vmatprep.subr.mxu0 0.0
    %3128 = vmatpush1.xpose.msra.mxu0 0.0
    %3129 = vmatprep.subr.mxu0 0.0
    %3130 = vmatpush1.xpose.msra.mxu0 0.0
    %3131 = vmatprep.subr.mxu0 0.0
    %3132 = vmatpush1.xpose.msra.mxu0 0.0
    %3133 = vmatprep.subr.mxu0 0.0
    %3134 = vmatpush1.xpose.msra.mxu0 0.0
    %3135 = vmatprep.subr.mxu0 0.0
    %3136 = vmatpush1.xpose.msra.mxu0 0.0
    %3137 = vmatprep.subr.mxu0 0.0
    %3138 = vmatpush1.xpose.msra.mxu0 0.0
    %3139 = vmatprep.subr.mxu0 0.0
    %3140 = vmatpush1.xpose.msra.mxu0 %v3109
    %3141 = vmatprep.subr.mxu0 0.0
    %3142 = vmatpush1.xpose.msra.mxu0 %v3107
    %3143 = vmatprep.subr.mxu0 0.0
    %3144 = vmatpush2.xpose.msra.mxu0 0.0
    %3145 = vmatprep.subr.mxu0 0.0
    %3146 = vmatpush2.xpose.msra.mxu0 0.0
    %3147 = vmatprep.subr.mxu0 0.0
    %3148 = vmatpush2.xpose.msra.mxu0 0.0
    %3149 = vmatprep.subr.mxu0 0.0
    %3150 = vmatpush2.xpose.msra.mxu0 0.0
    %3151 = vmatprep.subr.mxu0 0.0
    %3152 = vmatpush2.xpose.msra.mxu0 0.0
    %3153 = vmatprep.subr.mxu0 0.0
    %3154 = vmatpush2.xpose.msra.mxu0 0.0
    %3155 = vmatprep.subr.mxu0 0.0
    %3156 = vmatpush2.xpose.msra.mxu0 0.0
    %3157 = vmatprep.subr.mxu0 0.0
    %3158 = vmatpush2.xpose.msra.mxu0 0.0
    %3159 = vmatprep.subr.mxu0 0.0
    %3160 = vmatpush2.xpose.msra.mxu0 0.0
    %3161 = vmatprep.subr.mxu0 0.0
    %3162 = vmatpush2.xpose.msra.mxu0 0.0
    %3163 = vmatprep.subr.mxu0 0.0
    %3164 = vmatpush2.xpose.msra.mxu0 0.0
    %3165 = vmatprep.subr.mxu0 0.0
    %3166 = vmatpush2.xpose.msra.mxu0 0.0
    %3167 = vmatprep.subr.mxu0 0.0
    %3168 = vmatpush2.xpose.msra.mxu0 0.0
    %3169 = vmatprep.subr.mxu0 0.0
    %3170 = vmatpush2.xpose.msra.mxu0 0.0
    %3171 = vmatprep.subr.mxu0 0.0
    %3172 = vmatpush2.xpose.msra.mxu0 0.0
    %3173 = vmatprep.subr.mxu0 0.0
    %3174 = vmatpush2.xpose.msra.mxu0 0.0
    %3175 = vmatprep.mubr.f32.mxu0 0.0
    %3176 = vmatmul.mubr.f32.gmra.mxu0 %v3103
    %v3177 = vpop.f32.mrf.mxu0
    %v3178 = vadd.f32 0.0, %v3177
    %v3179 = vpop.f32.mrf.mxu0
    %3180 = vmatprep.mubr.f32.mxu0 0.0
    %3181 = vmatmul.mubr.f32.gmra.mxu0 %v3105
    %v3182 = vpop.f32.mrf.mxu0
    %v3183 = vadd.f32 0.0, %v3182
    %v3184 = vpop.f32.mrf.mxu0
    %3185 = vdwg.mxu0
    %v3186 = vmul.f32 %v3087, 0.35355338
    %v3187 = vmul.f32 %v3092, 0.35355338
    %v3188 = vmul.f32 %v3178, 0.35355338
    %v3189 = vmul.f32 %v3183, 0.35355338
    %v3190 = vadd.f32 %v3186, %v78
    %v3191 = vadd.f32 %v3187, %v78
    %v3192 = vadd.f32 %v3188, %v82
    %v3193 = vadd.f32 %v3189, %v82
    %v3194 = vsel %vm484, %v3190, -inf
    %3195 = vmax.xlane.f32.xlu0 %v3194
    %v3196 = vpop.xlane.xlu0 %3195
    %v3197 = vsel %vm484, %v3191, -inf
    %3198 = vmax.xlane.f32.xlu0 %v3197
    %v3199 = vpop.xlane.xlu0 %3198
    %v3200 = vsel %vm484, %v3192, -inf
    %3201 = vmax.xlane.f32.xlu0 %v3200
    %v3202 = vpop.xlane.xlu0 %3201
    %v3203 = vsel %vm484, %v3193, -inf
    %3204 = vmax.xlane.f32.xlu0 %v3203
    %v3205 = vpop.xlane.xlu0 %3204
    %v3206 = vsub.f32 %v3190, %v3196
    %v3207 = vsub.f32 %v3191, %v3199
    %v3208 = vsub.f32 %v3192, %v3202
    %v3209 = vsub.f32 %v3193, %v3205
    %v3210 = vmul.f32 %v3206, 1.442695
    %v3211 = vpow.pop %v3210
    %v3212 = vmul.f32 %v3207, 1.442695
    %v3213 = vpow.pop %v3212
    %v3214 = vmul.f32 %v3208, 1.442695
    %v3215 = vpow.pop %v3214
    %v3216 = vmul.f32 %v3209, 1.442695
    %v3217 = vpow.pop %v3216
    %v3218 = vsel %vm484, %v3211, 0.0
    %3219 = vadd.xlane.f32.xlu0 %v3218
    %v3220 = vpop.xlane.xlu0 %3219
    %v3221 = vsel %vm484, %v3213, 0.0
    %3222 = vadd.xlane.f32.xlu0 %v3221
    %v3223 = vpop.xlane.xlu0 %3222
    %v3224 = vsel %vm484, %v3215, 0.0
    %3225 = vadd.xlane.f32.xlu0 %v3224
    %v3226 = vpop.xlane.xlu0 %3225
    %v3227 = vsel %vm484, %v3217, 0.0
    %3228 = vadd.xlane.f32.xlu0 %v3227
    %v3229 = vpop.xlane.xlu0 %3228
    %v3230 = vrcp.pop %v3220
    %v3231 = vmul.f32 %v3211, %v3230
    %v3232 = vrcp.pop %v3223
    %v3233 = vmul.f32 %v3213, %v3232
    %v3234 = vrcp.pop %v3226
    %v3235 = vmul.f32 %v3215, %v3234
    %v3236 = vrcp.pop %v3229
    %v3237 = vmul.f32 %v3217, %v3236
    %3238 = vrot.lane.b32.xlu0 %v2582, 56
    %v3239 = vpop.permute.xlu0 %3238
    %3240 = vrot.lane.b32.xlu0 %v2587, 56
    %v3241 = vpop.permute.xlu0 %3240
    %v3245 = vsel %vm484, %v3231, 0
    %v3248 = vsel %vm484, %v3233, 0
    %3250 = vmatprep.subr.mxu0 0.0
    %3251 = vmatpush1.msra.mxu0 0.0
    %3252 = vmatprep.subr.mxu0 0.0
    %3253 = vmatpush1.msra.mxu0 0.0
    %3254 = vmatprep.subr.mxu0 0.0
    %3255 = vmatpush1.msra.mxu0 0.0
    %3256 = vmatprep.subr.mxu0 0.0
    %3257 = vmatpush1.msra.mxu0 0.0
    %3258 = vmatprep.subr.mxu0 0.0
    %3259 = vmatpush1.msra.mxu0 0.0
    %3260 = vmatprep.subr.mxu0 0.0
    %3261 = vmatpush1.msra.mxu0 0.0
    %3262 = vmatprep.subr.mxu0 0.0
    %3263 = vmatpush1.msra.mxu0 0.0
    %3264 = vmatprep.subr.mxu0 0.0
    %3265 = vmatpush1.msra.mxu0 0.0
    %3266 = vmatprep.subr.mxu0 0.0
    %3267 = vmatpush1.msra.mxu0 0.0
    %3268 = vmatprep.subr.mxu0 0.0
    %3269 = vmatpush1.msra.mxu0 0.0
    %3270 = vmatprep.subr.mxu0 0.0
    %3271 = vmatpush1.msra.mxu0 0.0
    %3272 = vmatprep.subr.mxu0 0.0
    %3273 = vmatpush1.msra.mxu0 0.0
    %3274 = vmatprep.subr.mxu0 0.0
    %3275 = vmatpush1.msra.mxu0 0.0
    %3276 = vmatprep.subr.mxu0 0.0
    %3277 = vmatpush1.msra.mxu0 0.0
    %3278 = vmatprep.subr.mxu0 0.0
    %3279 = vmatpush1.msra.mxu0 %v3241
    %3280 = vmatprep.subr.mxu0 0.0
    %3281 = vmatpush1.msra.mxu0 %v3239
    %3282 = vmatprep.subr.mxu0 0.0
    %3283 = vmatpush2.msra.mxu0 0.0
    %3284 = vmatprep.subr.mxu0 0.0
    %3285 = vmatpush2.msra.mxu0 0.0
    %3286 = vmatprep.subr.mxu0 0.0
    %3287 = vmatpush2.msra.mxu0 0.0
    %3288 = vmatprep.subr.mxu0 0.0
    %3289 = vmatpush2.msra.mxu0 0.0
    %3290 = vmatprep.subr.mxu0 0.0
    %3291 = vmatpush2.msra.mxu0 0.0
    %3292 = vmatprep.subr.mxu0 0.0
    %3293 = vmatpush2.msra.mxu0 0.0
    %3294 = vmatprep.subr.mxu0 0.0
    %3295 = vmatpush2.msra.mxu0 0.0
    %3296 = vmatprep.subr.mxu0 0.0
    %3297 = vmatpush2.msra.mxu0 0.0
    %3298 = vmatprep.subr.mxu0 0.0
    %3299 = vmatpush2.msra.mxu0 0.0
    %3300 = vmatprep.subr.mxu0 0.0
    %3301 = vmatpush2.msra.mxu0 0.0
    %3302 = vmatprep.subr.mxu0 0.0
    %3303 = vmatpush2.msra.mxu0 0.0
    %3304 = vmatprep.subr.mxu0 0.0
    %3305 = vmatpush2.msra.mxu0 0.0
    %3306 = vmatprep.subr.mxu0 0.0
    %3307 = vmatpush2.msra.mxu0 0.0
    %3308 = vmatprep.subr.mxu0 0.0
    %3309 = vmatpush2.msra.mxu0 0.0
    %3310 = vmatprep.subr.mxu0 0.0
    %3311 = vmatpush2.msra.mxu0 0.0
    %3312 = vmatprep.subr.mxu0 0.0
    %3313 = vmatpush2.msra.mxu0 0.0
    %3314 = vmatprep.mubr.f32.mxu0 0.0
    %3315 = vmatmul.mubr.f32.gmra.mxu0 %v3245
    %v3316 = vpop.f32.mrf.mxu0
    %v3317 = vadd.f32 0.0, %v3316
    %v3318 = vpop.f32.mrf.mxu0
    %3319 = vmatprep.mubr.f32.mxu0 0.0
    %3320 = vmatmul.mubr.f32.gmra.mxu0 %v3248
    %v3321 = vpop.f32.mrf.mxu0
    %v3322 = vadd.f32 0.0, %v3321
    %v3323 = vpop.f32.mrf.mxu0
    %3324 = vdwg.mxu0
    %3325 = vrot.lane.b32.xlu0 %v2592, 56
    %v3326 = vpop.permute.xlu0 %3325
    %3327 = vrot.lane.b32.xlu0 %v2597, 56
    %v3328 = vpop.permute.xlu0 %3327
    %v3332 = vsel %vm484, %v3235, 0
    %v3335 = vsel %vm484, %v3237, 0
    %3337 = vmatprep.subr.mxu0 0.0
    %3338 = vmatpush1.msra.mxu0 0.0
    %3339 = vmatprep.subr.mxu0 0.0
    %3340 = vmatpush1.msra.mxu0 0.0
    %3341 = vmatprep.subr.mxu0 0.0
    %3342 = vmatpush1.msra.mxu0 0.0
    %3343 = vmatprep.subr.mxu0 0.0
    %3344 = vmatpush1.msra.mxu0 0.0
    %3345 = vmatprep.subr.mxu0 0.0
    %3346 = vmatpush1.msra.mxu0 0.0
    %3347 = vmatprep.subr.mxu0 0.0
    %3348 = vmatpush1.msra.mxu0 0.0
    %3349 = vmatprep.subr.mxu0 0.0
    %3350 = vmatpush1.msra.mxu0 0.0
    %3351 = vmatprep.subr.mxu0 0.0
    %3352 = vmatpush1.msra.mxu0 0.0
    %3353 = vmatprep.subr.mxu0 0.0
    %3354 = vmatpush1.msra.mxu0 0.0
    %3355 = vmatprep.subr.mxu0 0.0
    %3356 = vmatpush1.msra.mxu0 0.0
    %3357 = vmatprep.subr.mxu0 0.0
    %3358 = vmatpush1.msra.mxu0 0.0
    %3359 = vmatprep.subr.mxu0 0.0
    %3360 = vmatpush1.msra.mxu0 0.0
    %3361 = vmatprep.subr.mxu0 0.0
    %3362 = vmatpush1.msra.mxu0 0.0
    %3363 = vmatprep.subr.mxu0 0.0
    %3364 = vmatpush1.msra.mxu0 0.0
    %3365 = vmatprep.subr.mxu0 0.0
    %3366 = vmatpush1.msra.mxu0 %v3328
    %3367 = vmatprep.subr.mxu0 0.0
    %3368 = vmatpush1.msra.mxu0 %v3326
    %3369 = vmatprep.subr.mxu0 0.0
    %3370 = vmatpush2.msra.mxu0 0.0
    %3371 = vmatprep.subr.mxu0 0.0
    %3372 = vmatpush2.msra.mxu0 0.0
    %3373 = vmatprep.subr.mxu0 0.0
    %3374 = vmatpush2.msra.mxu0 0.0
    %3375 = vmatprep.subr.mxu0 0.0
    %3376 = vmatpush2.msra.mxu0 0.0
    %3377 = vmatprep.subr.mxu0 0.0
    %3378 = vmatpush2.msra.mxu0 0.0
    %3379 = vmatprep.subr.mxu0 0.0
    %3380 = vmatpush2.msra.mxu0 0.0
    %3381 = vmatprep.subr.mxu0 0.0
    %3382 = vmatpush2.msra.mxu0 0.0
    %3383 = vmatprep.subr.mxu0 0.0
    %3384 = vmatpush2.msra.mxu0 0.0
    %3385 = vmatprep.subr.mxu0 0.0
    %3386 = vmatpush2.msra.mxu0 0.0
    %3387 = vmatprep.subr.mxu0 0.0
    %3388 = vmatpush2.msra.mxu0 0.0
    %3389 = vmatprep.subr.mxu0 0.0
    %3390 = vmatpush2.msra.mxu0 0.0
    %3391 = vmatprep.subr.mxu0 0.0
    %3392 = vmatpush2.msra.mxu0 0.0
    %3393 = vmatprep.subr.mxu0 0.0
    %3394 = vmatpush2.msra.mxu0 0.0
    %3395 = vmatprep.subr.mxu0 0.0
    %3396 = vmatpush2.msra.mxu0 0.0
    %3397 = vmatprep.subr.mxu0 0.0
    %3398 = vmatpush2.msra.mxu0 0.0
    %3399 = vmatprep.subr.mxu0 0.0
    %3400 = vmatpush2.msra.mxu0 0.0
    %3401 = vmatprep.mubr.f32.mxu0 0.0
    %3402 = vmatmul.mubr.f32.gmra.mxu0 %v3332
    %v3403 = vpop.f32.mrf.mxu0
    %v3404 = vadd.f32 0.0, %v3403
    %v3405 = vpop.f32.mrf.mxu0
    %3406 = vmatprep.mubr.f32.mxu0 0.0
    %3407 = vmatmul.mubr.f32.gmra.mxu0 %v3335
    %v3408 = vpop.f32.mrf.mxu0
    %v3409 = vadd.f32 0.0, %v3408
    %v3410 = vpop.f32.mrf.mxu0
    %3411 = vdwg.mxu0
    %3412 = vrot.lane.b32.xlu0 %v2582, 112
    %v3413 = vpop.permute.xlu0 %3412
    %3414 = vrot.lane.b32.xlu0 %v2587, 112
    %v3415 = vpop.permute.xlu0 %3414
    %3416 = vrot.lane.b32.xlu0 %v2582, 80
    %v3417 = vpop.permute.xlu0 %3416
    %3418 = vrot.lane.b32.xlu0 %v2587, 80
    %v3419 = vpop.permute.xlu0 %3418
    %v3420 = vsel %vm90, %v3413, 0
    %v3422 = vsel %vm90, %v3415, 0
    %v3424 = vsel %vm90, %v3417, 0
    %v3426 = vsel %vm90, %v3419, 0
    %3428 = vmatprep.subr.mxu0 0.0
    %3429 = vmatpush1.xpose.msra.mxu0 0.0
    %3430 = vmatprep.subr.mxu0 0.0
    %3431 = vmatpush1.xpose.msra.mxu0 0.0
    %3432 = vmatprep.subr.mxu0 0.0
    %3433 = vmatpush1.xpose.msra.mxu0 0.0
    %3434 = vmatprep.subr.mxu0 0.0
    %3435 = vmatpush1.xpose.msra.mxu0 0.0
    %3436 = vmatprep.subr.mxu0 0.0
    %3437 = vmatpush1.xpose.msra.mxu0 0.0
    %3438 = vmatprep.subr.mxu0 0.0
    %3439 = vmatpush1.xpose.msra.mxu0 0.0
    %3440 = vmatprep.subr.mxu0 0.0
    %3441 = vmatpush1.xpose.msra.mxu0 0.0
    %3442 = vmatprep.subr.mxu0 0.0
    %3443 = vmatpush1.xpose.msra.mxu0 0.0
    %3444 = vmatprep.subr.mxu0 0.0
    %3445 = vmatpush1.xpose.msra.mxu0 0.0
    %3446 = vmatprep.subr.mxu0 0.0
    %3447 = vmatpush1.xpose.msra.mxu0 0.0
    %3448 = vmatprep.subr.mxu0 0.0
    %3449 = vmatpush1.xpose.msra.mxu0 0.0
    %3450 = vmatprep.subr.mxu0 0.0
    %3451 = vmatpush1.xpose.msra.mxu0 0.0
    %3452 = vmatprep.subr.mxu0 0.0
    %3453 = vmatpush1.xpose.msra.mxu0 0.0
    %3454 = vmatprep.subr.mxu0 0.0
    %3455 = vmatpush1.xpose.msra.mxu0 0.0
    %3456 = vmatprep.subr.mxu0 0.0
    %3457 = vmatpush1.xpose.msra.mxu0 %v3426
    %3458 = vmatprep.subr.mxu0 0.0
    %3459 = vmatpush1.xpose.msra.mxu0 %v3424
    %3460 = vmatprep.subr.mxu0 0.0
    %3461 = vmatpush2.xpose.msra.mxu0 0.0
    %3462 = vmatprep.subr.mxu0 0.0
    %3463 = vmatpush2.xpose.msra.mxu0 0.0
    %3464 = vmatprep.subr.mxu0 0.0
    %3465 = vmatpush2.xpose.msra.mxu0 0.0
    %3466 = vmatprep.subr.mxu0 0.0
    %3467 = vmatpush2.xpose.msra.mxu0 0.0
    %3468 = vmatprep.subr.mxu0 0.0
    %3469 = vmatpush2.xpose.msra.mxu0 0.0
    %3470 = vmatprep.subr.mxu0 0.0
    %3471 = vmatpush2.xpose.msra.mxu0 0.0
    %3472 = vmatprep.subr.mxu0 0.0
    %3473 = vmatpush2.xpose.msra.mxu0 0.0
    %3474 = vmatprep.subr.mxu0 0.0
    %3475 = vmatpush2.xpose.msra.mxu0 0.0
    %3476 = vmatprep.subr.mxu0 0.0
    %3477 = vmatpush2.xpose.msra.mxu0 0.0
    %3478 = vmatprep.subr.mxu0 0.0
    %3479 = vmatpush2.xpose.msra.mxu0 0.0
    %3480 = vmatprep.subr.mxu0 0.0
    %3481 = vmatpush2.xpose.msra.mxu0 0.0
    %3482 = vmatprep.subr.mxu0 0.0
    %3483 = vmatpush2.xpose.msra.mxu0 0.0
    %3484 = vmatprep.subr.mxu0 0.0
    %3485 = vmatpush2.xpose.msra.mxu0 0.0
    %3486 = vmatprep.subr.mxu0 0.0
    %3487 = vmatpush2.xpose.msra.mxu0 0.0
    %3488 = vmatprep.subr.mxu0 0.0
    %3489 = vmatpush2.xpose.msra.mxu0 0.0
    %3490 = vmatprep.subr.mxu0 0.0
    %3491 = vmatpush2.xpose.msra.mxu0 0.0
    %3492 = vmatprep.mubr.f32.mxu0 0.0
    %3493 = vmatmul.mubr.f32.gmra.mxu0 %v3420
    %v3494 = vpop.f32.mrf.mxu0
    %v3495 = vadd.f32 0.0, %v3494
    %v3496 = vpop.f32.mrf.mxu0
    %3497 = vmatprep.mubr.f32.mxu0 0.0
    %3498 = vmatmul.mubr.f32.gmra.mxu0 %v3422
    %v3499 = vpop.f32.mrf.mxu0
    %v3500 = vadd.f32 0.0, %v3499
    %v3501 = vpop.f32.mrf.mxu0
    %3502 = vdwg.mxu0
    %3503 = vrot.lane.b32.xlu0 %v2592, 112
    %v3504 = vpop.permute.xlu0 %3503
    %3505 = vrot.lane.b32.xlu0 %v2597, 112
    %v3506 = vpop.permute.xlu0 %3505
    %3507 = vrot.lane.b32.xlu0 %v2592, 80
    %v3508 = vpop.permute.xlu0 %3507
    %3509 = vrot.lane.b32.xlu0 %v2597, 80
    %v3510 = vpop.permute.xlu0 %3509
    %v3511 = vsel %vm90, %v3504, 0
    %v3513 = vsel %vm90, %v3506, 0
    %v3515 = vsel %vm90, %v3508, 0
    %v3517 = vsel %vm90, %v3510, 0
    %3519 = vmatprep.subr.mxu0 0.0
    %3520 = vmatpush1.xpose.msra.mxu0 0.0
    %3521 = vmatprep.subr.mxu0 0.0
    %3522 = vmatpush1.xpose.msra.mxu0 0.0
    %3523 = vmatprep.subr.mxu0 0.0
    %3524 = vmatpush1.xpose.msra.mxu0 0.0
    %3525 = vmatprep.subr.mxu0 0.0
    %3526 = vmatpush1.xpose.msra.mxu0 0.0
    %3527 = vmatprep.subr.mxu0 0.0
    %3528 = vmatpush1.xpose.msra.mxu0 0.0
    %3529 = vmatprep.subr.mxu0 0.0
    %3530 = vmatpush1.xpose.msra.mxu0 0.0
    %3531 = vmatprep.subr.mxu0 0.0
    %3532 = vmatpush1.xpose.msra.mxu0 0.0
    %3533 = vmatprep.subr.mxu0 0.0
    %3534 = vmatpush1.xpose.msra.mxu0 0.0
    %3535 = vmatprep.subr.mxu0 0.0
    %3536 = vmatpush1.xpose.msra.mxu0 0.0
    %3537 = vmatprep.subr.mxu0 0.0
    %3538 = vmatpush1.xpose.msra.mxu0 0.0
    %3539 = vmatprep.subr.mxu0 0.0
    %3540 = vmatpush1.xpose.msra.mxu0 0.0
    %3541 = vmatprep.subr.mxu0 0.0
    %3542 = vmatpush1.xpose.msra.mxu0 0.0
    %3543 = vmatprep.subr.mxu0 0.0
    %3544 = vmatpush1.xpose.msra.mxu0 0.0
    %3545 = vmatprep.subr.mxu0 0.0
    %3546 = vmatpush1.xpose.msra.mxu0 0.0
    %3547 = vmatprep.subr.mxu0 0.0
    %3548 = vmatpush1.xpose.msra.mxu0 %v3517
    %3549 = vmatprep.subr.mxu0 0.0
    %3550 = vmatpush1.xpose.msra.mxu0 %v3515
    %3551 = vmatprep.subr.mxu0 0.0
    %3552 = vmatpush2.xpose.msra.mxu0 0.0
    %3553 = vmatprep.subr.mxu0 0.0
    %3554 = vmatpush2.xpose.msra.mxu0 0.0
    %3555 = vmatprep.subr.mxu0 0.0
    %3556 = vmatpush2.xpose.msra.mxu0 0.0
    %3557 = vmatprep.subr.mxu0 0.0
    %3558 = vmatpush2.xpose.msra.mxu0 0.0
    %3559 = vmatprep.subr.mxu0 0.0
    %3560 = vmatpush2.xpose.msra.mxu0 0.0
    %3561 = vmatprep.subr.mxu0 0.0
    %3562 = vmatpush2.xpose.msra.mxu0 0.0
    %3563 = vmatprep.subr.mxu0 0.0
    %3564 = vmatpush2.xpose.msra.mxu0 0.0
    %3565 = vmatprep.subr.mxu0 0.0
    %3566 = vmatpush2.xpose.msra.mxu0 0.0
    %3567 = vmatprep.subr.mxu0 0.0
    %3568 = vmatpush2.xpose.msra.mxu0 0.0
    %3569 = vmatprep.subr.mxu0 0.0
    %3570 = vmatpush2.xpose.msra.mxu0 0.0
    %3571 = vmatprep.subr.mxu0 0.0
    %3572 = vmatpush2.xpose.msra.mxu0 0.0
    %3573 = vmatprep.subr.mxu0 0.0
    %3574 = vmatpush2.xpose.msra.mxu0 0.0
    %3575 = vmatprep.subr.mxu0 0.0
    %3576 = vmatpush2.xpose.msra.mxu0 0.0
    %3577 = vmatprep.subr.mxu0 0.0
    %3578 = vmatpush2.xpose.msra.mxu0 0.0
    %3579 = vmatprep.subr.mxu0 0.0
    %3580 = vmatpush2.xpose.msra.mxu0 0.0
    %3581 = vmatprep.subr.mxu0 0.0
    %3582 = vmatpush2.xpose.msra.mxu0 0.0
    %3583 = vmatprep.mubr.f32.mxu0 0.0
    %3584 = vmatmul.mubr.f32.gmra.mxu0 %v3511
    %v3585 = vpop.f32.mrf.mxu0
    %v3586 = vadd.f32 0.0, %v3585
    %v3587 = vpop.f32.mrf.mxu0
    %3588 = vmatprep.mubr.f32.mxu0 0.0
    %3589 = vmatmul.mubr.f32.gmra.mxu0 %v3513
    %v3590 = vpop.f32.mrf.mxu0
    %v3591 = vadd.f32 0.0, %v3590
    %v3592 = vpop.f32.mrf.mxu0
    %3593 = vdwg.mxu0
    %v3594 = vmul.f32 %v3495, 0.35355338
    %v3595 = vmul.f32 %v3500, 0.35355338
    %v3596 = vmul.f32 %v3586, 0.35355338
    %v3597 = vmul.f32 %v3591, 0.35355338
    %v3598 = vadd.f32 %v3594, %v78
    %v3599 = vadd.f32 %v3595, %v78
    %v3600 = vadd.f32 %v3596, %v82
    %v3601 = vadd.f32 %v3597, %v82
    %v3602 = vsel %vm484, %v3598, -inf
    %3603 = vmax.xlane.f32.xlu0 %v3602
    %v3604 = vpop.xlane.xlu0 %3603
    %v3605 = vsel %vm484, %v3599, -inf
    %3606 = vmax.xlane.f32.xlu0 %v3605
    %v3607 = vpop.xlane.xlu0 %3606
    %v3608 = vsel %vm484, %v3600, -inf
    %3609 = vmax.xlane.f32.xlu0 %v3608
    %v3610 = vpop.xlane.xlu0 %3609
    %v3611 = vsel %vm484, %v3601, -inf
    %3612 = vmax.xlane.f32.xlu0 %v3611
    %v3613 = vpop.xlane.xlu0 %3612
    %v3614 = vsub.f32 %v3598, %v3604
    %v3615 = vsub.f32 %v3599, %v3607
    %v3616 = vsub.f32 %v3600, %v3610
    %v3617 = vsub.f32 %v3601, %v3613
    %v3618 = vmul.f32 %v3614, 1.442695
    %v3619 = vpow.pop %v3618
    %v3620 = vmul.f32 %v3615, 1.442695
    %v3621 = vpow.pop %v3620
    %v3622 = vmul.f32 %v3616, 1.442695
    %v3623 = vpow.pop %v3622
    %v3624 = vmul.f32 %v3617, 1.442695
    %v3625 = vpow.pop %v3624
    %v3626 = vsel %vm484, %v3619, 0.0
    %3627 = vadd.xlane.f32.xlu0 %v3626
    %v3628 = vpop.xlane.xlu0 %3627
    %v3629 = vsel %vm484, %v3621, 0.0
    %3630 = vadd.xlane.f32.xlu0 %v3629
    %v3631 = vpop.xlane.xlu0 %3630
    %v3632 = vsel %vm484, %v3623, 0.0
    %3633 = vadd.xlane.f32.xlu0 %v3632
    %v3634 = vpop.xlane.xlu0 %3633
    %v3635 = vsel %vm484, %v3625, 0.0
    %3636 = vadd.xlane.f32.xlu0 %v3635
    %v3637 = vpop.xlane.xlu0 %3636
    %v3638 = vrcp.pop %v3628
    %v3639 = vmul.f32 %v3619, %v3638
    %v3640 = vrcp.pop %v3631
    %v3641 = vmul.f32 %v3621, %v3640
    %v3642 = vrcp.pop %v3634
    %v3643 = vmul.f32 %v3623, %v3642
    %v3644 = vrcp.pop %v3637
    %v3645 = vmul.f32 %v3625, %v3644
    %3646 = vrot.lane.b32.xlu0 %v2582, 48
    %v3647 = vpop.permute.xlu0 %3646
    %3648 = vrot.lane.b32.xlu0 %v2587, 48
    %v3649 = vpop.permute.xlu0 %3648
    %v3653 = vsel %vm484, %v3639, 0
    %v3656 = vsel %vm484, %v3641, 0
    %3658 = vmatprep.subr.mxu0 0.0
    %3659 = vmatpush1.msra.mxu0 0.0
    %3660 = vmatprep.subr.mxu0 0.0
    %3661 = vmatpush1.msra.mxu0 0.0
    %3662 = vmatprep.subr.mxu0 0.0
    %3663 = vmatpush1.msra.mxu0 0.0
    %3664 = vmatprep.subr.mxu0 0.0
    %3665 = vmatpush1.msra.mxu0 0.0
    %3666 = vmatprep.subr.mxu0 0.0
    %3667 = vmatpush1.msra.mxu0 0.0
    %3668 = vmatprep.subr.mxu0 0.0
    %3669 = vmatpush1.msra.mxu0 0.0
    %3670 = vmatprep.subr.mxu0 0.0
    %3671 = vmatpush1.msra.mxu0 0.0
    %3672 = vmatprep.subr.mxu0 0.0
    %3673 = vmatpush1.msra.mxu0 0.0
    %3674 = vmatprep.subr.mxu0 0.0
    %3675 = vmatpush1.msra.mxu0 0.0
    %3676 = vmatprep.subr.mxu0 0.0
    %3677 = vmatpush1.msra.mxu0 0.0
    %3678 = vmatprep.subr.mxu0 0.0
    %3679 = vmatpush1.msra.mxu0 0.0
    %3680 = vmatprep.subr.mxu0 0.0
    %3681 = vmatpush1.msra.mxu0 0.0
    %3682 = vmatprep.subr.mxu0 0.0
    %3683 = vmatpush1.msra.mxu0 0.0
    %3684 = vmatprep.subr.mxu0 0.0
    %3685 = vmatpush1.msra.mxu0 0.0
    %3686 = vmatprep.subr.mxu0 0.0
    %3687 = vmatpush1.msra.mxu0 %v3649
    %3688 = vmatprep.subr.mxu0 0.0
    %3689 = vmatpush1.msra.mxu0 %v3647
    %3690 = vmatprep.subr.mxu0 0.0
    %3691 = vmatpush2.msra.mxu0 0.0
    %3692 = vmatprep.subr.mxu0 0.0
    %3693 = vmatpush2.msra.mxu0 0.0
    %3694 = vmatprep.subr.mxu0 0.0
    %3695 = vmatpush2.msra.mxu0 0.0
    %3696 = vmatprep.subr.mxu0 0.0
    %3697 = vmatpush2.msra.mxu0 0.0
    %3698 = vmatprep.subr.mxu0 0.0
    %3699 = vmatpush2.msra.mxu0 0.0
    %3700 = vmatprep.subr.mxu0 0.0
    %3701 = vmatpush2.msra.mxu0 0.0
    %3702 = vmatprep.subr.mxu0 0.0
    %3703 = vmatpush2.msra.mxu0 0.0
    %3704 = vmatprep.subr.mxu0 0.0
    %3705 = vmatpush2.msra.mxu0 0.0
    %3706 = vmatprep.subr.mxu0 0.0
    %3707 = vmatpush2.msra.mxu0 0.0
    %3708 = vmatprep.subr.mxu0 0.0
    %3709 = vmatpush2.msra.mxu0 0.0
    %3710 = vmatprep.subr.mxu0 0.0
    %3711 = vmatpush2.msra.mxu0 0.0
    %3712 = vmatprep.subr.mxu0 0.0
    %3713 = vmatpush2.msra.mxu0 0.0
    %3714 = vmatprep.subr.mxu0 0.0
    %3715 = vmatpush2.msra.mxu0 0.0
    %3716 = vmatprep.subr.mxu0 0.0
    %3717 = vmatpush2.msra.mxu0 0.0
    %3718 = vmatprep.subr.mxu0 0.0
    %3719 = vmatpush2.msra.mxu0 0.0
    %3720 = vmatprep.subr.mxu0 0.0
    %3721 = vmatpush2.msra.mxu0 0.0
    %3722 = vmatprep.mubr.f32.mxu0 0.0
    %3723 = vmatmul.mubr.f32.gmra.mxu0 %v3653
    %v3724 = vpop.f32.mrf.mxu0
    %v3725 = vadd.f32 0.0, %v3724
    %v3726 = vpop.f32.mrf.mxu0
    %3727 = vmatprep.mubr.f32.mxu0 0.0
    %3728 = vmatmul.mubr.f32.gmra.mxu0 %v3656
    %v3729 = vpop.f32.mrf.mxu0
    %v3730 = vadd.f32 0.0, %v3729
    %v3731 = vpop.f32.mrf.mxu0
    %3732 = vdwg.mxu0
    %3733 = vrot.lane.b32.xlu0 %v2592, 48
    %v3734 = vpop.permute.xlu0 %3733
    %3735 = vrot.lane.b32.xlu0 %v2597, 48
    %v3736 = vpop.permute.xlu0 %3735
    %v3740 = vsel %vm484, %v3643, 0
    %v3743 = vsel %vm484, %v3645, 0
    %3745 = vmatprep.subr.mxu0 0.0
    %3746 = vmatpush1.msra.mxu0 0.0
    %3747 = vmatprep.subr.mxu0 0.0
    %3748 = vmatpush1.msra.mxu0 0.0
    %3749 = vmatprep.subr.mxu0 0.0
    %3750 = vmatpush1.msra.mxu0 0.0
    %3751 = vmatprep.subr.mxu0 0.0
    %3752 = vmatpush1.msra.mxu0 0.0
    %3753 = vmatprep.subr.mxu0 0.0
    %3754 = vmatpush1.msra.mxu0 0.0
    %3755 = vmatprep.subr.mxu0 0.0
    %3756 = vmatpush1.msra.mxu0 0.0
    %3757 = vmatprep.subr.mxu0 0.0
    %3758 = vmatpush1.msra.mxu0 0.0
    %3759 = vmatprep.subr.mxu0 0.0
    %3760 = vmatpush1.msra.mxu0 0.0
    %3761 = vmatprep.subr.mxu0 0.0
    %3762 = vmatpush1.msra.mxu0 0.0
    %3763 = vmatprep.subr.mxu0 0.0
    %3764 = vmatpush1.msra.mxu0 0.0
    %3765 = vmatprep.subr.mxu0 0.0
    %3766 = vmatpush1.msra.mxu0 0.0
    %3767 = vmatprep.subr.mxu0 0.0
    %3768 = vmatpush1.msra.mxu0 0.0
    %3769 = vmatprep.subr.mxu0 0.0
    %3770 = vmatpush1.msra.mxu0 0.0
    %3771 = vmatprep.subr.mxu0 0.0
    %3772 = vmatpush1.msra.mxu0 0.0
    %3773 = vmatprep.subr.mxu0 0.0
    %3774 = vmatpush1.msra.mxu0 %v3736
    %3775 = vmatprep.subr.mxu0 0.0
    %3776 = vmatpush1.msra.mxu0 %v3734
    %3777 = vmatprep.subr.mxu0 0.0
    %3778 = vmatpush2.msra.mxu0 0.0
    %3779 = vmatprep.subr.mxu0 0.0
    %3780 = vmatpush2.msra.mxu0 0.0
    %3781 = vmatprep.subr.mxu0 0.0
    %3782 = vmatpush2.msra.mxu0 0.0
    %3783 = vmatprep.subr.mxu0 0.0
    %3784 = vmatpush2.msra.mxu0 0.0
    %3785 = vmatprep.subr.mxu0 0.0
    %3786 = vmatpush2.msra.mxu0 0.0
    %3787 = vmatprep.subr.mxu0 0.0
    %3788 = vmatpush2.msra.mxu0 0.0
    %3789 = vmatprep.subr.mxu0 0.0
    %3790 = vmatpush2.msra.mxu0 0.0
    %3791 = vmatprep.subr.mxu0 0.0
    %3792 = vmatpush2.msra.mxu0 0.0
    %3793 = vmatprep.subr.mxu0 0.0
    %3794 = vmatpush2.msra.mxu0 0.0
    %3795 = vmatprep.subr.mxu0 0.0
    %3796 = vmatpush2.msra.mxu0 0.0
    %3797 = vmatprep.subr.mxu0 0.0
    %3798 = vmatpush2.msra.mxu0 0.0
    %3799 = vmatprep.subr.mxu0 0.0
    %3800 = vmatpush2.msra.mxu0 0.0
    %3801 = vmatprep.subr.mxu0 0.0
    %3802 = vmatpush2.msra.mxu0 0.0
    %3803 = vmatprep.subr.mxu0 0.0
    %3804 = vmatpush2.msra.mxu0 0.0
    %3805 = vmatprep.subr.mxu0 0.0
    %3806 = vmatpush2.msra.mxu0 0.0
    %3807 = vmatprep.subr.mxu0 0.0
    %3808 = vmatpush2.msra.mxu0 0.0
    %3809 = vmatprep.mubr.f32.mxu0 0.0
    %3810 = vmatmul.mubr.f32.gmra.mxu0 %v3740
    %v3811 = vpop.f32.mrf.mxu0
    %v3812 = vadd.f32 0.0, %v3811
    %v3813 = vpop.f32.mrf.mxu0
    %3814 = vmatprep.mubr.f32.mxu0 0.0
    %3815 = vmatmul.mubr.f32.gmra.mxu0 %v3743
    %v3816 = vpop.f32.mrf.mxu0
    %v3817 = vadd.f32 0.0, %v3816
    %v3818 = vpop.f32.mrf.mxu0
    %3819 = vdwg.mxu0
    %3820 = vrot.lane.b32.xlu0 %v2582, 104
    %v3821 = vpop.permute.xlu0 %3820
    %3822 = vrot.lane.b32.xlu0 %v2587, 104
    %v3823 = vpop.permute.xlu0 %3822
    %3824 = vrot.lane.b32.xlu0 %v2582, 72
    %v3825 = vpop.permute.xlu0 %3824
    %3826 = vrot.lane.b32.xlu0 %v2587, 72
    %v3827 = vpop.permute.xlu0 %3826
    %v3828 = vsel %vm90, %v3821, 0
    %v3830 = vsel %vm90, %v3823, 0
    %v3832 = vsel %vm90, %v3825, 0
    %v3834 = vsel %vm90, %v3827, 0
    %3836 = vmatprep.subr.mxu0 0.0
    %3837 = vmatpush1.xpose.msra.mxu0 0.0
    %3838 = vmatprep.subr.mxu0 0.0
    %3839 = vmatpush1.xpose.msra.mxu0 0.0
    %3840 = vmatprep.subr.mxu0 0.0
    %3841 = vmatpush1.xpose.msra.mxu0 0.0
    %3842 = vmatprep.subr.mxu0 0.0
    %3843 = vmatpush1.xpose.msra.mxu0 0.0
    %3844 = vmatprep.subr.mxu0 0.0
    %3845 = vmatpush1.xpose.msra.mxu0 0.0
    %3846 = vmatprep.subr.mxu0 0.0
    %3847 = vmatpush1.xpose.msra.mxu0 0.0
    %3848 = vmatprep.subr.mxu0 0.0
    %3849 = vmatpush1.xpose.msra.mxu0 0.0
    %3850 = vmatprep.subr.mxu0 0.0
    %3851 = vmatpush1.xpose.msra.mxu0 0.0
    %3852 = vmatprep.subr.mxu0 0.0
    %3853 = vmatpush1.xpose.msra.mxu0 0.0
    %3854 = vmatprep.subr.mxu0 0.0
    %3855 = vmatpush1.xpose.msra.mxu0 0.0
    %3856 = vmatprep.subr.mxu0 0.0
    %3857 = vmatpush1.xpose.msra.mxu0 0.0
    %3858 = vmatprep.subr.mxu0 0.0
    %3859 = vmatpush1.xpose.msra.mxu0 0.0
    %3860 = vmatprep.subr.mxu0 0.0
    %3861 = vmatpush1.xpose.msra.mxu0 0.0
    %3862 = vmatprep.subr.mxu0 0.0
    %3863 = vmatpush1.xpose.msra.mxu0 0.0
    %3864 = vmatprep.subr.mxu0 0.0
    %3865 = vmatpush1.xpose.msra.mxu0 %v3834
    %3866 = vmatprep.subr.mxu0 0.0
    %3867 = vmatpush1.xpose.msra.mxu0 %v3832
    %3868 = vmatprep.subr.mxu0 0.0
    %3869 = vmatpush2.xpose.msra.mxu0 0.0
    %3870 = vmatprep.subr.mxu0 0.0
    %3871 = vmatpush2.xpose.msra.mxu0 0.0
    %3872 = vmatprep.subr.mxu0 0.0
    %3873 = vmatpush2.xpose.msra.mxu0 0.0
    %3874 = vmatprep.subr.mxu0 0.0
    %3875 = vmatpush2.xpose.msra.mxu0 0.0
    %3876 = vmatprep.subr.mxu0 0.0
    %3877 = vmatpush2.xpose.msra.mxu0 0.0
    %3878 = vmatprep.subr.mxu0 0.0
    %3879 = vmatpush2.xpose.msra.mxu0 0.0
    %3880 = vmatprep.subr.mxu0 0.0
    %3881 = vmatpush2.xpose.msra.mxu0 0.0
    %3882 = vmatprep.subr.mxu0 0.0
    %3883 = vmatpush2.xpose.msra.mxu0 0.0
    %3884 = vmatprep.subr.mxu0 0.0
    %3885 = vmatpush2.xpose.msra.mxu0 0.0
    %3886 = vmatprep.subr.mxu0 0.0
    %3887 = vmatpush2.xpose.msra.mxu0 0.0
    %3888 = vmatprep.subr.mxu0 0.0
    %3889 = vmatpush2.xpose.msra.mxu0 0.0
    %3890 = vmatprep.subr.mxu0 0.0
    %3891 = vmatpush2.xpose.msra.mxu0 0.0
    %3892 = vmatprep.subr.mxu0 0.0
    %3893 = vmatpush2.xpose.msra.mxu0 0.0
    %3894 = vmatprep.subr.mxu0 0.0
    %3895 = vmatpush2.xpose.msra.mxu0 0.0
    %3896 = vmatprep.subr.mxu0 0.0
    %3897 = vmatpush2.xpose.msra.mxu0 0.0
    %3898 = vmatprep.subr.mxu0 0.0
    %3899 = vmatpush2.xpose.msra.mxu0 0.0
    %3900 = vmatprep.mubr.f32.mxu0 0.0
    %3901 = vmatmul.mubr.f32.gmra.mxu0 %v3828
    %v3902 = vpop.f32.mrf.mxu0
    %v3903 = vadd.f32 0.0, %v3902
    %v3904 = vpop.f32.mrf.mxu0
    %3905 = vmatprep.mubr.f32.mxu0 0.0
    %3906 = vmatmul.mubr.f32.gmra.mxu0 %v3830
    %v3907 = vpop.f32.mrf.mxu0
    %v3908 = vadd.f32 0.0, %v3907
    %v3909 = vpop.f32.mrf.mxu0
    %3910 = vdwg.mxu0
    %3911 = vrot.lane.b32.xlu0 %v2592, 104
    %v3912 = vpop.permute.xlu0 %3911
    %3913 = vrot.lane.b32.xlu0 %v2597, 104
    %v3914 = vpop.permute.xlu0 %3913
    %3915 = vrot.lane.b32.xlu0 %v2592, 72
    %v3916 = vpop.permute.xlu0 %3915
    %3917 = vrot.lane.b32.xlu0 %v2597, 72
    %v3918 = vpop.permute.xlu0 %3917
    %v3919 = vsel %vm90, %v3912, 0
    %v3921 = vsel %vm90, %v3914, 0
    %v3923 = vsel %vm90, %v3916, 0
    %v3925 = vsel %vm90, %v3918, 0
    %3927 = vmatprep.subr.mxu0 0.0
    %3928 = vmatpush1.xpose.msra.mxu0 0.0
    %3929 = vmatprep.subr.mxu0 0.0
    %3930 = vmatpush1.xpose.msra.mxu0 0.0
    %3931 = vmatprep.subr.mxu0 0.0
    %3932 = vmatpush1.xpose.msra.mxu0 0.0
    %3933 = vmatprep.subr.mxu0 0.0
    %3934 = vmatpush1.xpose.msra.mxu0 0.0
    %3935 = vmatprep.subr.mxu0 0.0
    %3936 = vmatpush1.xpose.msra.mxu0 0.0
    %3937 = vmatprep.subr.mxu0 0.0
    %3938 = vmatpush1.xpose.msra.mxu0 0.0
    %3939 = vmatprep.subr.mxu0 0.0
    %3940 = vmatpush1.xpose.msra.mxu0 0.0
    %3941 = vmatprep.subr.mxu0 0.0
    %3942 = vmatpush1.xpose.msra.mxu0 0.0
    %3943 = vmatprep.subr.mxu0 0.0
    %3944 = vmatpush1.xpose.msra.mxu0 0.0
    %3945 = vmatprep.subr.mxu0 0.0
    %3946 = vmatpush1.xpose.msra.mxu0 0.0
    %3947 = vmatprep.subr.mxu0 0.0
    %3948 = vmatpush1.xpose.msra.mxu0 0.0
    %3949 = vmatprep.subr.mxu0 0.0
    %3950 = vmatpush1.xpose.msra.mxu0 0.0
    %3951 = vmatprep.subr.mxu0 0.0
    %3952 = vmatpush1.xpose.msra.mxu0 0.0
    %3953 = vmatprep.subr.mxu0 0.0
    %3954 = vmatpush1.xpose.msra.mxu0 0.0
    %3955 = vmatprep.subr.mxu0 0.0
    %3956 = vmatpush1.xpose.msra.mxu0 %v3925
    %3957 = vmatprep.subr.mxu0 0.0
    %3958 = vmatpush1.xpose.msra.mxu0 %v3923
    %3959 = vmatprep.subr.mxu0 0.0
    %3960 = vmatpush2.xpose.msra.mxu0 0.0
    %3961 = vmatprep.subr.mxu0 0.0
    %3962 = vmatpush2.xpose.msra.mxu0 0.0
    %3963 = vmatprep.subr.mxu0 0.0
    %3964 = vmatpush2.xpose.msra.mxu0 0.0
    %3965 = vmatprep.subr.mxu0 0.0
    %3966 = vmatpush2.xpose.msra.mxu0 0.0
    %3967 = vmatprep.subr.mxu0 0.0
    %3968 = vmatpush2.xpose.msra.mxu0 0.0
    %3969 = vmatprep.subr.mxu0 0.0
    %3970 = vmatpush2.xpose.msra.mxu0 0.0
    %3971 = vmatprep.subr.mxu0 0.0
    %3972 = vmatpush2.xpose.msra.mxu0 0.0
    %3973 = vmatprep.subr.mxu0 0.0
    %3974 = vmatpush2.xpose.msra.mxu0 0.0
    %3975 = vmatprep.subr.mxu0 0.0
    %3976 = vmatpush2.xpose.msra.mxu0 0.0
    %3977 = vmatprep.subr.mxu0 0.0
    %3978 = vmatpush2.xpose.msra.mxu0 0.0
    %3979 = vmatprep.subr.mxu0 0.0
    %3980 = vmatpush2.xpose.msra.mxu0 0.0
    %3981 = vmatprep.subr.mxu0 0.0
    %3982 = vmatpush2.xpose.msra.mxu0 0.0
    %3983 = vmatprep.subr.mxu0 0.0
    %3984 = vmatpush2.xpose.msra.mxu0 0.0
    %3985 = vmatprep.subr.mxu0 0.0
    %3986 = vmatpush2.xpose.msra.mxu0 0.0
    %3987 = vmatprep.subr.mxu0 0.0
    %3988 = vmatpush2.xpose.msra.mxu0 0.0
    %3989 = vmatprep.subr.mxu0 0.0
    %3990 = vmatpush2.xpose.msra.mxu0 0.0
    %3991 = vmatprep.mubr.f32.mxu0 0.0
    %3992 = vmatmul.mubr.f32.gmra.mxu0 %v3919
    %v3993 = vpop.f32.mrf.mxu0
    %v3994 = vadd.f32 0.0, %v3993
    %v3995 = vpop.f32.mrf.mxu0
    %3996 = vmatprep.mubr.f32.mxu0 0.0
    %3997 = vmatmul.mubr.f32.gmra.mxu0 %v3921
    %v3998 = vpop.f32.mrf.mxu0
    %v3999 = vadd.f32 0.0, %v3998
    %v4000 = vpop.f32.mrf.mxu0
    %4001 = vdwg.mxu0
    %v4002 = vmul.f32 %v3903, 0.35355338
    %v4003 = vmul.f32 %v3908, 0.35355338
    %v4004 = vmul.f32 %v3994, 0.35355338
    %v4005 = vmul.f32 %v3999, 0.35355338
    %v4006 = vadd.f32 %v4002, %v78
    %v4007 = vadd.f32 %v4003, %v78
    %v4008 = vadd.f32 %v4004, %v82
    %v4009 = vadd.f32 %v4005, %v82
    %v4010 = vsel %vm484, %v4006, -inf
    %4011 = vmax.xlane.f32.xlu0 %v4010
    %v4012 = vpop.xlane.xlu0 %4011
    %v4013 = vsel %vm484, %v4007, -inf
    %4014 = vmax.xlane.f32.xlu0 %v4013
    %v4015 = vpop.xlane.xlu0 %4014
    %v4016 = vsel %vm484, %v4008, -inf
    %4017 = vmax.xlane.f32.xlu0 %v4016
    %v4018 = vpop.xlane.xlu0 %4017
    %v4019 = vsel %vm484, %v4009, -inf
    %4020 = vmax.xlane.f32.xlu0 %v4019
    %v4021 = vpop.xlane.xlu0 %4020
    %v4022 = vsub.f32 %v4006, %v4012
    %v4023 = vsub.f32 %v4007, %v4015
    %v4024 = vsub.f32 %v4008, %v4018
    %v4025 = vsub.f32 %v4009, %v4021
    %v4026 = vmul.f32 %v4022, 1.442695
    %v4027 = vpow.pop %v4026
    %v4028 = vmul.f32 %v4023, 1.442695
    %v4029 = vpow.pop %v4028
    %v4030 = vmul.f32 %v4024, 1.442695
    %v4031 = vpow.pop %v4030
    %v4032 = vmul.f32 %v4025, 1.442695
    %v4033 = vpow.pop %v4032
    %v4034 = vsel %vm484, %v4027, 0.0
    %4035 = vadd.xlane.f32.xlu0 %v4034
    %v4036 = vpop.xlane.xlu0 %4035
    %v4037 = vsel %vm484, %v4029, 0.0
    %4038 = vadd.xlane.f32.xlu0 %v4037
    %v4039 = vpop.xlane.xlu0 %4038
    %v4040 = vsel %vm484, %v4031, 0.0
    %4041 = vadd.xlane.f32.xlu0 %v4040
    %v4042 = vpop.xlane.xlu0 %4041
    %v4043 = vsel %vm484, %v4033, 0.0
    %4044 = vadd.xlane.f32.xlu0 %v4043
    %v4045 = vpop.xlane.xlu0 %4044
    %v4046 = vrcp.pop %v4036
    %v4047 = vmul.f32 %v4027, %v4046
    %v4048 = vrcp.pop %v4039
    %v4049 = vmul.f32 %v4029, %v4048
    %v4050 = vrcp.pop %v4042
    %v4051 = vmul.f32 %v4031, %v4050
    %v4052 = vrcp.pop %v4045
    %v4053 = vmul.f32 %v4033, %v4052
    %4054 = vrot.lane.b32.xlu0 %v2582, 40
    %v4055 = vpop.permute.xlu0 %4054
    %4056 = vrot.lane.b32.xlu0 %v2587, 40
    %v4057 = vpop.permute.xlu0 %4056
    %v4061 = vsel %vm484, %v4047, 0
    %v4064 = vsel %vm484, %v4049, 0
    %4066 = vmatprep.subr.mxu0 0.0
    %4067 = vmatpush1.msra.mxu0 0.0
    %4068 = vmatprep.subr.mxu0 0.0
    %4069 = vmatpush1.msra.mxu0 0.0
    %4070 = vmatprep.subr.mxu0 0.0
    %4071 = vmatpush1.msra.mxu0 0.0
    %4072 = vmatprep.subr.mxu0 0.0
    %4073 = vmatpush1.msra.mxu0 0.0
    %4074 = vmatprep.subr.mxu0 0.0
    %4075 = vmatpush1.msra.mxu0 0.0
    %4076 = vmatprep.subr.mxu0 0.0
    %4077 = vmatpush1.msra.mxu0 0.0
    %4078 = vmatprep.subr.mxu0 0.0
    %4079 = vmatpush1.msra.mxu0 0.0
    %4080 = vmatprep.subr.mxu0 0.0
    %4081 = vmatpush1.msra.mxu0 0.0
    %4082 = vmatprep.subr.mxu0 0.0
    %4083 = vmatpush1.msra.mxu0 0.0
    %4084 = vmatprep.subr.mxu0 0.0
    %4085 = vmatpush1.msra.mxu0 0.0
    %4086 = vmatprep.subr.mxu0 0.0
    %4087 = vmatpush1.msra.mxu0 0.0
    %4088 = vmatprep.subr.mxu0 0.0
    %4089 = vmatpush1.msra.mxu0 0.0
    %4090 = vmatprep.subr.mxu0 0.0
    %4091 = vmatpush1.msra.mxu0 0.0
    %4092 = vmatprep.subr.mxu0 0.0
    %4093 = vmatpush1.msra.mxu0 0.0
    %4094 = vmatprep.subr.mxu0 0.0
    %4095 = vmatpush1.msra.mxu0 %v4057
    %4096 = vmatprep.subr.mxu0 0.0
    %4097 = vmatpush1.msra.mxu0 %v4055
    %4098 = vmatprep.subr.mxu0 0.0
    %4099 = vmatpush2.msra.mxu0 0.0
    %4100 = vmatprep.subr.mxu0 0.0
    %4101 = vmatpush2.msra.mxu0 0.0
    %4102 = vmatprep.subr.mxu0 0.0
    %4103 = vmatpush2.msra.mxu0 0.0
    %4104 = vmatprep.subr.mxu0 0.0
    %4105 = vmatpush2.msra.mxu0 0.0
    %4106 = vmatprep.subr.mxu0 0.0
    %4107 = vmatpush2.msra.mxu0 0.0
    %4108 = vmatprep.subr.mxu0 0.0
    %4109 = vmatpush2.msra.mxu0 0.0
    %4110 = vmatprep.subr.mxu0 0.0
    %4111 = vmatpush2.msra.mxu0 0.0
    %4112 = vmatprep.subr.mxu0 0.0
    %4113 = vmatpush2.msra.mxu0 0.0
    %4114 = vmatprep.subr.mxu0 0.0
    %4115 = vmatpush2.msra.mxu0 0.0
    %4116 = vmatprep.subr.mxu0 0.0
    %4117 = vmatpush2.msra.mxu0 0.0
    %4118 = vmatprep.subr.mxu0 0.0
    %4119 = vmatpush2.msra.mxu0 0.0
    %4120 = vmatprep.subr.mxu0 0.0
    %4121 = vmatpush2.msra.mxu0 0.0
    %4122 = vmatprep.subr.mxu0 0.0
    %4123 = vmatpush2.msra.mxu0 0.0
    %4124 = vmatprep.subr.mxu0 0.0
    %4125 = vmatpush2.msra.mxu0 0.0
    %4126 = vmatprep.subr.mxu0 0.0
    %4127 = vmatpush2.msra.mxu0 0.0
    %4128 = vmatprep.subr.mxu0 0.0
    %4129 = vmatpush2.msra.mxu0 0.0
    %4130 = vmatprep.mubr.f32.mxu0 0.0
    %4131 = vmatmul.mubr.f32.gmra.mxu0 %v4061
    %v4132 = vpop.f32.mrf.mxu0
    %v4133 = vadd.f32 0.0, %v4132
    %v4134 = vpop.f32.mrf.mxu0
    %4135 = vmatprep.mubr.f32.mxu0 0.0
    %4136 = vmatmul.mubr.f32.gmra.mxu0 %v4064
    %v4137 = vpop.f32.mrf.mxu0
    %v4138 = vadd.f32 0.0, %v4137
    %v4139 = vpop.f32.mrf.mxu0
    %4140 = vdwg.mxu0
    %4141 = vrot.lane.b32.xlu0 %v2592, 40
    %v4142 = vpop.permute.xlu0 %4141
    %4143 = vrot.lane.b32.xlu0 %v2597, 40
    %v4144 = vpop.permute.xlu0 %4143
    %v4148 = vsel %vm484, %v4051, 0
    %v4151 = vsel %vm484, %v4053, 0
    %4153 = vmatprep.subr.mxu0 0.0
    %4154 = vmatpush1.msra.mxu0 0.0
    %4155 = vmatprep.subr.mxu0 0.0
    %4156 = vmatpush1.msra.mxu0 0.0
    %4157 = vmatprep.subr.mxu0 0.0
    %4158 = vmatpush1.msra.mxu0 0.0
    %4159 = vmatprep.subr.mxu0 0.0
    %4160 = vmatpush1.msra.mxu0 0.0
    %4161 = vmatprep.subr.mxu0 0.0
    %4162 = vmatpush1.msra.mxu0 0.0
    %4163 = vmatprep.subr.mxu0 0.0
    %4164 = vmatpush1.msra.mxu0 0.0
    %4165 = vmatprep.subr.mxu0 0.0
    %4166 = vmatpush1.msra.mxu0 0.0
    %4167 = vmatprep.subr.mxu0 0.0
    %4168 = vmatpush1.msra.mxu0 0.0
    %4169 = vmatprep.subr.mxu0 0.0
    %4170 = vmatpush1.msra.mxu0 0.0
    %4171 = vmatprep.subr.mxu0 0.0
    %4172 = vmatpush1.msra.mxu0 0.0
    %4173 = vmatprep.subr.mxu0 0.0
    %4174 = vmatpush1.msra.mxu0 0.0
    %4175 = vmatprep.subr.mxu0 0.0
    %4176 = vmatpush1.msra.mxu0 0.0
    %4177 = vmatprep.subr.mxu0 0.0
    %4178 = vmatpush1.msra.mxu0 0.0
    %4179 = vmatprep.subr.mxu0 0.0
    %4180 = vmatpush1.msra.mxu0 0.0
    %4181 = vmatprep.subr.mxu0 0.0
    %4182 = vmatpush1.msra.mxu0 %v4144
    %4183 = vmatprep.subr.mxu0 0.0
    %4184 = vmatpush1.msra.mxu0 %v4142
    %4185 = vmatprep.subr.mxu0 0.0
    %4186 = vmatpush2.msra.mxu0 0.0
    %4187 = vmatprep.subr.mxu0 0.0
    %4188 = vmatpush2.msra.mxu0 0.0
    %4189 = vmatprep.subr.mxu0 0.0
    %4190 = vmatpush2.msra.mxu0 0.0
    %4191 = vmatprep.subr.mxu0 0.0
    %4192 = vmatpush2.msra.mxu0 0.0
    %4193 = vmatprep.subr.mxu0 0.0
    %4194 = vmatpush2.msra.mxu0 0.0
    %4195 = vmatprep.subr.mxu0 0.0
    %4196 = vmatpush2.msra.mxu0 0.0
    %4197 = vmatprep.subr.mxu0 0.0
    %4198 = vmatpush2.msra.mxu0 0.0
    %4199 = vmatprep.subr.mxu0 0.0
    %4200 = vmatpush2.msra.mxu0 0.0
    %4201 = vmatprep.subr.mxu0 0.0
    %4202 = vmatpush2.msra.mxu0 0.0
    %4203 = vmatprep.subr.mxu0 0.0
    %4204 = vmatpush2.msra.mxu0 0.0
    %4205 = vmatprep.subr.mxu0 0.0
    %4206 = vmatpush2.msra.mxu0 0.0
    %4207 = vmatprep.subr.mxu0 0.0
    %4208 = vmatpush2.msra.mxu0 0.0
    %4209 = vmatprep.subr.mxu0 0.0
    %4210 = vmatpush2.msra.mxu0 0.0
    %4211 = vmatprep.subr.mxu0 0.0
    %4212 = vmatpush2.msra.mxu0 0.0
    %4213 = vmatprep.subr.mxu0 0.0
    %4214 = vmatpush2.msra.mxu0 0.0
    %4215 = vmatprep.subr.mxu0 0.0
    %4216 = vmatpush2.msra.mxu0 0.0
    %4217 = vmatprep.mubr.f32.mxu0 0.0
    %4218 = vmatmul.mubr.f32.gmra.mxu0 %v4148
    %v4219 = vpop.f32.mrf.mxu0
    %v4220 = vadd.f32 0.0, %v4219
    %v4221 = vpop.f32.mrf.mxu0
    %4222 = vmatprep.mubr.f32.mxu0 0.0
    %4223 = vmatmul.mubr.f32.gmra.mxu0 %v4151
    %v4224 = vpop.f32.mrf.mxu0
    %v4225 = vadd.f32 0.0, %v4224
    %v4226 = vpop.f32.mrf.mxu0
    %4227 = vdwg.mxu0
    %4232 = vrot.lane.b32.xlu0 %v3317, 8
    %v4233 = vpop.permute.xlu0 %4232
    %4234 = vrot.lane.b32.xlu0 %v3322, 8
    %v4235 = vpop.permute.xlu0 %4234
    %4236 = vrot.lane.b32.xlu0 %v3404, 8
    %v4237 = vpop.permute.xlu0 %4236
    %4238 = vrot.lane.b32.xlu0 %v3409, 8
    %v4239 = vpop.permute.xlu0 %4238
    %4248 = vrot.lane.b32.xlu0 %v3725, 16
    %v4249 = vpop.permute.xlu0 %4248
    %4250 = vrot.lane.b32.xlu0 %v3730, 16
    %v4251 = vpop.permute.xlu0 %4250
    %4252 = vrot.lane.b32.xlu0 %v3812, 16
    %v4253 = vpop.permute.xlu0 %4252
    %4254 = vrot.lane.b32.xlu0 %v3817, 16
    %v4255 = vpop.permute.xlu0 %4254
    %4264 = vrot.lane.b32.xlu0 %v4133, 24
    %v4265 = vpop.permute.xlu0 %4264
    %4266 = vrot.lane.b32.xlu0 %v4138, 24
    %v4267 = vpop.permute.xlu0 %4266
    %4268 = vrot.lane.b32.xlu0 %v4220, 24
    %v4269 = vpop.permute.xlu0 %4268
    %4270 = vrot.lane.b32.xlu0 %v4225, 24
    %v4271 = vpop.permute.xlu0 %4270
    %v4276 = vsel %vm90, %v2909, %v4233
    %v4277 = vsel %vm90, %v2914, %v4235
    %v4278 = vsel %vm90, %v2996, %v4237
    %v4279 = vsel %vm90, %v3001, %v4239
    %v4280 = vsel %vm484, %v4276, %v4249
    %v4281 = vsel %vm484, %v4277, %v4251
    %v4282 = vsel %vm484, %v4278, %v4253
    %v4283 = vsel %vm484, %v4279, %v4255
    %v4284 = vsel %vm1983, %v4280, %v4265
    %v4285 = vsel %vm1983, %v4281, %v4267
    %v4286 = vsel %vm1983, %v4282, %v4269
    %v4287 = vsel %vm1983, %v4283, %v4271
    %s4288 = scalar_lea.vmem %s6, 32
    %v4289 = vld [vmem:[%s4288] sm:$0xff]
    %v4290 = vld [vmem:[%s4288 + $0x8] sm:$0xff]
    %v4291 = vld [vmem:[%s4288 + $0x10] sm:$0xff]
    %v4292 = vld [vmem:[%s4288 + $0x18] sm:$0xff]
    %v4293 = vlaneseq
    %v4294 = vshrl.u32 %v4293, 7
    %v4295 = vsub.s32 0, %v4294
    %v4296 = vrot.slane %v2489, %v4295
    %v4298 = vsel %vm200, %v4284, 0
    %v4301 = vsel %vm200, %v4285, 0
    %v4304 = vsel %vm200, %v4286, 0
    %v4307 = vsel %vm200, %v4287, 0
    %4309 = vmatprep.subr.mxu0 0.0
    %4310 = vmatpush1.msra.mxu0 0.0
    %4311 = vmatprep.subr.mxu0 0.0
    %4312 = vmatpush1.msra.mxu0 0.0
    %4313 = vmatprep.subr.mxu0 0.0
    %4314 = vmatpush1.msra.mxu0 0.0
    %4315 = vmatprep.subr.mxu0 0.0
    %4316 = vmatpush1.msra.mxu0 0.0
    %4317 = vmatprep.subr.mxu0 0.0
    %4318 = vmatpush1.msra.mxu0 0.0
    %4319 = vmatprep.subr.mxu0 0.0
    %4320 = vmatpush1.msra.mxu0 0.0
    %4321 = vmatprep.subr.mxu0 0.0
    %4322 = vmatpush1.msra.mxu0 0.0
    %4323 = vmatprep.subr.mxu0 0.0
    %4324 = vmatpush1.msra.mxu0 0.0
    %4325 = vmatprep.subr.mxu0 0.0
    %4326 = vmatpush1.msra.mxu0 0.0
    %4327 = vmatprep.subr.mxu0 0.0
    %4328 = vmatpush1.msra.mxu0 0.0
    %4329 = vmatprep.subr.mxu0 0.0
    %4330 = vmatpush1.msra.mxu0 0.0
    %4331 = vmatprep.subr.mxu0 0.0
    %4332 = vmatpush1.msra.mxu0 0.0
    %4333 = vmatprep.subr.mxu0 0.0
    %4334 = vmatpush1.msra.mxu0 %v4292
    %4335 = vmatprep.subr.mxu0 0.0
    %4336 = vmatpush1.msra.mxu0 %v4291
    %4337 = vmatprep.subr.mxu0 0.0
    %4338 = vmatpush1.msra.mxu0 %v4290
    %4339 = vmatprep.subr.mxu0 0.0
    %4340 = vmatpush1.msra.mxu0 %v4289
    %4341 = vmatprep.subr.mxu0 0.0
    %4342 = vmatpush2.msra.mxu0 0.0
    %4343 = vmatprep.subr.mxu0 0.0
    %4344 = vmatpush2.msra.mxu0 0.0
    %4345 = vmatprep.subr.mxu0 0.0
    %4346 = vmatpush2.msra.mxu0 0.0
    %4347 = vmatprep.subr.mxu0 0.0
    %4348 = vmatpush2.msra.mxu0 0.0
    %4349 = vmatprep.subr.mxu0 0.0
    %4350 = vmatpush2.msra.mxu0 0.0
    %4351 = vmatprep.subr.mxu0 0.0
    %4352 = vmatpush2.msra.mxu0 0.0
    %4353 = vmatprep.subr.mxu0 0.0
    %4354 = vmatpush2.msra.mxu0 0.0
    %4355 = vmatprep.subr.mxu0 0.0
    %4356 = vmatpush2.msra.mxu0 0.0
    %4357 = vmatprep.subr.mxu0 0.0
    %4358 = vmatpush2.msra.mxu0 0.0
    %4359 = vmatprep.subr.mxu0 0.0
    %4360 = vmatpush2.msra.mxu0 0.0
    %4361 = vmatprep.subr.mxu0 0.0
    %4362 = vmatpush2.msra.mxu0 0.0
    %4363 = vmatprep.subr.mxu0 0.0
    %4364 = vmatpush2.msra.mxu0 0.0
    %4365 = vmatprep.subr.mxu0 0.0
    %4366 = vmatpush2.msra.mxu0 0.0
    %4367 = vmatprep.subr.mxu0 0.0
    %4368 = vmatpush2.msra.mxu0 0.0
    %4369 = vmatprep.subr.mxu0 0.0
    %4370 = vmatpush2.msra.mxu0 0.0
    %4371 = vmatprep.subr.mxu0 0.0
    %4372 = vmatpush2.msra.mxu0 0.0
    %4373 = vmatprep.mubr.f32.mxu0 0.0
    %4374 = vmatmul.mubr.f32.gmra.mxu0 %v4298
    %v4375 = vpop.f32.mrf.mxu0
    %v4376 = vadd.f32 %v4296, %v4375
    %v4377 = vpop.f32.mrf.mxu0
    %4378 = vmatprep.mubr.f32.mxu0 0.0
    %4379 = vmatmul.mubr.f32.gmra.mxu0 %v4301
    %v4380 = vpop.f32.mrf.mxu0
    %v4381 = vadd.f32 %v4296, %v4380
    %v4382 = vpop.f32.mrf.mxu0
    %4383 = vmatprep.mubr.f32.mxu0 0.0
    %4384 = vmatmul.mubr.f32.gmra.mxu0 %v4304
    %v4385 = vpop.f32.mrf.mxu0
    %v4386 = vadd.f32 %v4296, %v4385
    %v4387 = vpop.f32.mrf.mxu0
    %4388 = vmatprep.mubr.f32.mxu0 0.0
    %4389 = vmatmul.mubr.f32.gmra.mxu0 %v4307
    %v4390 = vpop.f32.mrf.mxu0
    %v4391 = vadd.f32 %v4296, %v4390
    %v4392 = vpop.f32.mrf.mxu0
    %4393 = vdwg.mxu0
    %v4394 = vadd.f32 %v4376, %v2484
    %v4395 = vadd.f32 %v4381, %v2485
    %v4396 = vadd.f32 %v4386, %v2486
    %v4397 = vadd.f32 %v4391, %v2487
    %v4398 = vsel %vm200, %v4394, 0.0
    %4399 = vadd.xlane.f32.xlu0 %v4398
    %v4400 = vpop.xlane.xlu0 %4399
    %v4401 = vsel %vm200, %v4395, 0.0
    %4402 = vadd.xlane.f32.xlu0 %v4401
    %v4403 = vpop.xlane.xlu0 %4402
    %v4404 = vsel %vm200, %v4396, 0.0
    %4405 = vadd.xlane.f32.xlu0 %v4404
    %v4406 = vpop.xlane.xlu0 %4405
    %v4407 = vsel %vm200, %v4397, 0.0
    %4408 = vadd.xlane.f32.xlu0 %v4407
    %v4409 = vpop.xlane.xlu0 %4408
    %v4410 = vmul.f32 %v4400, %v2109
    %v4411 = vmul.f32 %v4403, %v2109
    %v4412 = vmul.f32 %v4406, %v2109
    %v4413 = vmul.f32 %v4409, %v2109
    %v4414 = vsub.f32 %v4394, %v4410
    %v4415 = vsub.f32 %v4395, %v4411
    %v4416 = vsub.f32 %v4396, %v4412
    %v4417 = vsub.f32 %v4397, %v4413
    %v4418 = vmul.f32 %v4414, %v4414
    %v4419 = vmul.f32 %v4415, %v4415
    %v4420 = vmul.f32 %v4416, %v4416
    %v4421 = vmul.f32 %v4417, %v4417
    %v4422 = vsel %vm200, %v4418, 0.0
    %4423 = vadd.xlane.f32.xlu0 %v4422
    %v4424 = vpop.xlane.xlu0 %4423
    %v4425 = vsel %vm200, %v4419, 0.0
    %4426 = vadd.xlane.f32.xlu0 %v4425
    %v4427 = vpop.xlane.xlu0 %4426
    %v4428 = vsel %vm200, %v4420, 0.0
    %4429 = vadd.xlane.f32.xlu0 %v4428
    %v4430 = vpop.xlane.xlu0 %4429
    %v4431 = vsel %vm200, %v4421, 0.0
    %4432 = vadd.xlane.f32.xlu0 %v4431
    %v4433 = vpop.xlane.xlu0 %4432
    %v4434 = vmul.f32 %v4424, %v2109
    %v4435 = vmul.f32 %v4427, %v2109
    %v4436 = vmul.f32 %v4430, %v2109
    %v4437 = vmul.f32 %v4433, %v2109
    %v4438 = vadd.f32 %v4434, 1e-05
    %v4439 = vadd.f32 %v4435, 1e-05
    %v4440 = vadd.f32 %v4436, 1e-05
    %v4441 = vadd.f32 %v4437, 1e-05
    %v4442 = vrsqrt.pop %v4438
    %v4443 = vrsqrt.pop %v4439
    %v4444 = vrsqrt.pop %v4440
    %v4445 = vrsqrt.pop %v4441
    %v4446 = vmul.f32 %v4414, %v4442
    %v4447 = vmul.f32 %v4415, %v4443
    %v4448 = vmul.f32 %v4416, %v4444
    %v4449 = vmul.f32 %v4417, %v4445
    %v4450 = vlaneseq
    %v4451 = vshrl.u32 %v4450, 7
    %v4452 = vsub.s32 1, %v4451
    %v4453 = vrot.slane %v2489, %v4452
    %v4454 = vmul.f32 %v4446, %v4453
    %v4455 = vmul.f32 %v4447, %v4453
    %v4456 = vmul.f32 %v4448, %v4453
    %v4457 = vmul.f32 %v4449, %v4453
    %v4458 = vlaneseq
    %v4459 = vshrl.u32 %v4458, 7
    %v4460 = vsub.s32 2, %v4459
    %v4461 = vrot.slane %v2489, %v4460
    %v4462 = vadd.f32 %v4454, %v4461
    %v4463 = vadd.f32 %v4455, %v4461
    %v4464 = vadd.f32 %v4456, %v4461
    %v4465 = vadd.f32 %v4457, %v4461
    %v4466 = vmul.f32 %v4462, %v2169
    %v4467 = vmul.f32 %v4463, %v2174
    %v4468 = vmul.f32 %v4464, %v2179
    %v4469 = vmul.f32 %v4465, %v2184
    %s4470 = scalar_lea.vmem %s8, 32
    %v4471 = vld [vmem:[%s4470] sm:$0xff]
    %v4472 = vld [vmem:[%s4470 + $0x8] sm:$0xff]
    %v4473 = vld [vmem:[%s4470 + $0x10] sm:$0xff]
    %v4474 = vld [vmem:[%s4470 + $0x18] sm:$0xff]
    %s4475 = scalar_lea.vmem %s9, 1
    %v4476 = vld [vmem:[%s4475] sm:$0x1]
    %v4478 = vlaneseq
    %v4479 = vshrl.u32 %v4478, 7
    %v4480 = vsub.s32 0, %v4479
    %v4481 = vrot.slane %v4476, %v4480
    %v4484 = vsel %vm200, %v4466, 0
    %v4487 = vsel %vm200, %v4467, 0
    %v4490 = vsel %vm200, %v4468, 0
    %v4493 = vsel %vm200, %v4469, 0
    %4495 = vmatprep.subr.mxu0 0.0
    %4496 = vmatpush1.msra.mxu0 0.0
    %4497 = vmatprep.subr.mxu0 0.0
    %4498 = vmatpush1.msra.mxu0 0.0
    %4499 = vmatprep.subr.mxu0 0.0
    %4500 = vmatpush1.msra.mxu0 0.0
    %4501 = vmatprep.subr.mxu0 0.0
    %4502 = vmatpush1.msra.mxu0 0.0
    %4503 = vmatprep.subr.mxu0 0.0
    %4504 = vmatpush1.msra.mxu0 0.0
    %4505 = vmatprep.subr.mxu0 0.0
    %4506 = vmatpush1.msra.mxu0 0.0
    %4507 = vmatprep.subr.mxu0 0.0
    %4508 = vmatpush1.msra.mxu0 0.0
    %4509 = vmatprep.subr.mxu0 0.0
    %4510 = vmatpush1.msra.mxu0 0.0
    %4511 = vmatprep.subr.mxu0 0.0
    %4512 = vmatpush1.msra.mxu0 0.0
    %4513 = vmatprep.subr.mxu0 0.0
    %4514 = vmatpush1.msra.mxu0 0.0
    %4515 = vmatprep.subr.mxu0 0.0
    %4516 = vmatpush1.msra.mxu0 0.0
    %4517 = vmatprep.subr.mxu0 0.0
    %4518 = vmatpush1.msra.mxu0 0.0
    %4519 = vmatprep.subr.mxu0 0.0
    %4520 = vmatpush1.msra.mxu0 %v4474
    %4521 = vmatprep.subr.mxu0 0.0
    %4522 = vmatpush1.msra.mxu0 %v4473
    %4523 = vmatprep.subr.mxu0 0.0
    %4524 = vmatpush1.msra.mxu0 %v4472
    %4525 = vmatprep.subr.mxu0 0.0
    %4526 = vmatpush1.msra.mxu0 %v4471
    %4527 = vmatprep.subr.mxu0 0.0
    %4528 = vmatpush2.msra.mxu0 0.0
    %4529 = vmatprep.subr.mxu0 0.0
    %4530 = vmatpush2.msra.mxu0 0.0
    %4531 = vmatprep.subr.mxu0 0.0
    %4532 = vmatpush2.msra.mxu0 0.0
    %4533 = vmatprep.subr.mxu0 0.0
    %4534 = vmatpush2.msra.mxu0 0.0
    %4535 = vmatprep.subr.mxu0 0.0
    %4536 = vmatpush2.msra.mxu0 0.0
    %4537 = vmatprep.subr.mxu0 0.0
    %4538 = vmatpush2.msra.mxu0 0.0
    %4539 = vmatprep.subr.mxu0 0.0
    %4540 = vmatpush2.msra.mxu0 0.0
    %4541 = vmatprep.subr.mxu0 0.0
    %4542 = vmatpush2.msra.mxu0 0.0
    %4543 = vmatprep.subr.mxu0 0.0
    %4544 = vmatpush2.msra.mxu0 0.0
    %4545 = vmatprep.subr.mxu0 0.0
    %4546 = vmatpush2.msra.mxu0 0.0
    %4547 = vmatprep.subr.mxu0 0.0
    %4548 = vmatpush2.msra.mxu0 0.0
    %4549 = vmatprep.subr.mxu0 0.0
    %4550 = vmatpush2.msra.mxu0 0.0
    %4551 = vmatprep.subr.mxu0 0.0
    %4552 = vmatpush2.msra.mxu0 0.0
    %4553 = vmatprep.subr.mxu0 0.0
    %4554 = vmatpush2.msra.mxu0 0.0
    %4555 = vmatprep.subr.mxu0 0.0
    %4556 = vmatpush2.msra.mxu0 0.0
    %4557 = vmatprep.subr.mxu0 0.0
    %4558 = vmatpush2.msra.mxu0 0.0
    %4559 = vmatprep.mubr.f32.mxu0 0.0
    %4560 = vmatmul.mubr.f32.gmra.mxu0 %v4484
    %v4561 = vpop.f32.mrf.mxu0
    %v4562 = vadd.f32 %v4481, %v4561
    %v4563 = vpop.f32.mrf.mxu0
    %4564 = vmatprep.mubr.f32.mxu0 0.0
    %4565 = vmatmul.mubr.f32.gmra.mxu0 %v4487
    %v4566 = vpop.f32.mrf.mxu0
    %v4567 = vadd.f32 %v4481, %v4566
    %v4568 = vpop.f32.mrf.mxu0
    %4569 = vmatprep.mubr.f32.mxu0 0.0
    %4570 = vmatmul.mubr.f32.gmra.mxu0 %v4490
    %v4571 = vpop.f32.mrf.mxu0
    %v4572 = vadd.f32 %v4481, %v4571
    %v4573 = vpop.f32.mrf.mxu0
    %4574 = vmatprep.mubr.f32.mxu0 0.0
    %4575 = vmatmul.mubr.f32.gmra.mxu0 %v4493
    %v4576 = vpop.f32.mrf.mxu0
    %v4577 = vadd.f32 %v4481, %v4576
    %v4578 = vpop.f32.mrf.mxu0
    %4579 = vdwg.mxu0
    %v4580 = vmax.f32 %v4562, 0.0
    %v4581 = vmax.f32 %v4567, 0.0
    %v4582 = vmax.f32 %v4572, 0.0
    %v4583 = vmax.f32 %v4577, 0.0
    %s4584 = scalar_lea.vmem %s10, 64
    %v4585 = vld [vmem:[%s4584] sm:$0xff]
    %v4586 = vld [vmem:[%s4584 + $0x8] sm:$0xff]
    %v4587 = vld [vmem:[%s4584 + $0x10] sm:$0xff]
    %v4588 = vld [vmem:[%s4584 + $0x18] sm:$0xff]
    %v4589 = vld [vmem:[%s4584 + $0x20] sm:$0xff]
    %v4590 = vld [vmem:[%s4584 + $0x28] sm:$0xff]
    %v4591 = vld [vmem:[%s4584 + $0x30] sm:$0xff]
    %v4592 = vld [vmem:[%s4584 + $0x38] sm:$0xff]
    %v4593 = vlaneseq
    %v4594 = vshrl.u32 %v4593, 7
    %v4595 = vsub.s32 3, %v4594
    %v4596 = vrot.slane %v2489, %v4595
    %v4598 = vsel %vm2314, %v4580, 0
    %v4601 = vsel %vm2314, %v4581, 0
    %v4604 = vsel %vm2314, %v4582, 0
    %v4607 = vsel %vm2314, %v4583, 0
    %4609 = vmatprep.subr.mxu0 0.0
    %4610 = vmatpush1.msra.mxu0 0.0
    %4611 = vmatprep.subr.mxu0 0.0
    %4612 = vmatpush1.msra.mxu0 0.0
    %4613 = vmatprep.subr.mxu0 0.0
    %4614 = vmatpush1.msra.mxu0 0.0
    %4615 = vmatprep.subr.mxu0 0.0
    %4616 = vmatpush1.msra.mxu0 0.0
    %4617 = vmatprep.subr.mxu0 0.0
    %4618 = vmatpush1.msra.mxu0 0.0
    %4619 = vmatprep.subr.mxu0 0.0
    %4620 = vmatpush1.msra.mxu0 0.0
    %4621 = vmatprep.subr.mxu0 0.0
    %4622 = vmatpush1.msra.mxu0 0.0
    %4623 = vmatprep.subr.mxu0 0.0
    %4624 = vmatpush1.msra.mxu0 0.0
    %4625 = vmatprep.subr.mxu0 0.0
    %4626 = vmatpush1.msra.mxu0 %v4592
    %4627 = vmatprep.subr.mxu0 0.0
    %4628 = vmatpush1.msra.mxu0 %v4591
    %4629 = vmatprep.subr.mxu0 0.0
    %4630 = vmatpush1.msra.mxu0 %v4590
    %4631 = vmatprep.subr.mxu0 0.0
    %4632 = vmatpush1.msra.mxu0 %v4589
    %4633 = vmatprep.subr.mxu0 0.0
    %4634 = vmatpush1.msra.mxu0 %v4588
    %4635 = vmatprep.subr.mxu0 0.0
    %4636 = vmatpush1.msra.mxu0 %v4587
    %4637 = vmatprep.subr.mxu0 0.0
    %4638 = vmatpush1.msra.mxu0 %v4586
    %4639 = vmatprep.subr.mxu0 0.0
    %4640 = vmatpush1.msra.mxu0 %v4585
    %4641 = vmatprep.subr.mxu0 0.0
    %4642 = vmatpush2.msra.mxu0 0.0
    %4643 = vmatprep.subr.mxu0 0.0
    %4644 = vmatpush2.msra.mxu0 0.0
    %4645 = vmatprep.subr.mxu0 0.0
    %4646 = vmatpush2.msra.mxu0 0.0
    %4647 = vmatprep.subr.mxu0 0.0
    %4648 = vmatpush2.msra.mxu0 0.0
    %4649 = vmatprep.subr.mxu0 0.0
    %4650 = vmatpush2.msra.mxu0 0.0
    %4651 = vmatprep.subr.mxu0 0.0
    %4652 = vmatpush2.msra.mxu0 0.0
    %4653 = vmatprep.subr.mxu0 0.0
    %4654 = vmatpush2.msra.mxu0 0.0
    %4655 = vmatprep.subr.mxu0 0.0
    %4656 = vmatpush2.msra.mxu0 0.0
    %4657 = vmatprep.subr.mxu0 0.0
    %4658 = vmatpush2.msra.mxu0 0.0
    %4659 = vmatprep.subr.mxu0 0.0
    %4660 = vmatpush2.msra.mxu0 0.0
    %4661 = vmatprep.subr.mxu0 0.0
    %4662 = vmatpush2.msra.mxu0 0.0
    %4663 = vmatprep.subr.mxu0 0.0
    %4664 = vmatpush2.msra.mxu0 0.0
    %4665 = vmatprep.subr.mxu0 0.0
    %4666 = vmatpush2.msra.mxu0 0.0
    %4667 = vmatprep.subr.mxu0 0.0
    %4668 = vmatpush2.msra.mxu0 0.0
    %4669 = vmatprep.subr.mxu0 0.0
    %4670 = vmatpush2.msra.mxu0 0.0
    %4671 = vmatprep.subr.mxu0 0.0
    %4672 = vmatpush2.msra.mxu0 0.0
    %4673 = vmatprep.mubr.f32.mxu0 0.0
    %4674 = vmatmul.mubr.f32.gmra.mxu0 %v4598
    %v4675 = vpop.f32.mrf.mxu0
    %v4676 = vadd.f32 %v4596, %v4675
    %v4677 = vpop.f32.mrf.mxu0
    %4678 = vmatprep.mubr.f32.mxu0 0.0
    %4679 = vmatmul.mubr.f32.gmra.mxu0 %v4601
    %v4680 = vpop.f32.mrf.mxu0
    %v4681 = vadd.f32 %v4596, %v4680
    %v4682 = vpop.f32.mrf.mxu0
    %4683 = vmatprep.mubr.f32.mxu0 0.0
    %4684 = vmatmul.mubr.f32.gmra.mxu0 %v4604
    %v4685 = vpop.f32.mrf.mxu0
    %v4686 = vadd.f32 %v4596, %v4685
    %v4687 = vpop.f32.mrf.mxu0
    %4688 = vmatprep.mubr.f32.mxu0 0.0
    %4689 = vmatmul.mubr.f32.gmra.mxu0 %v4607
    %v4690 = vpop.f32.mrf.mxu0
    %v4691 = vadd.f32 %v4596, %v4690
    %v4692 = vpop.f32.mrf.mxu0
    %4693 = vdwg.mxu0
    %v4694 = vadd.f32 %v4676, %v4466
    %v4695 = vadd.f32 %v4681, %v4467
    %v4696 = vadd.f32 %v4686, %v4468
    %v4697 = vadd.f32 %v4691, %v4469
    %v4698 = vsel %vm200, %v4694, 0.0
    %4699 = vadd.xlane.f32.xlu0 %v4698
    %v4700 = vpop.xlane.xlu0 %4699
    %v4701 = vsel %vm200, %v4695, 0.0
    %4702 = vadd.xlane.f32.xlu0 %v4701
    %v4703 = vpop.xlane.xlu0 %4702
    %v4704 = vsel %vm200, %v4696, 0.0
    %4705 = vadd.xlane.f32.xlu0 %v4704
    %v4706 = vpop.xlane.xlu0 %4705
    %v4707 = vsel %vm200, %v4697, 0.0
    %4708 = vadd.xlane.f32.xlu0 %v4707
    %v4709 = vpop.xlane.xlu0 %4708
    %v4710 = vmul.f32 %v4700, %v2109
    %v4711 = vmul.f32 %v4703, %v2109
    %v4712 = vmul.f32 %v4706, %v2109
    %v4713 = vmul.f32 %v4709, %v2109
    %v4714 = vsub.f32 %v4694, %v4710
    %v4715 = vsub.f32 %v4695, %v4711
    %v4716 = vsub.f32 %v4696, %v4712
    %v4717 = vsub.f32 %v4697, %v4713
    %v4718 = vmul.f32 %v4714, %v4714
    %v4719 = vmul.f32 %v4715, %v4715
    %v4720 = vmul.f32 %v4716, %v4716
    %v4721 = vmul.f32 %v4717, %v4717
    %v4722 = vsel %vm200, %v4718, 0.0
    %4723 = vadd.xlane.f32.xlu0 %v4722
    %v4724 = vpop.xlane.xlu0 %4723
    %v4725 = vsel %vm200, %v4719, 0.0
    %4726 = vadd.xlane.f32.xlu0 %v4725
    %v4727 = vpop.xlane.xlu0 %4726
    %v4728 = vsel %vm200, %v4720, 0.0
    %4729 = vadd.xlane.f32.xlu0 %v4728
    %v4730 = vpop.xlane.xlu0 %4729
    %v4731 = vsel %vm200, %v4721, 0.0
    %4732 = vadd.xlane.f32.xlu0 %v4731
    %v4733 = vpop.xlane.xlu0 %4732
    %v4734 = vmul.f32 %v4724, %v2109
    %v4735 = vmul.f32 %v4727, %v2109
    %v4736 = vmul.f32 %v4730, %v2109
    %v4737 = vmul.f32 %v4733, %v2109
    %v4738 = vadd.f32 %v4734, 1e-05
    %v4739 = vadd.f32 %v4735, 1e-05
    %v4740 = vadd.f32 %v4736, 1e-05
    %v4741 = vadd.f32 %v4737, 1e-05
    %v4742 = vrsqrt.pop %v4738
    %v4743 = vrsqrt.pop %v4739
    %v4744 = vrsqrt.pop %v4740
    %v4745 = vrsqrt.pop %v4741
    %v4746 = vmul.f32 %v4714, %v4742
    %v4747 = vmul.f32 %v4715, %v4743
    %v4748 = vmul.f32 %v4716, %v4744
    %v4749 = vmul.f32 %v4717, %v4745
    %v4750 = vlaneseq
    %v4751 = vshrl.u32 %v4750, 7
    %v4752 = vsub.s32 4, %v4751
    %v4753 = vrot.slane %v2489, %v4752
    %v4754 = vmul.f32 %v4746, %v4753
    %v4755 = vmul.f32 %v4747, %v4753
    %v4756 = vmul.f32 %v4748, %v4753
    %v4757 = vmul.f32 %v4749, %v4753
    %v4758 = vlaneseq
    %v4759 = vshrl.u32 %v4758, 7
    %v4760 = vsub.s32 5, %v4759
    %v4761 = vrot.slane %v2489, %v4760
    %v4762 = vadd.f32 %v4754, %v4761
    %v4763 = vadd.f32 %v4755, %v4761
    %v4764 = vadd.f32 %v4756, %v4761
    %v4765 = vadd.f32 %v4757, %v4761
    %v4766 = vmul.f32 %v4762, %v2169
    %v4767 = vmul.f32 %v4763, %v2174
    %v4768 = vmul.f32 %v4764, %v2179
    %v4769 = vmul.f32 %v4765, %v2184
    %v4770 = vld [vmem:[%s11] sm:$0x1]
    %v4772 = vsel %vm484, %v4770, 0
    %4774 = vmatprep.subr.mxu0 0.0
    %4775 = vmatpush1.msra.mxu0 0.0
    %4776 = vmatprep.subr.mxu0 0.0
    %4777 = vmatpush1.msra.mxu0 0.0
    %4778 = vmatprep.subr.mxu0 0.0
    %4779 = vmatpush1.msra.mxu0 0.0
    %4780 = vmatprep.subr.mxu0 0.0
    %4781 = vmatpush1.msra.mxu0 0.0
    %4782 = vmatprep.subr.mxu0 0.0
    %4783 = vmatpush1.msra.mxu0 0.0
    %4784 = vmatprep.subr.mxu0 0.0
    %4785 = vmatpush1.msra.mxu0 0.0
    %4786 = vmatprep.subr.mxu0 0.0
    %4787 = vmatpush1.msra.mxu0 0.0
    %4788 = vmatprep.subr.mxu0 0.0
    %4789 = vmatpush1.msra.mxu0 0.0
    %4790 = vmatprep.subr.mxu0 0.0
    %4791 = vmatpush1.msra.mxu0 0.0
    %4792 = vmatprep.subr.mxu0 0.0
    %4793 = vmatpush1.msra.mxu0 0.0
    %4794 = vmatprep.subr.mxu0 0.0
    %4795 = vmatpush1.msra.mxu0 0.0
    %4796 = vmatprep.subr.mxu0 0.0
    %4797 = vmatpush1.msra.mxu0 0.0
    %4798 = vmatprep.subr.mxu0 0.0
    %4799 = vmatpush1.msra.mxu0 0.0
    %4800 = vmatprep.subr.mxu0 0.0
    %4801 = vmatpush1.msra.mxu0 0.0
    %4802 = vmatprep.subr.mxu0 0.0
    %4803 = vmatpush1.msra.mxu0 %v4767
    %4804 = vmatprep.subr.mxu0 0.0
    %4805 = vmatpush1.msra.mxu0 %v4766
    %4806 = vmatprep.subr.mxu0 0.0
    %4807 = vmatpush2.msra.mxu0 0.0
    %4808 = vmatprep.subr.mxu0 0.0
    %4809 = vmatpush2.msra.mxu0 0.0
    %4810 = vmatprep.subr.mxu0 0.0
    %4811 = vmatpush2.msra.mxu0 0.0
    %4812 = vmatprep.subr.mxu0 0.0
    %4813 = vmatpush2.msra.mxu0 0.0
    %4814 = vmatprep.subr.mxu0 0.0
    %4815 = vmatpush2.msra.mxu0 0.0
    %4816 = vmatprep.subr.mxu0 0.0
    %4817 = vmatpush2.msra.mxu0 0.0
    %4818 = vmatprep.subr.mxu0 0.0
    %4819 = vmatpush2.msra.mxu0 0.0
    %4820 = vmatprep.subr.mxu0 0.0
    %4821 = vmatpush2.msra.mxu0 0.0
    %4822 = vmatprep.subr.mxu0 0.0
    %4823 = vmatpush2.msra.mxu0 0.0
    %4824 = vmatprep.subr.mxu0 0.0
    %4825 = vmatpush2.msra.mxu0 0.0
    %4826 = vmatprep.subr.mxu0 0.0
    %4827 = vmatpush2.msra.mxu0 0.0
    %4828 = vmatprep.subr.mxu0 0.0
    %4829 = vmatpush2.msra.mxu0 0.0
    %4830 = vmatprep.subr.mxu0 0.0
    %4831 = vmatpush2.msra.mxu0 0.0
    %4832 = vmatprep.subr.mxu0 0.0
    %4833 = vmatpush2.msra.mxu0 0.0
    %4834 = vmatprep.subr.mxu0 0.0
    %4835 = vmatpush2.msra.mxu0 0.0
    %4836 = vmatprep.subr.mxu0 0.0
    %4837 = vmatpush2.msra.mxu0 0.0
    %4838 = vmatprep.mubr.f32.mxu0 0.0
    %4839 = vmatmul.mubr.f32.gmra.mxu0 %v4772
    %v4840 = vpop.f32.mrf.mxu0
    %v4841 = vadd.f32 0.0, %v4840
    %v4842 = vpop.f32.mrf.mxu0
    %4843 = vdwg.mxu0
    %4844 = vmatprep.subr.mxu0 0.0
    %4845 = vmatpush1.msra.mxu0 0.0
    %4846 = vmatprep.subr.mxu0 0.0
    %4847 = vmatpush1.msra.mxu0 0.0
    %4848 = vmatprep.subr.mxu0 0.0
    %4849 = vmatpush1.msra.mxu0 0.0
    %4850 = vmatprep.subr.mxu0 0.0
    %4851 = vmatpush1.msra.mxu0 0.0
    %4852 = vmatprep.subr.mxu0 0.0
    %4853 = vmatpush1.msra.mxu0 0.0
    %4854 = vmatprep.subr.mxu0 0.0
    %4855 = vmatpush1.msra.mxu0 0.0
    %4856 = vmatprep.subr.mxu0 0.0
    %4857 = vmatpush1.msra.mxu0 0.0
    %4858 = vmatprep.subr.mxu0 0.0
    %4859 = vmatpush1.msra.mxu0 0.0
    %4860 = vmatprep.subr.mxu0 0.0
    %4861 = vmatpush1.msra.mxu0 0.0
    %4862 = vmatprep.subr.mxu0 0.0
    %4863 = vmatpush1.msra.mxu0 0.0
    %4864 = vmatprep.subr.mxu0 0.0
    %4865 = vmatpush1.msra.mxu0 0.0
    %4866 = vmatprep.subr.mxu0 0.0
    %4867 = vmatpush1.msra.mxu0 0.0
    %4868 = vmatprep.subr.mxu0 0.0
    %4869 = vmatpush1.msra.mxu0 0.0
    %4870 = vmatprep.subr.mxu0 0.0
    %4871 = vmatpush1.msra.mxu0 0.0
    %4872 = vmatprep.subr.mxu0 0.0
    %4873 = vmatpush1.msra.mxu0 %v4769
    %4874 = vmatprep.subr.mxu0 0.0
    %4875 = vmatpush1.msra.mxu0 %v4768
    %4876 = vmatprep.subr.mxu0 0.0
    %4877 = vmatpush2.msra.mxu0 0.0
    %4878 = vmatprep.subr.mxu0 0.0
    %4879 = vmatpush2.msra.mxu0 0.0
    %4880 = vmatprep.subr.mxu0 0.0
    %4881 = vmatpush2.msra.mxu0 0.0
    %4882 = vmatprep.subr.mxu0 0.0
    %4883 = vmatpush2.msra.mxu0 0.0
    %4884 = vmatprep.subr.mxu0 0.0
    %4885 = vmatpush2.msra.mxu0 0.0
    %4886 = vmatprep.subr.mxu0 0.0
    %4887 = vmatpush2.msra.mxu0 0.0
    %4888 = vmatprep.subr.mxu0 0.0
    %4889 = vmatpush2.msra.mxu0 0.0
    %4890 = vmatprep.subr.mxu0 0.0
    %4891 = vmatpush2.msra.mxu0 0.0
    %4892 = vmatprep.subr.mxu0 0.0
    %4893 = vmatpush2.msra.mxu0 0.0
    %4894 = vmatprep.subr.mxu0 0.0
    %4895 = vmatpush2.msra.mxu0 0.0
    %4896 = vmatprep.subr.mxu0 0.0
    %4897 = vmatpush2.msra.mxu0 0.0
    %4898 = vmatprep.subr.mxu0 0.0
    %4899 = vmatpush2.msra.mxu0 0.0
    %4900 = vmatprep.subr.mxu0 0.0
    %4901 = vmatpush2.msra.mxu0 0.0
    %4902 = vmatprep.subr.mxu0 0.0
    %4903 = vmatpush2.msra.mxu0 0.0
    %4904 = vmatprep.subr.mxu0 0.0
    %4905 = vmatpush2.msra.mxu0 0.0
    %4906 = vmatprep.subr.mxu0 0.0
    %4907 = vmatpush2.msra.mxu0 0.0
    %4908 = vmatprep.mubr.f32.mxu0 0.0
    %4909 = vmatmul.mubr.f32.gmra.mxu0 %v4772
    %v4910 = vpop.f32.mrf.mxu0
    %v4911 = vadd.f32 0.0, %v4910
    %v4912 = vpop.f32.mrf.mxu0
    %4913 = vdwg.mxu0
    %v4914 = vld [vmem:[#allocation2] sm:$0x1]
    %v4916 = vlaneseq
    %v4917 = vshrl.u32 %v4916, 7
    %v4918 = vsub.s32 0, %v4917
    %v4919 = vrot.slane %v4914, %v4918
    %4920 = vset.pattern.permute.xlu0 0
    %4921 = vperm.xlu0 %4920, %v4919
    %v4922 = vpop.permute.xlu0 %4921
    %v4924 = vadd.f32 %v4841, %v4922
    %v4925 = vadd.f32 %v4911, %v4922
    %v4928 = vrot.slane %v4925, 7
    %vm4929 = vcmask 1041409
    %v4930 = vsel %vm4929, %v4928, %v4924
    %vm4932 = vcmask 254976
    %4933 = vst.msk [vmem:[#allocation3] sm:$0x3] %vm4932, %v4930
    // Predicated region
    $region54: #{tpu_custom_call.1} parent=1 // pred_check
      _
    $region55: #{tpu_custom_call.1} parent=1 // pred_check_branch
      %4935 = sbr.rel (0) target = $region57
    $region56: #{tpu_custom_call.1} parent=1 // pred_region
      %s4937 = ssub.s32 32, 32
      %4938 = vsyncadd [#allocation4], %s4937
      %s4940 = sshll.u32 [#allocation3], 4
      %s4941 = int_to_ptr.vmem [resolvable:$true] %s4940
      %4943 = dma.vmem_to_hbm [thread:$0]  %s4941, 32, %s13, [#allocation4]
    $region57: #{tpu_custom_call.1} parent=1 // pred_fallthru
      _
    // Predicated region
    $region58: #{tpu_custom_call.1} parent=1 // pred_check
      _
    $region59: #{tpu_custom_call.1} parent=1 // pred_check_branch
      %4945 = sbr.rel (0) target = $region61
    $region60: #{tpu_custom_call.1} parent=1 // pred_region
      %4946 = dma.done [#allocation4], 32
    $region61: #{tpu_custom_call.1} parent=1 // pred_fallthru
      _
    %4947 = vsyncpa [#allocation4], 1

</llo_original>
